<compile_context>
chip_gen: v7x
topology: tpu7x:2x2x1
jax: 0.10.0
libtpu: 0.0.40
codegen_flags: <defaults>
</compile_context>

<pallas_src>
import jax
import jax.numpy as jnp
import numpy as np
from jax.experimental import pallas as pl
from jax.experimental.pallas import tpu as pltpu

EPS = 1.001e-05
KSIZE = 3
CP = 128           # padded output-channel width (TPU lane dim)
STAT_ROWS = 8      # per-tile stats block height (sublane aligned)


# ------------------------------ Pallas kernels ------------------------------ #
def _write_stats(acc, stats_ref):
    """Per-tile channel partial sums for the global BatchNorm reduction."""
    cp = acc.shape[1]
    s = jnp.sum(acc, axis=0, keepdims=True)          # (1, CP)
    ss = jnp.sum(acc * acc, axis=0, keepdims=True)   # (1, CP)
    pad = jnp.zeros((STAT_ROWS - 2, cp), jnp.float32)
    stats_ref[...] = jnp.concatenate([s, ss, pad], axis=0)


def conv1_kernel(xcol_ref, w_ref, acc_ref, stats_ref):
    """conv1 tile: one folded 9-tap matmul (K = 9*Cin) + partial BN stats."""
    acc = jnp.dot(xcol_ref[...], w_ref[...], preferred_element_type=jnp.float32)
    acc_ref[...] = acc
    _write_stats(acc, stats_ref)


def conv2_kernel(x_ref, w_ref, acc_ref, stats_ref):
    """conv2 tile: 3x3 'same' conv on a (TH+2, W+2, 128) halo tile.

    The 9 shifted taps are sliced straight out of the VMEM block and folded
    into a single (TH*W, 9*128) @ (9*128, 128) MXU matmul."""
    th = x_ref.shape[1] - 2
    wo = x_ref.shape[2] - 2
    cp = x_ref.shape[3]
    taps = []
    for kh in range(KSIZE):
        for kw in range(KSIZE):
            t = x_ref[0, kh:kh + th, kw:kw + wo, :]          # (TH, W, CP) bf16
            taps.append(t.reshape(th * wo, cp))
    xcol = jnp.concatenate(taps, axis=-1)                    # (TH*W, 9*CP)
    acc = jnp.dot(xcol, w_ref[...], preferred_element_type=jnp.float32)
    acc_ref[...] = acc
    _write_stats(acc, stats_ref)


def finalize_kernel(a1_ref, a2_ref, s1_ref, b1_ref, s2_ref, b2_ref, out_ref):
    """bn1 = a1*scale1+shift1 ; bn2 = a2*scale2+shift2 ; out = relu(bn1+bn2)."""
    bn1 = a1_ref[...] * s1_ref[...] + b1_ref[...]
    bn2 = a2_ref[...] * s2_ref[...] + b2_ref[...]
    out_ref[...] = jnp.maximum(bn1 + bn2, 0.0)


# ------------------------------ tiling helpers ------------------------------ #
def _pick_rows(m, cap=512):
    """Largest divisor of m that is a multiple of 8 and <= cap (prefer >=2 tiles)."""
    cands = [d for d in range(8, min(m, cap) + 1, 8) if m % d == 0]
    if not cands:
        return m
    small = [d for d in cands if d <= max(8, m // 2)]
    return max(small) if small else max(cands)


def _pick_th(h, w, row_cap=1024):
    """Rows per conv2 tile: divisor of H, TH*W a multiple of 8, modest VMEM."""
    cands = [t for t in range(1, h + 1)
             if h % t == 0 and (t * w) % 8 == 0 and t * w <= row_cap]
    if not cands:
        return h
    small = [t for t in cands if t <= max(1, h // 2)]
    return max(small) if small else max(cands)


# ------------------------------ pallas_call glue ---------------------------- #
def _conv1(xcol, w1p, tm):
    m, kdim = xcol.shape
    n_tiles = m // tm
    cost = pl.CostEstimate(flops=2 * m * kdim * CP, transcendentals=0,
                           bytes_accessed=xcol.size * 2 + w1p.size * 2
                           + m * CP * 4 + n_tiles * STAT_ROWS * CP * 4)
    return pl.pallas_call(
        conv1_kernel,
        grid=(n_tiles,),
        in_specs=[
            pl.BlockSpec((tm, kdim), lambda i: (i, 0)),
            pl.BlockSpec((kdim, CP), lambda i: (0, 0)),
        ],
        out_specs=(
            pl.BlockSpec((tm, CP), lambda i: (i, 0)),
            pl.BlockSpec((STAT_ROWS, CP), lambda i: (i, 0)),
        ),
        out_shape=(
            jax.ShapeDtypeStruct((m, CP), jnp.float32),
            jax.ShapeDtypeStruct((n_tiles * STAT_ROWS, CP), jnp.float32),
        ),
        compiler_params=pltpu.CompilerParams(dimension_semantics=("parallel",)),
        cost_estimate=cost,
    )(xcol, w1p)


def _conv2(x_tiles, w2p, th, w):
    g2 = x_tiles.shape[0]
    tm = th * w
    m = g2 * tm
    kdim = w2p.shape[0]
    cost = pl.CostEstimate(flops=2 * m * kdim * CP, transcendentals=0,
                           bytes_accessed=x_tiles.size * 2 + w2p.size * 2
                           + m * CP * 4 + g2 * STAT_ROWS * CP * 4)
    return pl.pallas_call(
        conv2_kernel,
        grid=(g2,),
        in_specs=[
            pl.BlockSpec((1, th + 2, w + 2, CP), lambda i: (i, 0, 0, 0)),
            pl.BlockSpec((kdim, CP), lambda i: (0, 0)),
        ],
        out_specs=(
            pl.BlockSpec((tm, CP), lambda i: (i, 0)),
            pl.BlockSpec((STAT_ROWS, CP), lambda i: (i, 0)),
        ),
        out_shape=(
            jax.ShapeDtypeStruct((m, CP), jnp.float32),
            jax.ShapeDtypeStruct((g2 * STAT_ROWS, CP), jnp.float32),
        ),
        compiler_params=pltpu.CompilerParams(dimension_semantics=("parallel",)),
        cost_estimate=cost,
    )(x_tiles, w2p)


def _finalize(acc1, acc2, s1, b1, s2, b2, tm):
    m = acc1.shape[0]
    n_tiles = m // tm
    row_spec = pl.BlockSpec((tm, CP), lambda i: (i, 0))
    vec_spec = pl.BlockSpec((1, CP), lambda i: (0, 0))
    return pl.pallas_call(
        finalize_kernel,
        grid=(n_tiles,),
        in_specs=[row_spec, row_spec, vec_spec, vec_spec, vec_spec, vec_spec],
        out_specs=row_spec,
        out_shape=jax.ShapeDtypeStruct((m, CP), jnp.float32),
        compiler_params=pltpu.CompilerParams(dimension_semantics=("parallel",)),
    )(acc1, acc2, s1, b1, s2, b2)


def _bn_affine(stats, count, gamma_pad, beta_pad):
    """Fold per-tile partial sums into per-channel (scale, shift) in f32."""
    tot = stats.reshape(-1, STAT_ROWS, CP).sum(axis=0)          # (8, CP)
    mean = tot[0] / count
    var = jnp.maximum(tot[1] / count - mean * mean, 0.0)        # biased variance
    scale = gamma_pad * jax.lax.rsqrt(var + EPS)
    shift = beta_pad - mean * scale
    return scale.reshape(1, CP), shift.reshape(1, CP)


# ------------------------------- forward pass ------------------------------- #
def residual_conv(x_nchw, params):
    n, cin, h, w = x_nchw.shape
    cout = params["w1"].shape[0]
    assert cout <= CP
    m = n * h * w

    x = jnp.transpose(x_nchw, (0, 2, 3, 1)).astype(jnp.float32)  # NCHW -> NHWC

    # Weights: (Cout, Cin, 3, 3) -> folded tap matrices, Cout zero-padded to 128.
    w1 = jnp.transpose(params["w1"], (2, 3, 1, 0)).reshape(KSIZE * KSIZE * cin, cout)
    w1p = jnp.pad(w1, ((0, 0), (0, CP - cout))).astype(jnp.bfloat16)        # (9*Cin, 128)
    w2 = jnp.transpose(params["w2"], (2, 3, 1, 0))                           # (3,3,Cout,Cout)
    w2p = jnp.pad(w2, ((0, 0), (0, 0), (0, CP - cout), (0, CP - cout)))
    w2p = w2p.reshape(KSIZE * KSIZE * CP, CP).astype(jnp.bfloat16)           # (9*128, 128)

    def padvec(v, fill):
        return jnp.pad(v.astype(jnp.float32), (0, CP - cout), constant_values=fill)
    g1, b1 = padvec(params["gamma1"], 1.0), padvec(params["beta1"], 0.0)
    g2, b2 = padvec(params["gamma2"], 1.0), padvec(params["beta2"], 0.0)

    # conv1 input: 9 taps folded on the host -> lane dim = 9*Cin (Cin is tiny).
    xp = jnp.pad(x, ((0, 0), (1, 1), (1, 1), (0, 0))).astype(jnp.bfloat16)
    taps = [xp[:, kh:kh + h, kw:kw + w, :].reshape(m, cin)
            for kh in range(KSIZE) for kw in range(KSIZE)]
    xcol1 = jnp.concatenate(taps, axis=-1)                                   # (M, 9*Cin)

    # Pass 1: conv1 (single folded matmul per tile) + per-tile channel sums.
    tm1 = _pick_rows(m)
    acc1, stats1 = _conv1(xcol1, w1p, tm1)                                   # (M,128) f32
    scale1, shift1 = _bn_affine(stats1, m, g1, b1)

    # bn1 (conv2 input) materialized once, zero 'same' padded, and laid out as
    # overlapping row tiles with a 1-row halo (lane-dense 128 channels).
    th = _pick_th(h, w)
    n_th = h // th
    bn1 = (acc1 * scale1 + shift1).astype(jnp.bfloat16).reshape(n, h, w, CP)
    bn1p = jnp.pad(bn1, ((0, 0), (1, 1), (1, 1), (0, 0)))
    bn1_tiles = jnp.stack([bn1p[:, t * th:t * th + th + 2] for t in range(n_th)],
                          axis=1).reshape(n * n_th, th + 2, w + 2, CP)

    # Pass 2: conv2 with in-kernel halo taps + per-tile channel sums.
    acc2, stats2 = _conv2(bn1_tiles, w2p, th, w)                             # (M,128) f32
    scale2, shift2 = _bn_affine(stats2, m, g2, b2)

    # Pass 3: normalize both branches, residual add, ReLU (single write).
    tm3 = _pick_rows(m)
    out = _finalize(acc1, acc2, scale1, shift1, scale2, shift2, tm3)         # (M,128)

    out = out[:, :cout].reshape(n, h, w, cout)
    return jnp.transpose(out, (0, 3, 1, 2))                                  # NHWC -> NCHW


# -------------------------- parameter initialization ------------------------ #
def init_params(key, cin, cout, k=KSIZE):
    k1, k2 = jax.random.split(key)

    def xavier(kk, cout_, cin_):
        fan_in, fan_out = cin_ * k * k, cout_ * k * k
        a = float(np.sqrt(6.0 / (fan_in + fan_out)))
        return jax.random.uniform(kk, (cout_, cin_, k, k), jnp.float32, -a, a)

    return dict(
        w1=xavier(k1, cout, cin),
        w2=xavier(k2, cout, cout),
        gamma1=jnp.ones((cout,), jnp.float32),
        beta1=jnp.zeros((cout,), jnp.float32),
        gamma2=jnp.ones((cout,), jnp.float32),
        beta2=jnp.zeros((cout,), jnp.float32),
    )


# ------------------------------ pure-JAX reference --------------------------- #
def residual_conv_ref(x_nchw, params):
    def conv(x, w):
        return jax.lax.conv_general_dilated(
            x, w, (1, 1), ((1, 1), (1, 1)),
            dimension_numbers=("NCHW", "OIHW", "NCHW"),
            precision=jax.lax.Precision.HIGHEST)

    def bn(x, g, b):
        mean = jnp.mean(x, axis=(0, 2, 3), keepdims=True)
        var = jnp.mean((x - mean) ** 2, axis=(0, 2, 3), keepdims=True)
        return ((x - mean) * jax.lax.rsqrt(var + EPS)
                * g.reshape(1, -1, 1, 1) + b.reshape(1, -1, 1, 1))

    c1 = bn(conv(x_nchw, params["w1"]), params["gamma1"], params["beta1"])
    c2 = bn(conv(c1, params["w2"]), params["gamma2"], params["beta2"])
    return jnp.maximum(c1 + c2, 0.0)


if __name__ == "__main__":
    key = jax.random.PRNGKey(0)
    kx, kp = jax.random.split(key)

    N, CIN, COUT, H, W = 2, 4, 32, 16, 16
    x = jax.random.normal(kx, (N, CIN, H, W), jnp.float32)
    params = init_params(kp, CIN, COUT)

    fwd = jax.jit(residual_conv)
    out = jax.block_until_ready(fwd(x, params))

    ref = residual_conv_ref(x, params)
    np.testing.assert_allclose(np.asarray(out), np.asarray(ref),
                               rtol=2e-2, atol=2e-2)
    print("KERNEL_OK")
</pallas_src>

<mosaic_0001>
module attributes {stable_mosaic.version = 11 : i64} {
  func.func @conv1_kernel(%arg0: i32, %arg1: memref<256x36xbf16, #tpu.memory_space<vmem>>, %arg2: memref<36x128xbf16, #tpu.memory_space<vmem>>, %arg3: memref<256x128xf32, #tpu.memory_space<vmem>>, %arg4: memref<8x128xf32, #tpu.memory_space<vmem>>) attributes {dimension_semantics = [#tpu.dimension_semantics<parallel>], iteration_bounds = array<i64: 2>, scalar_prefetch = 0 : i64, scratch_operands = 0 : i64, tpu.core_type = #tpu.core_type<tc>, window_params = [{transform_indices = @transform_0, window_bounds = array<i64: 256, 36>}, {pipeline_mode = #tpu.pipeline_mode<synchronous>, transform_indices = @transform_1, window_bounds = array<i64: 36, 128>}, {transform_indices = @transform_2, window_bounds = array<i64: 256, 128>}, {transform_indices = @transform_3, window_bounds = array<i64: 8, 128>}]} {
    %c0 = arith.constant 0 : index
    %c0_0 = arith.constant 0 : index
    %0 = vector.load %arg1[%c0, %c0_0] : memref<256x36xbf16, #tpu.memory_space<vmem>>, vector<256x36xbf16>
    %c0_1 = arith.constant 0 : index
    %c0_2 = arith.constant 0 : index
    %1 = vector.load %arg2[%c0_1, %c0_2] : memref<36x128xbf16, #tpu.memory_space<vmem>>, vector<36x128xbf16>
    %cst = arith.constant dense<0.000000e+00> : vector<256x128xf32>
    %2 = tpu.matmul %0, %1, %cst {dimension_numbers = #tpu.dot_dimension_numbers<[1], [0], [0], [1], [0, 0, 1, 1], [], []>} : vector<256x36xbf16>, vector<36x128xbf16>, vector<256x128xf32> -> vector<256x128xf32>
    %c0_3 = arith.constant 0 : index
    %c0_4 = arith.constant 0 : index
    %3 = vector.load %arg3[%c0_3, %c0_4] : memref<256x128xf32, #tpu.memory_space<vmem>>, vector<256x128xf32>
    tpu.vector_store %arg3[%c0_3, %c0_4], %2 {strides = array<i32>} : memref<256x128xf32, #tpu.memory_space<vmem>>, vector<256x128xf32>,
    %cst_5 = arith.constant dense<0.000000e+00> : vector<128xf32>
    %4 = vector.multi_reduction <add>, %2, %cst_5 [0] : vector<256x128xf32> to vector<128xf32>
    %5 = vector.shape_cast %4 : vector<128xf32> to vector<1x128xf32>
    %6 = arith.mulf %2, %2 : vector<256x128xf32>
    %cst_6 = arith.constant dense<0.000000e+00> : vector<128xf32>
    %7 = vector.multi_reduction <add>, %6, %cst_6 [0] : vector<256x128xf32> to vector<128xf32>
    %8 = vector.shape_cast %7 : vector<128xf32> to vector<1x128xf32>
    %cst_7 = arith.constant 0.000000e+00 : f32
    %9 = vector.broadcast %cst_7 : f32 to vector<6x128xf32>
    %10 = tpu.concatenate %5, %8, %9 in 0 : vector<1x128xf32>, vector<1x128xf32>, vector<6x128xf32> -> vector<8x128xf32>
    %c0_8 = arith.constant 0 : index
    %c0_9 = arith.constant 0 : index
    %11 = vector.load %arg4[%c0_8, %c0_9] : memref<8x128xf32, #tpu.memory_space<vmem>>, vector<8x128xf32>
    tpu.vector_store %arg4[%c0_8, %c0_9], %10 {strides = array<i32>} : memref<8x128xf32, #tpu.memory_space<vmem>>, vector<8x128xf32>,
    return
  }
  func.func @transform_0(%arg0: i32) -> (i32, i32) {
    %c0_i32 = arith.constant 0 : i32
    %c0_i32_0 = arith.constant 0 : i32
    return %arg0, %c0_i32 : i32, i32
  }
  func.func @transform_1(%arg0: i32) -> (i32, i32) {
    %c0_i32 = arith.constant 0 : i32
    %c0_i32_0 = arith.constant 0 : i32
    %c0_i32_1 = arith.constant 0 : i32
    return %c0_i32, %c0_i32_0 : i32, i32
  }
  func.func @transform_2(%arg0: i32) -> (i32, i32) {
    %c0_i32 = arith.constant 0 : i32
    %c0_i32_0 = arith.constant 0 : i32
    return %arg0, %c0_i32 : i32, i32
  }
  func.func @transform_3(%arg0: i32) -> (i32, i32) {
    %c0_i32 = arith.constant 0 : i32
    %c0_i32_0 = arith.constant 0 : i32
    return %arg0, %c0_i32 : i32, i32
  }
}

module attributes {stable_mosaic.version = 11 : i64} {
  func.func @conv2_kernel(%arg0: i32, %arg1: memref<1x10x18x128xbf16, #tpu.memory_space<vmem>>, %arg2: memref<1152x128xbf16, #tpu.memory_space<vmem>>, %arg3: memref<128x128xf32, #tpu.memory_space<vmem>>, %arg4: memref<8x128xf32, #tpu.memory_space<vmem>>) attributes {dimension_semantics = [#tpu.dimension_semantics<parallel>], iteration_bounds = array<i64: 4>, scalar_prefetch = 0 : i64, scratch_operands = 0 : i64, tpu.core_type = #tpu.core_type<tc>, window_params = [{transform_indices = @transform_0, window_bounds = array<i64: 1, 10, 18, 128>}, {pipeline_mode = #tpu.pipeline_mode<synchronous>, transform_indices = @transform_1, window_bounds = array<i64: 1152, 128>}, {transform_indices = @transform_2, window_bounds = array<i64: 128, 128>}, {transform_indices = @transform_3, window_bounds = array<i64: 8, 128>}]} {
    %c0 = arith.constant 0 : index
    %c0_0 = arith.constant 0 : index
    %c0_1 = arith.constant 0 : index
    %c0_2 = arith.constant 0 : index
    %0 = vector.load %arg1[%c0, %c0_0, %c0_1, %c0_2] : memref<1x10x18x128xbf16, #tpu.memory_space<vmem>>, vector<1x8x16x128xbf16>
    %1 = vector.shape_cast %0 : vector<1x8x16x128xbf16> to vector<8x16x128xbf16>
    %2 = vector.shape_cast %1 : vector<8x16x128xbf16> to vector<128x128xbf16>
    %c0_3 = arith.constant 0 : index
    %c0_4 = arith.constant 0 : index
    %c1 = arith.constant 1 : index
    %c0_5 = arith.constant 0 : index
    %3 = vector.load %arg1[%c0_3, %c0_4, %c1, %c0_5] : memref<1x10x18x128xbf16, #tpu.memory_space<vmem>>, vector<1x8x16x128xbf16>
    %4 = vector.shape_cast %3 : vector<1x8x16x128xbf16> to vector<8x16x128xbf16>
    %5 = vector.shape_cast %4 : vector<8x16x128xbf16> to vector<128x128xbf16>
    %c0_6 = arith.constant 0 : index
    %c0_7 = arith.constant 0 : index
    %c2 = arith.constant 2 : index
    %c0_8 = arith.constant 0 : index
    %6 = vector.load %arg1[%c0_6, %c0_7, %c2, %c0_8] : memref<1x10x18x128xbf16, #tpu.memory_space<vmem>>, vector<1x8x16x128xbf16>
    %7 = vector.shape_cast %6 : vector<1x8x16x128xbf16> to vector<8x16x128xbf16>
    %8 = vector.shape_cast %7 : vector<8x16x128xbf16> to vector<128x128xbf16>
    %c0_9 = arith.constant 0 : index
    %c1_10 = arith.constant 1 : index
    %c0_11 = arith.constant 0 : index
    %c0_12 = arith.constant 0 : index
    %9 = vector.load %arg1[%c0_9, %c1_10, %c0_11, %c0_12] : memref<1x10x18x128xbf16, #tpu.memory_space<vmem>>, vector<1x8x16x128xbf16>
    %10 = vector.shape_cast %9 : vector<1x8x16x128xbf16> to vector<8x16x128xbf16>
    %11 = vector.shape_cast %10 : vector<8x16x128xbf16> to vector<128x128xbf16>
    %c0_13 = arith.constant 0 : index
    %c1_14 = arith.constant 1 : index
    %c1_15 = arith.constant 1 : index
    %c0_16 = arith.constant 0 : index
    %12 = vector.load %arg1[%c0_13, %c1_14, %c1_15, %c0_16] : memref<1x10x18x128xbf16, #tpu.memory_space<vmem>>, vector<1x8x16x128xbf16>
    %13 = vector.shape_cast %12 : vector<1x8x16x128xbf16> to vector<8x16x128xbf16>
    %14 = vector.shape_cast %13 : vector<8x16x128xbf16> to vector<128x128xbf16>
    %c0_17 = arith.constant 0 : index
    %c1_18 = arith.constant 1 : index
    %c2_19 = arith.constant 2 : index
    %c0_20 = arith.constant 0 : index
    %15 = vector.load %arg1[%c0_17, %c1_18, %c2_19, %c0_20] : memref<1x10x18x128xbf16, #tpu.memory_space<vmem>>, vector<1x8x16x128xbf16>
    %16 = vector.shape_cast %15 : vector<1x8x16x128xbf16> to vector<8x16x128xbf16>
    %17 = vector.shape_cast %16 : vector<8x16x128xbf16> to vector<128x128xbf16>
    %c0_21 = arith.constant 0 : index
    %c2_22 = arith.constant 2 : index
    %c0_23 = arith.constant 0 : index
    %c0_24 = arith.constant 0 : index
    %18 = vector.load %arg1[%c0_21, %c2_22, %c0_23, %c0_24] : memref<1x10x18x128xbf16, #tpu.memory_space<vmem>>, vector<1x8x16x128xbf16>
    %19 = vector.shape_cast %18 : vector<1x8x16x128xbf16> to vector<8x16x128xbf16>
    %20 = vector.shape_cast %19 : vector<8x16x128xbf16> to vector<128x128xbf16>
    %c0_25 = arith.constant 0 : index
    %c2_26 = arith.constant 2 : index
    %c1_27 = arith.constant 1 : index
    %c0_28 = arith.constant 0 : index
    %21 = vector.load %arg1[%c0_25, %c2_26, %c1_27, %c0_28] : memref<1x10x18x128xbf16, #tpu.memory_space<vmem>>, vector<1x8x16x128xbf16>
    %22 = vector.shape_cast %21 : vector<1x8x16x128xbf16> to vector<8x16x128xbf16>
    %23 = vector.shape_cast %22 : vector<8x16x128xbf16> to vector<128x128xbf16>
    %c0_29 = arith.constant 0 : index
    %c2_30 = arith.constant 2 : index
    %c2_31 = arith.constant 2 : index
    %c0_32 = arith.constant 0 : index
    %24 = vector.load %arg1[%c0_29, %c2_30, %c2_31, %c0_32] : memref<1x10x18x128xbf16, #tpu.memory_space<vmem>>, vector<1x8x16x128xbf16>
    %25 = vector.shape_cast %24 : vector<1x8x16x128xbf16> to vector<8x16x128xbf16>
    %26 = vector.shape_cast %25 : vector<8x16x128xbf16> to vector<128x128xbf16>
    %27 = tpu.concatenate %2, %5, %8, %11, %14, %17, %20, %23, %26 in 1 : vector<128x128xbf16>, vector<128x128xbf16>, vector<128x128xbf16>, vector<128x128xbf16>, vector<128x128xbf16>, vector<128x128xbf16>, vector<128x128xbf16>, vector<128x128xbf16>, vector<128x128xbf16> -> vector<128x1152xbf16>
    %c0_33 = arith.constant 0 : index
    %c0_34 = arith.constant 0 : index
    %28 = vector.load %arg2[%c0_33, %c0_34] : memref<1152x128xbf16, #tpu.memory_space<vmem>>, vector<1152x128xbf16>
    %cst = arith.constant dense<0.000000e+00> : vector<128x128xf32>
    %29 = tpu.matmul %27, %28, %cst {dimension_numbers = #tpu.dot_dimension_numbers<[1], [0], [0], [1], [0, 0, 1, 1], [], []>} : vector<128x1152xbf16>, vector<1152x128xbf16>, vector<128x128xf32> -> vector<128x128xf32>
    %c0_35 = arith.constant 0 : index
    %c0_36 = arith.constant 0 : index
    %30 = vector.load %arg3[%c0_35, %c0_36] : memref<128x128xf32, #tpu.memory_space<vmem>>, vector<128x128xf32>
    tpu.vector_store %arg3[%c0_35, %c0_36], %29 {strides = array<i32>} : memref<128x128xf32, #tpu.memory_space<vmem>>, vector<128x128xf32>,
    %cst_37 = arith.constant dense<0.000000e+00> : vector<128xf32>
    %31 = vector.multi_reduction <add>, %29, %cst_37 [0] : vector<128x128xf32> to vector<128xf32>
    %32 = vector.shape_cast %31 : vector<128xf32> to vector<1x128xf32>
    %33 = arith.mulf %29, %29 : vector<128x128xf32>
    %cst_38 = arith.constant dense<0.000000e+00> : vector<128xf32>
    %34 = vector.multi_reduction <add>, %33, %cst_38 [0] : vector<128x128xf32> to vector<128xf32>
    %35 = vector.shape_cast %34 : vector<128xf32> to vector<1x128xf32>
    %cst_39 = arith.constant 0.000000e+00 : f32
    %36 = vector.broadcast %cst_39 : f32 to vector<6x128xf32>
    %37 = tpu.concatenate %32, %35, %36 in 0 : vector<1x128xf32>, vector<1x128xf32>, vector<6x128xf32> -> vector<8x128xf32>
    %c0_40 = arith.constant 0 : index
    %c0_41 = arith.constant 0 : index
    %38 = vector.load %arg4[%c0_40, %c0_41] : memref<8x128xf32, #tpu.memory_space<vmem>>, vector<8x128xf32>
    tpu.vector_store %arg4[%c0_40, %c0_41], %37 {strides = array<i32>} : memref<8x128xf32, #tpu.memory_space<vmem>>, vector<8x128xf32>,
    return
  }
  func.func @transform_0(%arg0: i32) -> (i32, i32, i32, i32) {
    %c0_i32 = arith.constant 0 : i32
    %c0_i32_0 = arith.constant 0 : i32
    %c0_i32_1 = arith.constant 0 : i32
    %c0_i32_2 = arith.constant 0 : i32
    return %arg0, %c0_i32, %c0_i32_0, %c0_i32_1 : i32, i32, i32, i32
  }
  func.func @transform_1(%arg0: i32) -> (i32, i32) {
    %c0_i32 = arith.constant 0 : i32
    %c0_i32_0 = arith.constant 0 : i32
    %c0_i32_1 = arith.constant 0 : i32
    return %c0_i32, %c0_i32_0 : i32, i32
  }
  func.func @transform_2(%arg0: i32) -> (i32, i32) {
    %c0_i32 = arith.constant 0 : i32
    %c0_i32_0 = arith.constant 0 : i32
    return %arg0, %c0_i32 : i32, i32
  }
  func.func @transform_3(%arg0: i32) -> (i32, i32) {
    %c0_i32 = arith.constant 0 : i32
    %c0_i32_0 = arith.constant 0 : i32
    return %arg0, %c0_i32 : i32, i32
  }
}

module attributes {stable_mosaic.version = 11 : i64} {
  func.func @finalize_kernel(%arg0: i32, %arg1: memref<256x128xf32, #tpu.memory_space<vmem>>, %arg2: memref<256x128xf32, #tpu.memory_space<vmem>>, %arg3: memref<1x128xf32, #tpu.memory_space<vmem>>, %arg4: memref<1x128xf32, #tpu.memory_space<vmem>>, %arg5: memref<1x128xf32, #tpu.memory_space<vmem>>, %arg6: memref<1x128xf32, #tpu.memory_space<vmem>>, %arg7: memref<256x128xf32, #tpu.memory_space<vmem>>) attributes {dimension_semantics = [#tpu.dimension_semantics<parallel>], iteration_bounds = array<i64: 2>, scalar_prefetch = 0 : i64, scratch_operands = 0 : i64, tpu.core_type = #tpu.core_type<tc>, window_params = [{transform_indices = @transform_0, window_bounds = array<i64: 256, 128>}, {transform_indices = @transform_1, window_bounds = array<i64: 256, 128>}, {pipeline_mode = #tpu.pipeline_mode<synchronous>, transform_indices = @transform_2, window_bounds = array<i64: 1, 128>}, {pipeline_mode = #tpu.pipeline_mode<synchronous>, transform_indices = @transform_3, window_bounds = array<i64: 1, 128>}, {pipeline_mode = #tpu.pipeline_mode<synchronous>, transform_indices = @transform_4, window_bounds = array<i64: 1, 128>}, {pipeline_mode = #tpu.pipeline_mode<synchronous>, transform_indices = @transform_5, window_bounds = array<i64: 1, 128>}, {transform_indices = @transform_6, window_bounds = array<i64: 256, 128>}]} {
    %c0 = arith.constant 0 : index
    %c0_0 = arith.constant 0 : index
    %0 = vector.load %arg1[%c0, %c0_0] : memref<256x128xf32, #tpu.memory_space<vmem>>, vector<256x128xf32>
    %c0_1 = arith.constant 0 : index
    %c0_2 = arith.constant 0 : index
    %1 = vector.load %arg3[%c0_1, %c0_2] : memref<1x128xf32, #tpu.memory_space<vmem>>, vector<1x128xf32>
    %2 = vector.broadcast %1 : vector<1x128xf32> to vector<256x128xf32>
    %3 = arith.mulf %0, %2 : vector<256x128xf32>
    %c0_3 = arith.constant 0 : index
    %c0_4 = arith.constant 0 : index
    %4 = vector.load %arg4[%c0_3, %c0_4] : memref<1x128xf32, #tpu.memory_space<vmem>>, vector<1x128xf32>
    %5 = vector.broadcast %4 : vector<1x128xf32> to vector<256x128xf32>
    %6 = arith.addf %3, %5 : vector<256x128xf32>
    %c0_5 = arith.constant 0 : index
    %c0_6 = arith.constant 0 : index
    %7 = vector.load %arg2[%c0_5, %c0_6] : memref<256x128xf32, #tpu.memory_space<vmem>>, vector<256x128xf32>
    %c0_7 = arith.constant 0 : index
    %c0_8 = arith.constant 0 : index
    %8 = vector.load %arg5[%c0_7, %c0_8] : memref<1x128xf32, #tpu.memory_space<vmem>>, vector<1x128xf32>
    %9 = vector.broadcast %8 : vector<1x128xf32> to vector<256x128xf32>
    %10 = arith.mulf %7, %9 : vector<256x128xf32>
    %c0_9 = arith.constant 0 : index
    %c0_10 = arith.constant 0 : index
    %11 = vector.load %arg6[%c0_9, %c0_10] : memref<1x128xf32, #tpu.memory_space<vmem>>, vector<1x128xf32>
    %12 = vector.broadcast %11 : vector<1x128xf32> to vector<256x128xf32>
    %13 = arith.addf %10, %12 : vector<256x128xf32>
    %14 = arith.addf %6, %13 : vector<256x128xf32>
    %cst = arith.constant 0.000000e+00 : f32
    %15 = vector.broadcast %cst : f32 to vector<256x128xf32>
    %16 = arith.maximumf %14, %15 : vector<256x128xf32>
    %c0_11 = arith.constant 0 : index
    %c0_12 = arith.constant 0 : index
    %17 = vector.load %arg7[%c0_11, %c0_12] : memref<256x128xf32, #tpu.memory_space<vmem>>, vector<256x128xf32>
    tpu.vector_store %arg7[%c0_11, %c0_12], %16 {strides = array<i32>} : memref<256x128xf32, #tpu.memory_space<vmem>>, vector<256x128xf32>,
    return
  }
  func.func @transform_0(%arg0: i32) -> (i32, i32) {
    %c0_i32 = arith.constant 0 : i32
    %c0_i32_0 = arith.constant 0 : i32
    return %arg0, %c0_i32 : i32, i32
  }
  func.func @transform_1(%arg0: i32) -> (i32, i32) {
    %c0_i32 = arith.constant 0 : i32
    %c0_i32_0 = arith.constant 0 : i32
    return %arg0, %c0_i32 : i32, i32
  }
  func.func @transform_2(%arg0: i32) -> (i32, i32) {
    %c0_i32 = arith.constant 0 : i32
    %c0_i32_0 = arith.constant 0 : i32
    %c0_i32_1 = arith.constant 0 : i32
    return %c0_i32, %c0_i32_0 : i32, i32
  }
  func.func @transform_3(%arg0: i32) -> (i32, i32) {
    %c0_i32 = arith.constant 0 : i32
    %c0_i32_0 = arith.constant 0 : i32
    %c0_i32_1 = arith.constant 0 : i32
    return %c0_i32, %c0_i32_0 : i32, i32
  }
  func.func @transform_4(%arg0: i32) -> (i32, i32) {
    %c0_i32 = arith.constant 0 : i32
    %c0_i32_0 = arith.constant 0 : i32
    %c0_i32_1 = arith.constant 0 : i32
    return %c0_i32, %c0_i32_0 : i32, i32
  }
  func.func @transform_5(%arg0: i32) -> (i32, i32) {
    %c0_i32 = arith.constant 0 : i32
    %c0_i32_0 = arith.constant 0 : i32
    %c0_i32_1 = arith.constant 0 : i32
    return %c0_i32, %c0_i32_0 : i32, i32
  }
  func.func @transform_6(%arg0: i32) -> (i32, i32) {
    %c0_i32 = arith.constant 0 : i32
    %c0_i32_0 = arith.constant 0 : i32
    return %arg0, %c0_i32 : i32, i32
  }
}

</mosaic_0001>

<llo_original>
// kernel: residual_conv.3
$region0: #{residual_conv.3}
  #allocation0 [shape = 'u32[]', space=smem, size = 0x4, offset = 0x4, fixed_abs, tag = 'smem constant byte address 0x4 - core index']
  #allocation1 [shape = 'u32[144,128]{1,0:T(1,128)}', space=vmem, size = 0x12000, scoped, tag = 'internal scratch']
  %s0 = inlined_call_operand.vmem [shape: bf16[512,36], index: 0, kind: input, shape index: {}]
  %s1 = inlined_call_operand.vmem [shape: bf16[36,128], index: 1, kind: input, shape index: {}]
  %s2 = inlined_call_operand.vmem [shape: f32[512,128], index: 2, kind: output, shape index: {0}]
  %s3 = inlined_call_operand.vmem [shape: f32[16,128], index: 3, kind: output, shape index: {1}]
  %4 = xla_tuple %s2, %s3
  %s5 = sld [smem:[#allocation0]]
  $region49: #{residual_conv.3} parent=0
    _
  %s7 = ssub.s32 1, %s5
  %s8 = scalar_select 0, %s7, %s5
  loop: start=0, step=1, limit=4
  $region2: #{residual_conv.3} parent=0 // loop_pre_header
    _
  $region3: #{residual_conv.3} parent=0 // loop_header
    %s10 = sphi 0, %s14
    %p11 = scmp.ge.s32.totalorder %s10, 4
    %s20 = sphi 0, %s22
    %s23 = sphi 0, %s20
    %s24 = sphi 0, %s23
    %s40 = sphi 0, %s24
    %s44 = sphi 0, %s44
    %s46 = sphi 0, %s44
    %s47 = sphi 0, %s46
    %s61 = sphi 0, %s47
    %s67 = sphi 0, %s69
    %s70 = sphi 0, %s67
    %s71 = sphi 0, %s70
    %s87 = sphi 0, %s71
    %s93 = sphi 0, %s95
    %s96 = sphi 0, %s93
    %s97 = sphi 0, %s96
    %s113 = sphi 0, %s97
  $region4: #{residual_conv.3} parent=0 // loop_header_branch
    %13 = sbr.rel (%p11) target = $region8
  $region5: #{residual_conv.3} parent=0 // loop_body
    %s15 = ssub.s32 %s10, 1
    %s16 = ssub.s32 %s10, 2
    %s17 = sadd.s32 %s10, 1
    %s18 = ssub.s32 %s10, %s17
    %p19 = scmp.eq.s32.totalorder %s18, 0
    %s21 = sadd.s32 %s20, 1
    %s22 = scalar_select %p19, %s20, %s21
    %p25 = pneg %p19
    %p26 = scmp.eq.s32.totalorder %s10, 1
    %p27 = por %p25, %p26
    %p28 = scmp.ne.s32.totalorder %s20, %s23
    %p29 = scmp.eq.s32.totalorder %s10, 0
    %p30 = por %p28, %p29
    %p31 = scmp.ne.s32.totalorder %s20, %s23
    %p32 = scmp.eq.s32.totalorder %s15, 1
    %p33 = por %p31, %p32
    %p34 = scmp.ne.s32.totalorder %s23, %s24
    %p35 = scmp.eq.s32.totalorder %s15, 0
    %p36 = por %p34, %p35
    %p37 = scmp.ne.s32.totalorder %s23, %s24
    %p38 = scmp.eq.s32.totalorder %s16, 1
    %p39 = por %p37, %p38
    %p41 = scmp.ne.s32.totalorder %s24, %s40
    %p42 = scmp.eq.s32.totalorder %s16, 0
    %p43 = por %p41, %p42
    %s45 = sadd.s32 %s44, 1
    %p48 = scmp.eq.s32.totalorder %s10, 1
    %p49 = scmp.ne.s32.totalorder %s44, %s46
    %p50 = scmp.eq.s32.totalorder %s10, 0
    %p51 = por %p49, %p50
    %p52 = scmp.ne.s32.totalorder %s44, %s46
    %p53 = scmp.eq.s32.totalorder %s15, 1
    %p54 = por %p52, %p53
    %p55 = scmp.ne.s32.totalorder %s46, %s47
    %p56 = scmp.eq.s32.totalorder %s15, 0
    %p57 = por %p55, %p56
    %p58 = scmp.ne.s32.totalorder %s46, %s47
    %p59 = scmp.eq.s32.totalorder %s16, 1
    %p60 = por %p58, %p59
    %p62 = scmp.ne.s32.totalorder %s47, %s61
    %p63 = scmp.eq.s32.totalorder %s16, 0
    %p64 = por %p62, %p63
    %s65 = ssub.s32 %s10, %s17
    %p66 = scmp.eq.s32.totalorder %s65, 0
    %s68 = sadd.s32 %s67, 1
    %s69 = scalar_select %p66, %s67, %s68
    %p72 = pneg %p66
    %p73 = scmp.eq.s32.totalorder %s10, 1
    %p74 = por %p72, %p73
    %p75 = scmp.ne.s32.totalorder %s67, %s70
    %p76 = scmp.eq.s32.totalorder %s10, 0
    %p77 = por %p75, %p76
    %p78 = scmp.ne.s32.totalorder %s67, %s70
    %p79 = scmp.eq.s32.totalorder %s15, 1
    %p80 = por %p78, %p79
    %p81 = scmp.ne.s32.totalorder %s70, %s71
    %p82 = scmp.eq.s32.totalorder %s15, 0
    %p83 = por %p81, %p82
    %p84 = scmp.ne.s32.totalorder %s70, %s71
    %p85 = scmp.eq.s32.totalorder %s16, 1
    %p86 = por %p84, %p85
    %p88 = scmp.ne.s32.totalorder %s71, %s87
    %p89 = scmp.eq.s32.totalorder %s16, 0
    %p90 = por %p88, %p89
    %s91 = ssub.s32 %s10, %s17
    %p92 = scmp.eq.s32.totalorder %s91, 0
    %s94 = sadd.s32 %s93, 1
    %s95 = scalar_select %p92, %s93, %s94
    %p98 = pneg %p92
    %p99 = scmp.eq.s32.totalorder %s10, 1
    %p100 = por %p98, %p99
    %p101 = scmp.ne.s32.totalorder %s93, %s96
    %p102 = scmp.eq.s32.totalorder %s10, 0
    %p103 = por %p101, %p102
    %p104 = scmp.ne.s32.totalorder %s93, %s96
    %p105 = scmp.eq.s32.totalorder %s15, 1
    %p106 = por %p104, %p105
    %p107 = scmp.ne.s32.totalorder %s96, %s97
    %p108 = scmp.eq.s32.totalorder %s15, 0
    %p109 = por %p107, %p108
    %p110 = scmp.ne.s32.totalorder %s96, %s97
    %p111 = scmp.eq.s32.totalorder %s16, 1
    %p112 = por %p110, %p111
    %p114 = scmp.ne.s32.totalorder %s97, %s113
    %p115 = scmp.eq.s32.totalorder %s16, 0
    %p116 = por %p114, %p115
    %p117 = scmp.le.s32.totalorder 1, %s10
    %p118 = scmp.lt.s32.totalorder %s10, 3
    %p119 = pnand %p117, %p118
    %p120 = pneg %p119
    // Predicated region
    $region9: #{residual_conv.3} parent=5 // pred_check
      _
    $region10: #{residual_conv.3} parent=5 // pred_check_branch
      %122 = sbr.rel (%p119) target = $region12
    $region11: #{residual_conv.3} parent=5 // pred_region
      %s123 = ssub.s32 %s10, 1
      // Predicated region
      $region13: #{residual_conv.3} parent=11 // pred_check
        %p124 = pneg %p57
      $region14: #{residual_conv.3} parent=11 // pred_check_branch
        %126 = sbr.rel (%p124) target = $region16
      $region15: #{residual_conv.3} parent=11 // pred_region
        _
      $region16: #{residual_conv.3} parent=11 // pred_fallthru
        _
    $region12: #{residual_conv.3} parent=5 // pred_fallthru
      _
    %p127 = scmp.lt.s32.totalorder %s10, 2
    // Predicated region
    $region17: #{residual_conv.3} parent=5 // pred_check
      %p128 = pneg %p127
    $region18: #{residual_conv.3} parent=5 // pred_check_branch
      %130 = sbr.rel (%p128) target = $region20
    $region19: #{residual_conv.3} parent=5 // pred_region
      // Predicated region
      $region21: #{residual_conv.3} parent=19 // pred_check
        %p131 = pneg %p30
      $region22: #{residual_conv.3} parent=19 // pred_check_branch
        %133 = sbr.rel (%p131) target = $region24
      $region23: #{residual_conv.3} parent=19 // pred_region
        %s134 = smul.u32 32, %s10
        %p135 = scmp.lt.s32.totalorder %s134, 63
        %s136 = scalar_select %p135, %s134, 63
        %s137 = smul.addr %s136, 4
        %s138 = scalar_lea.vmem %s0, %s137
        %s139 = smul.u32 32, %s10
      $region24: #{residual_conv.3} parent=19 // pred_fallthru
        _
    $region20: #{residual_conv.3} parent=5 // pred_fallthru
      _
    %p140 = scmp.le.s32.totalorder 1, %s10
    %p141 = scmp.lt.s32.totalorder %s10, 3
    %p142 = pnand %p140, %p141
    %p143 = pneg %p142
    // Predicated region
    $region25: #{residual_conv.3} parent=5 // pred_check
      _
    $region26: #{residual_conv.3} parent=5 // pred_check_branch
      %145 = sbr.rel (%p142) target = $region28
    $region27: #{residual_conv.3} parent=5 // pred_region
      %s146 = ssub.s32 %s10, 1
      %s147 = smul.u32 32, %s15
      %p148 = scmp.lt.s32.totalorder %s147, 63
      %s149 = scalar_select %p148, %s147, 63
      %s150 = smul.addr %s149, 4
      %s151 = scalar_lea.vmem %s0, %s150
      %p152 = pneg %p36
      %p153 = pneg %p33
      %p154 = pneg %p57
      %p155 = pneg %p54
      %p156 = pneg %p83
      %p157 = pneg %p80
      %s158 = smul.u32 32, %s15
      %p159 = scmp.lt.s32.totalorder %s158, 63
      %s160 = scalar_select %p159, %s158, 63
      %s161 = smul.addr %s160, 8
      %s162 = scalar_lea.vmem %s2, %s161
      %p163 = pneg %p109
      %p164 = pneg %p106
      %p165 = scmp.lt.s32.totalorder %s15, 1
      %s166 = scalar_select %p165, %s15, 1
      %s167 = smul.addr %s166, 8
      %s168 = scalar_lea.vmem %s3, %s167
      %s169 = smul.u32 32, %s15
      %p170 = scmp.lt.s32.totalorder %s169, 63
      %s171 = scalar_select %p170, %s169, 63
      %s172 = smul.addr %s171, 4
      %s173 = scalar_lea.vmem %s0, %s172
      %s174 = smul.u32 32, %s15
      %s175 = smul.u32 32, %s15
      %p176 = scmp.lt.s32.totalorder %s175, 63
      %s177 = scalar_select %p176, %s175, 63
      %s178 = smul.addr %s177, 8
      %s179 = scalar_lea.vmem %s2, %s178
      %s180 = smul.u32 32, %s15
      %p181 = scmp.lt.s32.totalorder %s15, 1
      %s182 = scalar_select %p181, %s15, 1
      %s183 = smul.addr %s182, 8
      %s184 = scalar_lea.vmem %s3, %s183
      %v186 = vld [vmem:[%s173] sm:$0xf]
      %v187 = vld [vmem:[%s173 + $0x4] sm:$0xf]
      %v188 = vld [vmem:[%s173 + $0x8] sm:$0xf]
      %v189 = vld [vmem:[%s173 + $0xc] sm:$0xf]
      %v190 = vld [vmem:[%s173 + $0x10] sm:$0xf]
      %v191 = vld [vmem:[%s173 + $0x14] sm:$0xf]
      %v192 = vld [vmem:[%s173 + $0x18] sm:$0xf]
      %v193 = vld [vmem:[%s173 + $0x1c] sm:$0xf]
      %v194 = vld [vmem:[%s173 + $0x20] sm:$0xf]
      %v195 = vld [vmem:[%s173 + $0x24] sm:$0xf]
      %v196 = vld [vmem:[%s173 + $0x28] sm:$0xf]
      %v197 = vld [vmem:[%s173 + $0x2c] sm:$0xf]
      %v198 = vld [vmem:[%s173 + $0x30] sm:$0xf]
      %v199 = vld [vmem:[%s173 + $0x34] sm:$0xf]
      %v200 = vld [vmem:[%s173 + $0x38] sm:$0xf]
      %v201 = vld [vmem:[%s173 + $0x3c] sm:$0xf]
      %v202 = vld [vmem:[%s173 + $0x40] sm:$0xf]
      %v203 = vld [vmem:[%s173 + $0x44] sm:$0xf]
      %v204 = vld [vmem:[%s173 + $0x48] sm:$0xf]
      %v205 = vld [vmem:[%s173 + $0x4c] sm:$0xf]
      %v206 = vld [vmem:[%s173 + $0x50] sm:$0xf]
      %v207 = vld [vmem:[%s173 + $0x54] sm:$0xf]
      %v208 = vld [vmem:[%s173 + $0x58] sm:$0xf]
      %v209 = vld [vmem:[%s173 + $0x5c] sm:$0xf]
      %v210 = vld [vmem:[%s173 + $0x60] sm:$0xf]
      %v211 = vld [vmem:[%s173 + $0x64] sm:$0xf]
      %v212 = vld [vmem:[%s173 + $0x68] sm:$0xf]
      %v213 = vld [vmem:[%s173 + $0x6c] sm:$0xf]
      %v214 = vld [vmem:[%s173 + $0x70] sm:$0xf]
      %v215 = vld [vmem:[%s173 + $0x74] sm:$0xf]
      %v216 = vld [vmem:[%s173 + $0x78] sm:$0xf]
      %v217 = vld [vmem:[%s173 + $0x7c] sm:$0xf]
      %v218 = vld [vmem:[%s1] sm:$0xf]
      %v219 = vld [vmem:[%s1 + $0x4] sm:$0xf]
      %v220 = vld [vmem:[%s1 + $0x8] sm:$0xf]
      %v221 = vld [vmem:[%s1 + $0xc] sm:$0xf]
      %v222 = vld [vmem:[%s1 + $0x10] sm:$0x3]
      %v255 = vunpack.c.l.b16 %v186
      %v256 = vunpack.c.l.b16 %v187
      %v257 = vunpack.c.l.b16 %v188
      %v258 = vunpack.c.l.b16 %v189
      %v259 = vunpack.c.l.b16 %v190
      %v260 = vunpack.c.l.b16 %v191
      %v261 = vunpack.c.l.b16 %v192
      %v262 = vunpack.c.l.b16 %v193
      %v263 = vunpack.c.l.b16 %v194
      %v264 = vunpack.c.l.b16 %v195
      %v265 = vunpack.c.l.b16 %v196
      %v266 = vunpack.c.l.b16 %v197
      %v267 = vunpack.c.l.b16 %v198
      %v268 = vunpack.c.l.b16 %v199
      %v269 = vunpack.c.l.b16 %v200
      %v270 = vunpack.c.l.b16 %v201
      %v271 = vunpack.c.l.b16 %v202
      %v272 = vunpack.c.l.b16 %v203
      %v273 = vunpack.c.l.b16 %v204
      %v274 = vunpack.c.l.b16 %v205
      %v275 = vunpack.c.l.b16 %v206
      %v276 = vunpack.c.l.b16 %v207
      %v277 = vunpack.c.l.b16 %v208
      %v278 = vunpack.c.l.b16 %v209
      %v279 = vunpack.c.l.b16 %v210
      %v280 = vunpack.c.l.b16 %v211
      %v281 = vunpack.c.l.b16 %v212
      %v282 = vunpack.c.l.b16 %v213
      %v283 = vunpack.c.l.b16 %v214
      %v284 = vunpack.c.l.b16 %v215
      %v285 = vunpack.c.l.b16 %v216
      %v286 = vunpack.c.l.b16 %v217
      %v287 = vpack.c.b16 %v256, %v255
      %v288 = vpack.c.b16 %v258, %v257
      %v289 = vpack.c.b16 %v260, %v259
      %v290 = vpack.c.b16 %v262, %v261
      %v291 = vpack.c.b16 %v264, %v263
      %v292 = vpack.c.b16 %v266, %v265
      %v293 = vpack.c.b16 %v268, %v267
      %v294 = vpack.c.b16 %v270, %v269
      %v295 = vpack.c.b16 %v272, %v271
      %v296 = vpack.c.b16 %v274, %v273
      %v297 = vpack.c.b16 %v276, %v275
      %v298 = vpack.c.b16 %v278, %v277
      %v299 = vpack.c.b16 %v280, %v279
      %v300 = vpack.c.b16 %v282, %v281
      %v301 = vpack.c.b16 %v284, %v283
      %v302 = vpack.c.b16 %v286, %v285
      %v308 = vunpack.c.l.b16 %v218
      %v309 = vunpack.c.l.b16 %v219
      %v310 = vunpack.c.l.b16 %v220
      %v311 = vunpack.c.l.b16 %v221
      %v312 = vunpack.c.l.b16 %v222
      %v313 = vpack.c.b16 %v309, %v308
      %v314 = vpack.c.b16 %v311, %v310
      %v315 = vpack.c.b16 %v312, %v312
      %vm318 = vcmask 293888
      %v320 = vsel %vm318, %v287, 0
      %v323 = vsel %vm318, %v288, 0
      %v326 = vsel %vm318, %v289, 0
      %v329 = vsel %vm318, %v290, 0
      %v332 = vsel %vm318, %v291, 0
      %v335 = vsel %vm318, %v292, 0
      %v338 = vsel %vm318, %v293, 0
      %v341 = vsel %vm318, %v294, 0
      %v344 = vsel %vm318, %v295, 0
      %v347 = vsel %vm318, %v296, 0
      %v350 = vsel %vm318, %v297, 0
      %v353 = vsel %vm318, %v298, 0
      %v356 = vsel %vm318, %v299, 0
      %v359 = vsel %vm318, %v300, 0
      %v362 = vsel %vm318, %v301, 0
      %v365 = vsel %vm318, %v302, 0
      %vm367 = vcmask 1041408
      %v369 = vsel %vm367, %v315, 0
      %371 = vmatprep.subr.bf16.mxu0 0
      %372 = vmatpush1.bf16.msra.mxu0 %v313
      %373 = vmatprep.subr.bf16.mxu0 0
      %374 = vmatpush1.bf16.msra.mxu0 %v314
      %375 = vmatprep.subr.bf16.mxu0 0
      %376 = vmatpush1.bf16.msra.mxu0 %v369
      %377 = vmatprep.subr.bf16.mxu0 0
      %378 = vmatpush1.bf16.msra.mxu0 0
      %379 = vmatprep.subr.bf16.mxu0 0
      %380 = vmatpush1.bf16.msra.mxu0 0
      %381 = vmatprep.subr.bf16.mxu0 0
      %382 = vmatpush1.bf16.msra.mxu0 0
      %383 = vmatprep.subr.bf16.mxu0 0
      %384 = vmatpush1.bf16.msra.mxu0 0
      %385 = vmatprep.subr.bf16.mxu0 0
      %386 = vmatpush1.bf16.msra.mxu0 0
      %387 = vmatprep.subr.bf16.mxu0 0
      %388 = vmatpush1.bf16.msra.mxu0 0
      %389 = vmatprep.subr.bf16.mxu0 0
      %390 = vmatpush1.bf16.msra.mxu0 0
      %391 = vmatprep.subr.bf16.mxu0 0
      %392 = vmatpush1.bf16.msra.mxu0 0
      %393 = vmatprep.subr.bf16.mxu0 0
      %394 = vmatpush1.bf16.msra.mxu0 0
      %395 = vmatprep.subr.bf16.mxu0 0
      %396 = vmatpush1.bf16.msra.mxu0 0
      %397 = vmatprep.subr.bf16.mxu0 0
      %398 = vmatpush1.bf16.msra.mxu0 0
      %399 = vmatprep.subr.bf16.mxu0 0
      %400 = vmatpush1.bf16.msra.mxu0 0
      %401 = vmatprep.subr.bf16.mxu0 0
      %402 = vmatpush1.bf16.msra.mxu0 0
      %403 = vmatprep.mubr.bf16.mxu0 0
      %404 = vmatmul.mubr.bf16.gmra.mrb[0].mxu0 %v320
      %v405 = vpop.f32.mrb[0].mxu0
      %v406 = vadd.f32 0.0, %v405
      %v407 = vpop.f32.mrb[0].mxu0
      %v408 = vpop.f32.mrb[0].mxu0
      %v409 = vadd.f32 0.0, %v408
      %v410 = vpop.f32.mrb[0].mxu0
      %411 = vmatprep.mubr.bf16.mxu0 0
      %412 = vmatmul.mubr.bf16.gmra.mrb[0].mxu0 %v323
      %v413 = vpop.f32.mrb[0].mxu0
      %v414 = vadd.f32 0.0, %v413
      %v415 = vpop.f32.mrb[0].mxu0
      %v416 = vpop.f32.mrb[0].mxu0
      %v417 = vadd.f32 0.0, %v416
      %v418 = vpop.f32.mrb[0].mxu0
      %419 = vmatprep.mubr.bf16.mxu0 0
      %420 = vmatmul.mubr.bf16.gmra.mrb[0].mxu0 %v326
      %v421 = vpop.f32.mrb[0].mxu0
      %v422 = vadd.f32 0.0, %v421
      %v423 = vpop.f32.mrb[0].mxu0
      %v424 = vpop.f32.mrb[0].mxu0
      %v425 = vadd.f32 0.0, %v424
      %v426 = vpop.f32.mrb[0].mxu0
      %427 = vmatprep.mubr.bf16.mxu0 0
      %428 = vmatmul.mubr.bf16.gmra.mrb[0].mxu0 %v329
      %v429 = vpop.f32.mrb[0].mxu0
      %v430 = vadd.f32 0.0, %v429
      %v431 = vpop.f32.mrb[0].mxu0
      %v432 = vpop.f32.mrb[0].mxu0
      %v433 = vadd.f32 0.0, %v432
      %v434 = vpop.f32.mrb[0].mxu0
      %435 = vmatprep.mubr.bf16.mxu0 0
      %436 = vmatmul.mubr.bf16.gmra.mrb[0].mxu0 %v332
      %v437 = vpop.f32.mrb[0].mxu0
      %v438 = vadd.f32 0.0, %v437
      %v439 = vpop.f32.mrb[0].mxu0
      %v440 = vpop.f32.mrb[0].mxu0
      %v441 = vadd.f32 0.0, %v440
      %v442 = vpop.f32.mrb[0].mxu0
      %443 = vmatprep.mubr.bf16.mxu0 0
      %444 = vmatmul.mubr.bf16.gmra.mrb[0].mxu0 %v335
      %v445 = vpop.f32.mrb[0].mxu0
      %v446 = vadd.f32 0.0, %v445
      %v447 = vpop.f32.mrb[0].mxu0
      %v448 = vpop.f32.mrb[0].mxu0
      %v449 = vadd.f32 0.0, %v448
      %v450 = vpop.f32.mrb[0].mxu0
      %451 = vmatprep.mubr.bf16.mxu0 0
      %452 = vmatmul.mubr.bf16.gmra.mrb[0].mxu0 %v338
      %v453 = vpop.f32.mrb[0].mxu0
      %v454 = vadd.f32 0.0, %v453
      %v455 = vpop.f32.mrb[0].mxu0
      %v456 = vpop.f32.mrb[0].mxu0
      %v457 = vadd.f32 0.0, %v456
      %v458 = vpop.f32.mrb[0].mxu0
      %459 = vmatprep.mubr.bf16.mxu0 0
      %460 = vmatmul.mubr.bf16.gmra.mrb[0].mxu0 %v341
      %v461 = vpop.f32.mrb[0].mxu0
      %v462 = vadd.f32 0.0, %v461
      %v463 = vpop.f32.mrb[0].mxu0
      %v464 = vpop.f32.mrb[0].mxu0
      %v465 = vadd.f32 0.0, %v464
      %v466 = vpop.f32.mrb[0].mxu0
      %467 = vmatprep.mubr.bf16.mxu0 0
      %468 = vmatmul.mubr.bf16.gmra.mrb[0].mxu0 %v344
      %v469 = vpop.f32.mrb[0].mxu0
      %v470 = vadd.f32 0.0, %v469
      %v471 = vpop.f32.mrb[0].mxu0
      %v472 = vpop.f32.mrb[0].mxu0
      %v473 = vadd.f32 0.0, %v472
      %v474 = vpop.f32.mrb[0].mxu0
      %475 = vmatprep.mubr.bf16.mxu0 0
      %476 = vmatmul.mubr.bf16.gmra.mrb[0].mxu0 %v347
      %v477 = vpop.f32.mrb[0].mxu0
      %v478 = vadd.f32 0.0, %v477
      %v479 = vpop.f32.mrb[0].mxu0
      %v480 = vpop.f32.mrb[0].mxu0
      %v481 = vadd.f32 0.0, %v480
      %v482 = vpop.f32.mrb[0].mxu0
      %483 = vmatprep.mubr.bf16.mxu0 0
      %484 = vmatmul.mubr.bf16.gmra.mrb[0].mxu0 %v350
      %v485 = vpop.f32.mrb[0].mxu0
      %v486 = vadd.f32 0.0, %v485
      %v487 = vpop.f32.mrb[0].mxu0
      %v488 = vpop.f32.mrb[0].mxu0
      %v489 = vadd.f32 0.0, %v488
      %v490 = vpop.f32.mrb[0].mxu0
      %491 = vmatprep.mubr.bf16.mxu0 0
      %492 = vmatmul.mubr.bf16.gmra.mrb[0].mxu0 %v353
      %v493 = vpop.f32.mrb[0].mxu0
      %v494 = vadd.f32 0.0, %v493
      %v495 = vpop.f32.mrb[0].mxu0
      %v496 = vpop.f32.mrb[0].mxu0
      %v497 = vadd.f32 0.0, %v496
      %v498 = vpop.f32.mrb[0].mxu0
      %499 = vmatprep.mubr.bf16.mxu0 0
      %500 = vmatmul.mubr.bf16.gmra.mrb[0].mxu0 %v356
      %v501 = vpop.f32.mrb[0].mxu0
      %v502 = vadd.f32 0.0, %v501
      %v503 = vpop.f32.mrb[0].mxu0
      %v504 = vpop.f32.mrb[0].mxu0
      %v505 = vadd.f32 0.0, %v504
      %v506 = vpop.f32.mrb[0].mxu0
      %507 = vmatprep.mubr.bf16.mxu0 0
      %508 = vmatmul.mubr.bf16.gmra.mrb[0].mxu0 %v359
      %v509 = vpop.f32.mrb[0].mxu0
      %v510 = vadd.f32 0.0, %v509
      %v511 = vpop.f32.mrb[0].mxu0
      %v512 = vpop.f32.mrb[0].mxu0
      %v513 = vadd.f32 0.0, %v512
      %v514 = vpop.f32.mrb[0].mxu0
      %515 = vmatprep.mubr.bf16.mxu0 0
      %516 = vmatmul.mubr.bf16.gmra.mrb[0].mxu0 %v362
      %v517 = vpop.f32.mrb[0].mxu0
      %v518 = vadd.f32 0.0, %v517
      %v519 = vpop.f32.mrb[0].mxu0
      %v520 = vpop.f32.mrb[0].mxu0
      %v521 = vadd.f32 0.0, %v520
      %v522 = vpop.f32.mrb[0].mxu0
      %523 = vmatprep.mubr.bf16.mxu0 0
      %524 = vmatmul.mubr.bf16.gmra.mrb[0].mxu0 %v365
      %v525 = vpop.f32.mrb[0].mxu0
      %v526 = vadd.f32 0.0, %v525
      %v527 = vpop.f32.mrb[0].mxu0
      %v528 = vpop.f32.mrb[0].mxu0
      %v529 = vadd.f32 0.0, %v528
      %v530 = vpop.f32.mrb[0].mxu0
      %531 = vdwg.mxu0
      %532 = vst [vmem:[%s179] sm:$0xff] %v406
      %533 = vst [vmem:[%s179 + $0x8] sm:$0xff] %v409
      %534 = vst [vmem:[%s179 + $0x10] sm:$0xff] %v414
      %535 = vst [vmem:[%s179 + $0x18] sm:$0xff] %v417
      %536 = vst [vmem:[%s179 + $0x20] sm:$0xff] %v422
      %537 = vst [vmem:[%s179 + $0x28] sm:$0xff] %v425
      %538 = vst [vmem:[%s179 + $0x30] sm:$0xff] %v430
      %539 = vst [vmem:[%s179 + $0x38] sm:$0xff] %v433
      %540 = vst [vmem:[%s179 + $0x40] sm:$0xff] %v438
      %541 = vst [vmem:[%s179 + $0x48] sm:$0xff] %v441
      %542 = vst [vmem:[%s179 + $0x50] sm:$0xff] %v446
      %543 = vst [vmem:[%s179 + $0x58] sm:$0xff] %v449
      %544 = vst [vmem:[%s179 + $0x60] sm:$0xff] %v454
      %545 = vst [vmem:[%s179 + $0x68] sm:$0xff] %v457
      %546 = vst [vmem:[%s179 + $0x70] sm:$0xff] %v462
      %547 = vst [vmem:[%s179 + $0x78] sm:$0xff] %v465
      %548 = vst [vmem:[%s179 + $0x80] sm:$0xff] %v470
      %549 = vst [vmem:[%s179 + $0x88] sm:$0xff] %v473
      %550 = vst [vmem:[%s179 + $0x90] sm:$0xff] %v478
      %551 = vst [vmem:[%s179 + $0x98] sm:$0xff] %v481
      %552 = vst [vmem:[%s179 + $0xa0] sm:$0xff] %v486
      %553 = vst [vmem:[%s179 + $0xa8] sm:$0xff] %v489
      %554 = vst [vmem:[%s179 + $0xb0] sm:$0xff] %v494
      %555 = vst [vmem:[%s179 + $0xb8] sm:$0xff] %v497
      %556 = vst [vmem:[%s179 + $0xc0] sm:$0xff] %v502
      %557 = vst [vmem:[%s179 + $0xc8] sm:$0xff] %v505
      %558 = vst [vmem:[%s179 + $0xd0] sm:$0xff] %v510
      %559 = vst [vmem:[%s179 + $0xd8] sm:$0xff] %v513
      %560 = vst [vmem:[%s179 + $0xe0] sm:$0xff] %v518
      %561 = vst [vmem:[%s179 + $0xe8] sm:$0xff] %v521
      %562 = vst [vmem:[%s179 + $0xf0] sm:$0xff] %v526
      %563 = vst [vmem:[%s179 + $0xf8] sm:$0xff] %v529
      %v564 = vadd.f32 %v406, %v409
      %v565 = vadd.f32 %v564, %v414
      %v566 = vadd.f32 %v565, %v417
      %v567 = vadd.f32 %v566, %v422
      %v568 = vadd.f32 %v567, %v425
      %v569 = vadd.f32 %v568, %v430
      %v570 = vadd.f32 %v569, %v433
      %v571 = vadd.f32 %v570, %v438
      %v572 = vadd.f32 %v571, %v441
      %v573 = vadd.f32 %v572, %v446
      %v574 = vadd.f32 %v573, %v449
      %v575 = vadd.f32 %v574, %v454
      %v576 = vadd.f32 %v575, %v457
      %v577 = vadd.f32 %v576, %v462
      %v578 = vadd.f32 %v577, %v465
      %v579 = vadd.f32 %v578, %v470
      %v580 = vadd.f32 %v579, %v473
      %v581 = vadd.f32 %v580, %v478
      %v582 = vadd.f32 %v581, %v481
      %v583 = vadd.f32 %v582, %v486
      %v584 = vadd.f32 %v583, %v489
      %v585 = vadd.f32 %v584, %v494
      %v586 = vadd.f32 %v585, %v497
      %v587 = vadd.f32 %v586, %v502
      %v588 = vadd.f32 %v587, %v505
      %v589 = vadd.f32 %v588, %v510
      %v590 = vadd.f32 %v589, %v513
      %v591 = vadd.f32 %v590, %v518
      %v592 = vadd.f32 %v591, %v521
      %v593 = vadd.f32 %v592, %v526
      %v594 = vadd.f32 %v593, %v529
      %v595 = vrot.slane %v594, 4
      %v596 = vadd.f32 %v594, %v595
      %v597 = vrot.slane %v596, 2
      %v598 = vadd.f32 %v596, %v597
      %v599 = vrot.slane %v598, 1
      %v600 = vadd.f32 %v598, %v599
      %v601 = vmul.f32 %v406, %v406
      %v602 = vmul.f32 %v409, %v409
      %v603 = vmul.f32 %v414, %v414
      %v604 = vmul.f32 %v417, %v417
      %v605 = vmul.f32 %v422, %v422
      %v606 = vmul.f32 %v425, %v425
      %v607 = vmul.f32 %v430, %v430
      %v608 = vmul.f32 %v433, %v433
      %v609 = vmul.f32 %v438, %v438
      %v610 = vmul.f32 %v441, %v441
      %v611 = vmul.f32 %v446, %v446
      %v612 = vmul.f32 %v449, %v449
      %v613 = vmul.f32 %v454, %v454
      %v614 = vmul.f32 %v457, %v457
      %v615 = vmul.f32 %v462, %v462
      %v616 = vmul.f32 %v465, %v465
      %v617 = vmul.f32 %v470, %v470
      %v618 = vmul.f32 %v473, %v473
      %v619 = vmul.f32 %v478, %v478
      %v620 = vmul.f32 %v481, %v481
      %v621 = vmul.f32 %v486, %v486
      %v622 = vmul.f32 %v489, %v489
      %v623 = vmul.f32 %v494, %v494
      %v624 = vmul.f32 %v497, %v497
      %v625 = vmul.f32 %v502, %v502
      %v626 = vmul.f32 %v505, %v505
      %v627 = vmul.f32 %v510, %v510
      %v628 = vmul.f32 %v513, %v513
      %v629 = vmul.f32 %v518, %v518
      %v630 = vmul.f32 %v521, %v521
      %v631 = vmul.f32 %v526, %v526
      %v632 = vmul.f32 %v529, %v529
      %v633 = vadd.f32 %v601, %v602
      %v634 = vadd.f32 %v633, %v603
      %v635 = vadd.f32 %v634, %v604
      %v636 = vadd.f32 %v635, %v605
      %v637 = vadd.f32 %v636, %v606
      %v638 = vadd.f32 %v637, %v607
      %v639 = vadd.f32 %v638, %v608
      %v640 = vadd.f32 %v639, %v609
      %v641 = vadd.f32 %v640, %v610
      %v642 = vadd.f32 %v641, %v611
      %v643 = vadd.f32 %v642, %v612
      %v644 = vadd.f32 %v643, %v613
      %v645 = vadd.f32 %v644, %v614
      %v646 = vadd.f32 %v645, %v615
      %v647 = vadd.f32 %v646, %v616
      %v648 = vadd.f32 %v647, %v617
      %v649 = vadd.f32 %v648, %v618
      %v650 = vadd.f32 %v649, %v619
      %v651 = vadd.f32 %v650, %v620
      %v652 = vadd.f32 %v651, %v621
      %v653 = vadd.f32 %v652, %v622
      %v654 = vadd.f32 %v653, %v623
      %v655 = vadd.f32 %v654, %v624
      %v656 = vadd.f32 %v655, %v625
      %v657 = vadd.f32 %v656, %v626
      %v658 = vadd.f32 %v657, %v627
      %v659 = vadd.f32 %v658, %v628
      %v660 = vadd.f32 %v659, %v629
      %v661 = vadd.f32 %v660, %v630
      %v662 = vadd.f32 %v661, %v631
      %v663 = vadd.f32 %v662, %v632
      %v664 = vrot.slane %v663, 4
      %v665 = vadd.f32 %v663, %v664
      %v666 = vrot.slane %v665, 2
      %v667 = vadd.f32 %v665, %v666
      %v668 = vrot.slane %v667, 1
      %v669 = vadd.f32 %v667, %v668
      %vm670 = vcmask 1040384
      %v671 = vsel %vm670, %v600, %v669
      %v672 = vsel %vm367, %v671, 0.0
      %673 = vst [vmem:[%s184] sm:$0xff] %v672
      %s674 = smul.u32 32, %s15
      %p675 = scmp.lt.s32.totalorder %s674, 63
      %s676 = scalar_select %p675, %s674, 63
      %s677 = smul.addr %s676, 8
      %s678 = scalar_lea.vmem %s2, %s677
      %p679 = scmp.lt.s32.totalorder %s15, 1
      %s680 = scalar_select %p679, %s15, 1
      %s681 = smul.addr %s680, 8
      %s682 = scalar_lea.vmem %s3, %s681
      // Predicated region
      $region29: #{residual_conv.3} parent=27 // pred_check
        %p683 = pneg %p80
      $region30: #{residual_conv.3} parent=27 // pred_check_branch
        %685 = sbr.rel (%p683) target = $region32
      $region31: #{residual_conv.3} parent=27 // pred_region
        %s686 = smul.u32 32, %s15
      $region32: #{residual_conv.3} parent=27 // pred_fallthru
        _
      // Predicated region
      $region33: #{residual_conv.3} parent=27 // pred_check
        %p687 = pneg %p106
      $region34: #{residual_conv.3} parent=27 // pred_check_branch
        %689 = sbr.rel (%p687) target = $region36
      $region35: #{residual_conv.3} parent=27 // pred_region
        _
      $region36: #{residual_conv.3} parent=27 // pred_fallthru
        _
    $region28: #{residual_conv.3} parent=5 // pred_fallthru
      _
    %p690 = scmp.le.s32.totalorder 2, %s10
    // Predicated region
    $region37: #{residual_conv.3} parent=5 // pred_check
      %p691 = pneg %p690
    $region38: #{residual_conv.3} parent=5 // pred_check_branch
      %693 = sbr.rel (%p691) target = $region40
    $region39: #{residual_conv.3} parent=5 // pred_region
      %s694 = ssub.s32 %s10, 2
      // Predicated region
      $region41: #{residual_conv.3} parent=39 // pred_check
        %p695 = pneg %p86
      $region42: #{residual_conv.3} parent=39 // pred_check_branch
        %697 = sbr.rel (%p695) target = $region44
      $region43: #{residual_conv.3} parent=39 // pred_region
        %s698 = smul.u32 32, %s16
        %p699 = scmp.lt.s32.totalorder %s698, 63
        %s700 = scalar_select %p699, %s698, 63
        %s701 = smul.addr %s700, 8
        %s702 = scalar_lea.vmem %s2, %s701
      $region44: #{residual_conv.3} parent=39 // pred_fallthru
        _
      // Predicated region
      $region45: #{residual_conv.3} parent=39 // pred_check
        %p703 = pneg %p112
      $region46: #{residual_conv.3} parent=39 // pred_check_branch
        %705 = sbr.rel (%p703) target = $region48
      $region47: #{residual_conv.3} parent=39 // pred_region
        %p706 = scmp.lt.s32.totalorder %s16, 1
        %s707 = scalar_select %p706, %s16, 1
        %s708 = smul.addr %s707, 8
        %s709 = scalar_lea.vmem %s3, %s708
      $region48: #{residual_conv.3} parent=39 // pred_fallthru
        _
    $region40: #{residual_conv.3} parent=5 // pred_fallthru
      _
  $region6: #{residual_conv.3} parent=0 // loop_footer
    %s14 = sadd.s32 1, %s10
  $region7: #{residual_conv.3} parent=0 // loop_footer_branch
    %9 = sbr.rel target = $region3
  $region8: #{residual_conv.3} parent=0 // loop_exit
    _

// kernel: residual_conv.5
$region0: #{residual_conv.5}
  #allocation0 [shape = 'u32[]', space=smem, size = 0x4, offset = 0x4, fixed_abs, tag = 'smem constant byte address 0x4 - core index']
  #allocation1 [shape = 'u32[144,128]{1,0:T(1,128)}', space=vmem, size = 0x12000, scoped, tag = 'internal scratch']
  %s0 = inlined_call_operand.vmem [shape: f32[512,128], index: 0, kind: input, shape index: {}]
  %s1 = inlined_call_operand.vmem [shape: f32[512,128], index: 1, kind: input, shape index: {}]
  %s2 = inlined_call_operand.vmem [shape: f32[1,128], index: 2, kind: input, shape index: {}]
  %s3 = inlined_call_operand.vmem [shape: f32[1,128], index: 3, kind: input, shape index: {}]
  %s4 = inlined_call_operand.vmem [shape: f32[1,128], index: 4, kind: input, shape index: {}]
  %s5 = inlined_call_operand.vmem [shape: f32[1,128], index: 5, kind: input, shape index: {}]
  %s6 = inlined_call_operand.hbm [shape: f32[512,128], index: 6, kind: output, shape index: {}]
  %s7 = sld [smem:[#allocation0]]
  $region57: #{residual_conv.5} parent=0
    _
  %s9 = ssub.s32 1, %s7
  %s10 = scalar_select 0, %s9, %s7
  $region1: #{residual_conv.5} parent=0
    #allocation2 [shape = 'u8[262144]{0}', space=vmem, size = 0x40000, scoped, tag = 'output window, operand 0']
    #allocation3 [shape = 's32[2]{0}', space=sflag, size = 0x8, scoped, tag = 'scoped memory for residual_conv.5']
    %11 = vsyncpa [#allocation3], 0
    %s12 = scalar_lea.sflag [#allocation3], 1
    %13 = vsyncpa %s12, 0
    loop: start=0, step=1, limit=4
    $region2: #{residual_conv.5} parent=1 // loop_pre_header
      _
    $region3: #{residual_conv.5} parent=1 // loop_header
      %s15 = sphi 0, %s19
      %p16 = scmp.ge.s32.totalorder %s15, 4
      %s25 = sphi 0, %s27
      %s28 = sphi 0, %s25
      %s29 = sphi 0, %s28
      %s45 = sphi 0, %s29
      %s51 = sphi 0, %s53
      %s54 = sphi 0, %s51
      %s55 = sphi 0, %s54
      %s71 = sphi 0, %s55
      %s75 = sphi 0, %s75
      %s77 = sphi 0, %s75
      %s78 = sphi 0, %s77
      %s92 = sphi 0, %s78
      %s96 = sphi 0, %s96
      %s98 = sphi 0, %s96
      %s99 = sphi 0, %s98
      %s113 = sphi 0, %s99
      %s117 = sphi 0, %s117
      %s119 = sphi 0, %s117
      %s120 = sphi 0, %s119
      %s134 = sphi 0, %s120
      %s138 = sphi 0, %s138
      %s140 = sphi 0, %s138
      %s141 = sphi 0, %s140
      %s155 = sphi 0, %s141
      %s161 = sphi 0, %s163
      %s164 = sphi 0, %s161
      %s165 = sphi 0, %s164
      %s181 = sphi 0, %s165
    $region4: #{residual_conv.5} parent=1 // loop_header_branch
      %18 = sbr.rel (%p16) target = $region8
    $region5: #{residual_conv.5} parent=1 // loop_body
      %s20 = ssub.s32 %s15, 1
      %s21 = ssub.s32 %s15, 2
      %s22 = sadd.s32 %s15, 1
      %s23 = ssub.s32 %s15, %s22
      %p24 = scmp.eq.s32.totalorder %s23, 0
      %s26 = sadd.s32 %s25, 1
      %s27 = scalar_select %p24, %s25, %s26
      %p30 = pneg %p24
      %p31 = scmp.eq.s32.totalorder %s15, 1
      %p32 = por %p30, %p31
      %p33 = scmp.ne.s32.totalorder %s25, %s28
      %p34 = scmp.eq.s32.totalorder %s15, 0
      %p35 = por %p33, %p34
      %p36 = scmp.ne.s32.totalorder %s25, %s28
      %p37 = scmp.eq.s32.totalorder %s20, 1
      %p38 = por %p36, %p37
      %p39 = scmp.ne.s32.totalorder %s28, %s29
      %p40 = scmp.eq.s32.totalorder %s20, 0
      %p41 = por %p39, %p40
      %p42 = scmp.ne.s32.totalorder %s28, %s29
      %p43 = scmp.eq.s32.totalorder %s21, 1
      %p44 = por %p42, %p43
      %p46 = scmp.ne.s32.totalorder %s29, %s45
      %p47 = scmp.eq.s32.totalorder %s21, 0
      %p48 = por %p46, %p47
      %s49 = ssub.s32 %s15, %s22
      %p50 = scmp.eq.s32.totalorder %s49, 0
      %s52 = sadd.s32 %s51, 1
      %s53 = scalar_select %p50, %s51, %s52
      %p56 = pneg %p50
      %p57 = scmp.eq.s32.totalorder %s15, 1
      %p58 = por %p56, %p57
      %p59 = scmp.ne.s32.totalorder %s51, %s54
      %p60 = scmp.eq.s32.totalorder %s15, 0
      %p61 = por %p59, %p60
      %p62 = scmp.ne.s32.totalorder %s51, %s54
      %p63 = scmp.eq.s32.totalorder %s20, 1
      %p64 = por %p62, %p63
      %p65 = scmp.ne.s32.totalorder %s54, %s55
      %p66 = scmp.eq.s32.totalorder %s20, 0
      %p67 = por %p65, %p66
      %p68 = scmp.ne.s32.totalorder %s54, %s55
      %p69 = scmp.eq.s32.totalorder %s21, 1
      %p70 = por %p68, %p69
      %p72 = scmp.ne.s32.totalorder %s55, %s71
      %p73 = scmp.eq.s32.totalorder %s21, 0
      %p74 = por %p72, %p73
      %s76 = sadd.s32 %s75, 1
      %p79 = scmp.eq.s32.totalorder %s15, 1
      %p80 = scmp.ne.s32.totalorder %s75, %s77
      %p81 = scmp.eq.s32.totalorder %s15, 0
      %p82 = por %p80, %p81
      %p83 = scmp.ne.s32.totalorder %s75, %s77
      %p84 = scmp.eq.s32.totalorder %s20, 1
      %p85 = por %p83, %p84
      %p86 = scmp.ne.s32.totalorder %s77, %s78
      %p87 = scmp.eq.s32.totalorder %s20, 0
      %p88 = por %p86, %p87
      %p89 = scmp.ne.s32.totalorder %s77, %s78
      %p90 = scmp.eq.s32.totalorder %s21, 1
      %p91 = por %p89, %p90
      %p93 = scmp.ne.s32.totalorder %s78, %s92
      %p94 = scmp.eq.s32.totalorder %s21, 0
      %p95 = por %p93, %p94
      %s97 = sadd.s32 %s96, 1
      %p100 = scmp.eq.s32.totalorder %s15, 1
      %p101 = scmp.ne.s32.totalorder %s96, %s98
      %p102 = scmp.eq.s32.totalorder %s15, 0
      %p103 = por %p101, %p102
      %p104 = scmp.ne.s32.totalorder %s96, %s98
      %p105 = scmp.eq.s32.totalorder %s20, 1
      %p106 = por %p104, %p105
      %p107 = scmp.ne.s32.totalorder %s98, %s99
      %p108 = scmp.eq.s32.totalorder %s20, 0
      %p109 = por %p107, %p108
      %p110 = scmp.ne.s32.totalorder %s98, %s99
      %p111 = scmp.eq.s32.totalorder %s21, 1
      %p112 = por %p110, %p111
      %p114 = scmp.ne.s32.totalorder %s99, %s113
      %p115 = scmp.eq.s32.totalorder %s21, 0
      %p116 = por %p114, %p115
      %s118 = sadd.s32 %s117, 1
      %p121 = scmp.eq.s32.totalorder %s15, 1
      %p122 = scmp.ne.s32.totalorder %s117, %s119
      %p123 = scmp.eq.s32.totalorder %s15, 0
      %p124 = por %p122, %p123
      %p125 = scmp.ne.s32.totalorder %s117, %s119
      %p126 = scmp.eq.s32.totalorder %s20, 1
      %p127 = por %p125, %p126
      %p128 = scmp.ne.s32.totalorder %s119, %s120
      %p129 = scmp.eq.s32.totalorder %s20, 0
      %p130 = por %p128, %p129
      %p131 = scmp.ne.s32.totalorder %s119, %s120
      %p132 = scmp.eq.s32.totalorder %s21, 1
      %p133 = por %p131, %p132
      %p135 = scmp.ne.s32.totalorder %s120, %s134
      %p136 = scmp.eq.s32.totalorder %s21, 0
      %p137 = por %p135, %p136
      %s139 = sadd.s32 %s138, 1
      %p142 = scmp.eq.s32.totalorder %s15, 1
      %p143 = scmp.ne.s32.totalorder %s138, %s140
      %p144 = scmp.eq.s32.totalorder %s15, 0
      %p145 = por %p143, %p144
      %p146 = scmp.ne.s32.totalorder %s138, %s140
      %p147 = scmp.eq.s32.totalorder %s20, 1
      %p148 = por %p146, %p147
      %p149 = scmp.ne.s32.totalorder %s140, %s141
      %p150 = scmp.eq.s32.totalorder %s20, 0
      %p151 = por %p149, %p150
      %p152 = scmp.ne.s32.totalorder %s140, %s141
      %p153 = scmp.eq.s32.totalorder %s21, 1
      %p154 = por %p152, %p153
      %p156 = scmp.ne.s32.totalorder %s141, %s155
      %p157 = scmp.eq.s32.totalorder %s21, 0
      %p158 = por %p156, %p157
      %s159 = ssub.s32 %s15, %s22
      %p160 = scmp.eq.s32.totalorder %s159, 0
      %s162 = sadd.s32 %s161, 1
      %s163 = scalar_select %p160, %s161, %s162
      %p166 = pneg %p160
      %p167 = scmp.eq.s32.totalorder %s15, 1
      %p168 = por %p166, %p167
      %p169 = scmp.ne.s32.totalorder %s161, %s164
      %p170 = scmp.eq.s32.totalorder %s15, 0
      %p171 = por %p169, %p170
      %p172 = scmp.ne.s32.totalorder %s161, %s164
      %p173 = scmp.eq.s32.totalorder %s20, 1
      %p174 = por %p172, %p173
      %p175 = scmp.ne.s32.totalorder %s164, %s165
      %p176 = scmp.eq.s32.totalorder %s20, 0
      %p177 = por %p175, %p176
      %p178 = scmp.ne.s32.totalorder %s164, %s165
      %p179 = scmp.eq.s32.totalorder %s21, 1
      %p180 = por %p178, %p179
      %p182 = scmp.ne.s32.totalorder %s165, %s181
      %p183 = scmp.eq.s32.totalorder %s21, 0
      %p184 = por %p182, %p183
      %p185 = scmp.le.s32.totalorder 1, %s15
      %p186 = scmp.lt.s32.totalorder %s15, 3
      %p187 = pnand %p185, %p186
      %p188 = pneg %p187
      // Predicated region
      $region9: #{residual_conv.5} parent=5 // pred_check
        _
      $region10: #{residual_conv.5} parent=5 // pred_check_branch
        %190 = sbr.rel (%p187) target = $region12
      $region11: #{residual_conv.5} parent=5 // pred_region
        %s191 = ssub.s32 %s15, 1
        // Predicated region
        $region13: #{residual_conv.5} parent=11 // pred_check
          %p192 = pneg %p88
        $region14: #{residual_conv.5} parent=11 // pred_check_branch
          %194 = sbr.rel (%p192) target = $region16
        $region15: #{residual_conv.5} parent=11 // pred_region
          _
        $region16: #{residual_conv.5} parent=11 // pred_fallthru
          _
        // Predicated region
        $region17: #{residual_conv.5} parent=11 // pred_check
          %p195 = pneg %p109
        $region18: #{residual_conv.5} parent=11 // pred_check_branch
          %197 = sbr.rel (%p195) target = $region20
        $region19: #{residual_conv.5} parent=11 // pred_region
          _
        $region20: #{residual_conv.5} parent=11 // pred_fallthru
          _
        // Predicated region
        $region21: #{residual_conv.5} parent=11 // pred_check
          %p198 = pneg %p130
        $region22: #{residual_conv.5} parent=11 // pred_check_branch
          %200 = sbr.rel (%p198) target = $region24
        $region23: #{residual_conv.5} parent=11 // pred_region
          _
        $region24: #{residual_conv.5} parent=11 // pred_fallthru
          _
        // Predicated region
        $region25: #{residual_conv.5} parent=11 // pred_check
          %p201 = pneg %p151
        $region26: #{residual_conv.5} parent=11 // pred_check_branch
          %203 = sbr.rel (%p201) target = $region28
        $region27: #{residual_conv.5} parent=11 // pred_region
          _
        $region28: #{residual_conv.5} parent=11 // pred_fallthru
          _
      $region12: #{residual_conv.5} parent=5 // pred_fallthru
        _
      %p204 = scmp.lt.s32.totalorder %s15, 2
      // Predicated region
      $region29: #{residual_conv.5} parent=5 // pred_check
        %p205 = pneg %p204
      $region30: #{residual_conv.5} parent=5 // pred_check_branch
        %207 = sbr.rel (%p205) target = $region32
      $region31: #{residual_conv.5} parent=5 // pred_region
        // Predicated region
        $region33: #{residual_conv.5} parent=31 // pred_check
          %p208 = pneg %p35
        $region34: #{residual_conv.5} parent=31 // pred_check_branch
          %210 = sbr.rel (%p208) target = $region36
        $region35: #{residual_conv.5} parent=31 // pred_region
          %s211 = smul.u32 32, %s15
          %p212 = scmp.lt.s32.totalorder %s211, 63
          %s213 = scalar_select %p212, %s211, 63
          %s214 = smul.addr %s213, 8
          %s215 = scalar_lea.vmem %s0, %s214
          %s216 = smul.u32 32, %s15
        $region36: #{residual_conv.5} parent=31 // pred_fallthru
          _
        // Predicated region
        $region37: #{residual_conv.5} parent=31 // pred_check
          %p217 = pneg %p61
        $region38: #{residual_conv.5} parent=31 // pred_check_branch
          %219 = sbr.rel (%p217) target = $region40
        $region39: #{residual_conv.5} parent=31 // pred_region
          %s220 = smul.u32 32, %s15
          %p221 = scmp.lt.s32.totalorder %s220, 63
          %s222 = scalar_select %p221, %s220, 63
          %s223 = smul.addr %s222, 8
          %s224 = scalar_lea.vmem %s1, %s223
          %s225 = smul.u32 32, %s15
        $region40: #{residual_conv.5} parent=31 // pred_fallthru
          _
      $region32: #{residual_conv.5} parent=5 // pred_fallthru
        _
      %p226 = scmp.le.s32.totalorder 1, %s15
      %p227 = scmp.lt.s32.totalorder %s15, 3
      %p228 = pnand %p226, %p227
      %p229 = pneg %p228
      // Predicated region
      $region41: #{residual_conv.5} parent=5 // pred_check
        _
      $region42: #{residual_conv.5} parent=5 // pred_check_branch
        %231 = sbr.rel (%p228) target = $region44
      $region43: #{residual_conv.5} parent=5 // pred_region
        %s232 = ssub.s32 %s15, 1
        %s233 = smul.u32 32, %s20
        %p234 = scmp.lt.s32.totalorder %s233, 63
        %s235 = scalar_select %p234, %s233, 63
        %s236 = smul.addr %s235, 8
        %s237 = scalar_lea.vmem %s0, %s236
        %p238 = pneg %p41
        %p239 = pneg %p38
        %s240 = smul.u32 32, %s20
        %p241 = scmp.lt.s32.totalorder %s240, 63
        %s242 = scalar_select %p241, %s240, 63
        %s243 = smul.addr %s242, 8
        %s244 = scalar_lea.vmem %s1, %s243
        %p245 = pneg %p67
        %p246 = pneg %p64
        %p247 = pneg %p88
        %p248 = pneg %p85
        %p249 = pneg %p109
        %p250 = pneg %p106
        %p251 = pneg %p130
        %p252 = pneg %p127
        %p253 = pneg %p151
        %p254 = pneg %p148
        %p255 = pneg %p177
        %p256 = pneg %p174
        %s257 = sand.u32 %s164, 1
        %s258 = scalar_lea.sflag [#allocation3], %s257
        %s259 = sand.u32 %s164, 1
        %s260 = smul.addr %s259, 256
        %s261 = scalar_lea.vmem [#allocation2], %s260
        %s262 = smul.u32 32, %s20
        %p263 = scmp.lt.s32.totalorder %s262, 63
        %s264 = scalar_select %p263, %s262, 63
        %s265 = smul.addr %s264, 8
        %s266 = scalar_lea.vmem %s0, %s265
        %s267 = smul.u32 32, %s20
        %s268 = smul.u32 32, %s20
        %p269 = scmp.lt.s32.totalorder %s268, 63
        %s270 = scalar_select %p269, %s268, 63
        %s271 = smul.addr %s270, 8
        %s272 = scalar_lea.vmem %s1, %s271
        %s273 = smul.u32 32, %s20
        %s274 = smul.u32 32, %s20
        %v275 = vld [vmem:[%s266] sm:$0xff]
        %v276 = vld [vmem:[%s266 + $0x8] sm:$0xff]
        %v277 = vld [vmem:[%s266 + $0x10] sm:$0xff]
        %v278 = vld [vmem:[%s266 + $0x18] sm:$0xff]
        %v279 = vld [vmem:[%s266 + $0x20] sm:$0xff]
        %v280 = vld [vmem:[%s266 + $0x28] sm:$0xff]
        %v281 = vld [vmem:[%s266 + $0x30] sm:$0xff]
        %v282 = vld [vmem:[%s266 + $0x38] sm:$0xff]
        %v283 = vld [vmem:[%s266 + $0x40] sm:$0xff]
        %v284 = vld [vmem:[%s266 + $0x48] sm:$0xff]
        %v285 = vld [vmem:[%s266 + $0x50] sm:$0xff]
        %v286 = vld [vmem:[%s266 + $0x58] sm:$0xff]
        %v287 = vld [vmem:[%s266 + $0x60] sm:$0xff]
        %v288 = vld [vmem:[%s266 + $0x68] sm:$0xff]
        %v289 = vld [vmem:[%s266 + $0x70] sm:$0xff]
        %v290 = vld [vmem:[%s266 + $0x78] sm:$0xff]
        %v291 = vld [vmem:[%s266 + $0x80] sm:$0xff]
        %v292 = vld [vmem:[%s266 + $0x88] sm:$0xff]
        %v293 = vld [vmem:[%s266 + $0x90] sm:$0xff]
        %v294 = vld [vmem:[%s266 + $0x98] sm:$0xff]
        %v295 = vld [vmem:[%s266 + $0xa0] sm:$0xff]
        %v296 = vld [vmem:[%s266 + $0xa8] sm:$0xff]
        %v297 = vld [vmem:[%s266 + $0xb0] sm:$0xff]
        %v298 = vld [vmem:[%s266 + $0xb8] sm:$0xff]
        %v299 = vld [vmem:[%s266 + $0xc0] sm:$0xff]
        %v300 = vld [vmem:[%s266 + $0xc8] sm:$0xff]
        %v301 = vld [vmem:[%s266 + $0xd0] sm:$0xff]
        %v302 = vld [vmem:[%s266 + $0xd8] sm:$0xff]
        %v303 = vld [vmem:[%s266 + $0xe0] sm:$0xff]
        %v304 = vld [vmem:[%s266 + $0xe8] sm:$0xff]
        %v305 = vld [vmem:[%s266 + $0xf0] sm:$0xff]
        %v306 = vld [vmem:[%s266 + $0xf8] sm:$0xff]
        %v307 = vld [vmem:[%s2] sm:$0x1]
        %v309 = vlaneseq
        %v310 = vshrl.u32 %v309, 7
        %v311 = vsub.s32 0, %v310
        %v312 = vrot.slane %v307, %v311
        %v314 = vmul.f32 %v275, %v312
        %v315 = vmul.f32 %v276, %v312
        %v316 = vmul.f32 %v277, %v312
        %v317 = vmul.f32 %v278, %v312
        %v318 = vmul.f32 %v279, %v312
        %v319 = vmul.f32 %v280, %v312
        %v320 = vmul.f32 %v281, %v312
        %v321 = vmul.f32 %v282, %v312
        %v322 = vmul.f32 %v283, %v312
        %v323 = vmul.f32 %v284, %v312
        %v324 = vmul.f32 %v285, %v312
        %v325 = vmul.f32 %v286, %v312
        %v326 = vmul.f32 %v287, %v312
        %v327 = vmul.f32 %v288, %v312
        %v328 = vmul.f32 %v289, %v312
        %v329 = vmul.f32 %v290, %v312
        %v330 = vmul.f32 %v291, %v312
        %v331 = vmul.f32 %v292, %v312
        %v332 = vmul.f32 %v293, %v312
        %v333 = vmul.f32 %v294, %v312
        %v334 = vmul.f32 %v295, %v312
        %v335 = vmul.f32 %v296, %v312
        %v336 = vmul.f32 %v297, %v312
        %v337 = vmul.f32 %v298, %v312
        %v338 = vmul.f32 %v299, %v312
        %v339 = vmul.f32 %v300, %v312
        %v340 = vmul.f32 %v301, %v312
        %v341 = vmul.f32 %v302, %v312
        %v342 = vmul.f32 %v303, %v312
        %v343 = vmul.f32 %v304, %v312
        %v344 = vmul.f32 %v305, %v312
        %v345 = vmul.f32 %v306, %v312
        %v346 = vld [vmem:[%s3] sm:$0x1]
        %v348 = vlaneseq
        %v349 = vshrl.u32 %v348, 7
        %v350 = vsub.s32 0, %v349
        %v351 = vrot.slane %v346, %v350
        %v353 = vadd.f32 %v314, %v351
        %v354 = vadd.f32 %v315, %v351
        %v355 = vadd.f32 %v316, %v351
        %v356 = vadd.f32 %v317, %v351
        %v357 = vadd.f32 %v318, %v351
        %v358 = vadd.f32 %v319, %v351
        %v359 = vadd.f32 %v320, %v351
        %v360 = vadd.f32 %v321, %v351
        %v361 = vadd.f32 %v322, %v351
        %v362 = vadd.f32 %v323, %v351
        %v363 = vadd.f32 %v324, %v351
        %v364 = vadd.f32 %v325, %v351
        %v365 = vadd.f32 %v326, %v351
        %v366 = vadd.f32 %v327, %v351
        %v367 = vadd.f32 %v328, %v351
        %v368 = vadd.f32 %v329, %v351
        %v369 = vadd.f32 %v330, %v351
        %v370 = vadd.f32 %v331, %v351
        %v371 = vadd.f32 %v332, %v351
        %v372 = vadd.f32 %v333, %v351
        %v373 = vadd.f32 %v334, %v351
        %v374 = vadd.f32 %v335, %v351
        %v375 = vadd.f32 %v336, %v351
        %v376 = vadd.f32 %v337, %v351
        %v377 = vadd.f32 %v338, %v351
        %v378 = vadd.f32 %v339, %v351
        %v379 = vadd.f32 %v340, %v351
        %v380 = vadd.f32 %v341, %v351
        %v381 = vadd.f32 %v342, %v351
        %v382 = vadd.f32 %v343, %v351
        %v383 = vadd.f32 %v344, %v351
        %v384 = vadd.f32 %v345, %v351
        %v385 = vld [vmem:[%s272] sm:$0xff]
        %v386 = vld [vmem:[%s272 + $0x8] sm:$0xff]
        %v387 = vld [vmem:[%s272 + $0x10] sm:$0xff]
        %v388 = vld [vmem:[%s272 + $0x18] sm:$0xff]
        %v389 = vld [vmem:[%s272 + $0x20] sm:$0xff]
        %v390 = vld [vmem:[%s272 + $0x28] sm:$0xff]
        %v391 = vld [vmem:[%s272 + $0x30] sm:$0xff]
        %v392 = vld [vmem:[%s272 + $0x38] sm:$0xff]
        %v393 = vld [vmem:[%s272 + $0x40] sm:$0xff]
        %v394 = vld [vmem:[%s272 + $0x48] sm:$0xff]
        %v395 = vld [vmem:[%s272 + $0x50] sm:$0xff]
        %v396 = vld [vmem:[%s272 + $0x58] sm:$0xff]
        %v397 = vld [vmem:[%s272 + $0x60] sm:$0xff]
        %v398 = vld [vmem:[%s272 + $0x68] sm:$0xff]
        %v399 = vld [vmem:[%s272 + $0x70] sm:$0xff]
        %v400 = vld [vmem:[%s272 + $0x78] sm:$0xff]
        %v401 = vld [vmem:[%s272 + $0x80] sm:$0xff]
        %v402 = vld [vmem:[%s272 + $0x88] sm:$0xff]
        %v403 = vld [vmem:[%s272 + $0x90] sm:$0xff]
        %v404 = vld [vmem:[%s272 + $0x98] sm:$0xff]
        %v405 = vld [vmem:[%s272 + $0xa0] sm:$0xff]
        %v406 = vld [vmem:[%s272 + $0xa8] sm:$0xff]
        %v407 = vld [vmem:[%s272 + $0xb0] sm:$0xff]
        %v408 = vld [vmem:[%s272 + $0xb8] sm:$0xff]
        %v409 = vld [vmem:[%s272 + $0xc0] sm:$0xff]
        %v410 = vld [vmem:[%s272 + $0xc8] sm:$0xff]
        %v411 = vld [vmem:[%s272 + $0xd0] sm:$0xff]
        %v412 = vld [vmem:[%s272 + $0xd8] sm:$0xff]
        %v413 = vld [vmem:[%s272 + $0xe0] sm:$0xff]
        %v414 = vld [vmem:[%s272 + $0xe8] sm:$0xff]
        %v415 = vld [vmem:[%s272 + $0xf0] sm:$0xff]
        %v416 = vld [vmem:[%s272 + $0xf8] sm:$0xff]
        %v417 = vld [vmem:[%s4] sm:$0x1]
        %v419 = vlaneseq
        %v420 = vshrl.u32 %v419, 7
        %v421 = vsub.s32 0, %v420
        %v422 = vrot.slane %v417, %v421
        %v424 = vmul.f32 %v385, %v422
        %v425 = vmul.f32 %v386, %v422
        %v426 = vmul.f32 %v387, %v422
        %v427 = vmul.f32 %v388, %v422
        %v428 = vmul.f32 %v389, %v422
        %v429 = vmul.f32 %v390, %v422
        %v430 = vmul.f32 %v391, %v422
        %v431 = vmul.f32 %v392, %v422
        %v432 = vmul.f32 %v393, %v422
        %v433 = vmul.f32 %v394, %v422
        %v434 = vmul.f32 %v395, %v422
        %v435 = vmul.f32 %v396, %v422
        %v436 = vmul.f32 %v397, %v422
        %v437 = vmul.f32 %v398, %v422
        %v438 = vmul.f32 %v399, %v422
        %v439 = vmul.f32 %v400, %v422
        %v440 = vmul.f32 %v401, %v422
        %v441 = vmul.f32 %v402, %v422
        %v442 = vmul.f32 %v403, %v422
        %v443 = vmul.f32 %v404, %v422
        %v444 = vmul.f32 %v405, %v422
        %v445 = vmul.f32 %v406, %v422
        %v446 = vmul.f32 %v407, %v422
        %v447 = vmul.f32 %v408, %v422
        %v448 = vmul.f32 %v409, %v422
        %v449 = vmul.f32 %v410, %v422
        %v450 = vmul.f32 %v411, %v422
        %v451 = vmul.f32 %v412, %v422
        %v452 = vmul.f32 %v413, %v422
        %v453 = vmul.f32 %v414, %v422
        %v454 = vmul.f32 %v415, %v422
        %v455 = vmul.f32 %v416, %v422
        %v456 = vld [vmem:[%s5] sm:$0x1]
        %v458 = vlaneseq
        %v459 = vshrl.u32 %v458, 7
        %v460 = vsub.s32 0, %v459
        %v461 = vrot.slane %v456, %v460
        %v463 = vadd.f32 %v424, %v461
        %v464 = vadd.f32 %v425, %v461
        %v465 = vadd.f32 %v426, %v461
        %v466 = vadd.f32 %v427, %v461
        %v467 = vadd.f32 %v428, %v461
        %v468 = vadd.f32 %v429, %v461
        %v469 = vadd.f32 %v430, %v461
        %v470 = vadd.f32 %v431, %v461
        %v471 = vadd.f32 %v432, %v461
        %v472 = vadd.f32 %v433, %v461
        %v473 = vadd.f32 %v434, %v461
        %v474 = vadd.f32 %v435, %v461
        %v475 = vadd.f32 %v436, %v461
        %v476 = vadd.f32 %v437, %v461
        %v477 = vadd.f32 %v438, %v461
        %v478 = vadd.f32 %v439, %v461
        %v479 = vadd.f32 %v440, %v461
        %v480 = vadd.f32 %v441, %v461
        %v481 = vadd.f32 %v442, %v461
        %v482 = vadd.f32 %v443, %v461
        %v483 = vadd.f32 %v444, %v461
        %v484 = vadd.f32 %v445, %v461
        %v485 = vadd.f32 %v446, %v461
        %v486 = vadd.f32 %v447, %v461
        %v487 = vadd.f32 %v448, %v461
        %v488 = vadd.f32 %v449, %v461
        %v489 = vadd.f32 %v450, %v461
        %v490 = vadd.f32 %v451, %v461
        %v491 = vadd.f32 %v452, %v461
        %v492 = vadd.f32 %v453, %v461
        %v493 = vadd.f32 %v454, %v461
        %v494 = vadd.f32 %v455, %v461
        %v495 = vadd.f32 %v353, %v463
        %v496 = vadd.f32 %v354, %v464
        %v497 = vadd.f32 %v355, %v465
        %v498 = vadd.f32 %v356, %v466
        %v499 = vadd.f32 %v357, %v467
        %v500 = vadd.f32 %v358, %v468
        %v501 = vadd.f32 %v359, %v469
        %v502 = vadd.f32 %v360, %v470
        %v503 = vadd.f32 %v361, %v471
        %v504 = vadd.f32 %v362, %v472
        %v505 = vadd.f32 %v363, %v473
        %v506 = vadd.f32 %v364, %v474
        %v507 = vadd.f32 %v365, %v475
        %v508 = vadd.f32 %v366, %v476
        %v509 = vadd.f32 %v367, %v477
        %v510 = vadd.f32 %v368, %v478
        %v511 = vadd.f32 %v369, %v479
        %v512 = vadd.f32 %v370, %v480
        %v513 = vadd.f32 %v371, %v481
        %v514 = vadd.f32 %v372, %v482
        %v515 = vadd.f32 %v373, %v483
        %v516 = vadd.f32 %v374, %v484
        %v517 = vadd.f32 %v375, %v485
        %v518 = vadd.f32 %v376, %v486
        %v519 = vadd.f32 %v377, %v487
        %v520 = vadd.f32 %v378, %v488
        %v521 = vadd.f32 %v379, %v489
        %v522 = vadd.f32 %v380, %v490
        %v523 = vadd.f32 %v381, %v491
        %v524 = vadd.f32 %v382, %v492
        %v525 = vadd.f32 %v383, %v493
        %v526 = vadd.f32 %v384, %v494
        %v527 = vmax.f32 %v495, 0.0
        %v528 = vmax.f32 %v496, 0.0
        %v529 = vmax.f32 %v497, 0.0
        %v530 = vmax.f32 %v498, 0.0
        %v531 = vmax.f32 %v499, 0.0
        %v532 = vmax.f32 %v500, 0.0
        %v533 = vmax.f32 %v501, 0.0
        %v534 = vmax.f32 %v502, 0.0
        %v535 = vmax.f32 %v503, 0.0
        %v536 = vmax.f32 %v504, 0.0
        %v537 = vmax.f32 %v505, 0.0
        %v538 = vmax.f32 %v506, 0.0
        %v539 = vmax.f32 %v507, 0.0
        %v540 = vmax.f32 %v508, 0.0
        %v541 = vmax.f32 %v509, 0.0
        %v542 = vmax.f32 %v510, 0.0
        %v543 = vmax.f32 %v511, 0.0
        %v544 = vmax.f32 %v512, 0.0
        %v545 = vmax.f32 %v513, 0.0
        %v546 = vmax.f32 %v514, 0.0
        %v547 = vmax.f32 %v515, 0.0
        %v548 = vmax.f32 %v516, 0.0
        %v549 = vmax.f32 %v517, 0.0
        %v550 = vmax.f32 %v518, 0.0
        %v551 = vmax.f32 %v519, 0.0
        %v552 = vmax.f32 %v520, 0.0
        %v553 = vmax.f32 %v521, 0.0
        %v554 = vmax.f32 %v522, 0.0
        %v555 = vmax.f32 %v523, 0.0
        %v556 = vmax.f32 %v524, 0.0
        %v557 = vmax.f32 %v525, 0.0
        %v558 = vmax.f32 %v526, 0.0
        %559 = vst [vmem:[%s261] sm:$0xff] %v527
        %560 = vst [vmem:[%s261 + $0x8] sm:$0xff] %v528
        %561 = vst [vmem:[%s261 + $0x10] sm:$0xff] %v529
        %562 = vst [vmem:[%s261 + $0x18] sm:$0xff] %v530
        %563 = vst [vmem:[%s261 + $0x20] sm:$0xff] %v531
        %564 = vst [vmem:[%s261 + $0x28] sm:$0xff] %v532
        %565 = vst [vmem:[%s261 + $0x30] sm:$0xff] %v533
        %566 = vst [vmem:[%s261 + $0x38] sm:$0xff] %v534
        %567 = vst [vmem:[%s261 + $0x40] sm:$0xff] %v535
        %568 = vst [vmem:[%s261 + $0x48] sm:$0xff] %v536
        %569 = vst [vmem:[%s261 + $0x50] sm:$0xff] %v537
        %570 = vst [vmem:[%s261 + $0x58] sm:$0xff] %v538
        %571 = vst [vmem:[%s261 + $0x60] sm:$0xff] %v539
        %572 = vst [vmem:[%s261 + $0x68] sm:$0xff] %v540
        %573 = vst [vmem:[%s261 + $0x70] sm:$0xff] %v541
        %574 = vst [vmem:[%s261 + $0x78] sm:$0xff] %v542
        %575 = vst [vmem:[%s261 + $0x80] sm:$0xff] %v543
        %576 = vst [vmem:[%s261 + $0x88] sm:$0xff] %v544
        %577 = vst [vmem:[%s261 + $0x90] sm:$0xff] %v545
        %578 = vst [vmem:[%s261 + $0x98] sm:$0xff] %v546
        %579 = vst [vmem:[%s261 + $0xa0] sm:$0xff] %v547
        %580 = vst [vmem:[%s261 + $0xa8] sm:$0xff] %v548
        %581 = vst [vmem:[%s261 + $0xb0] sm:$0xff] %v549
        %582 = vst [vmem:[%s261 + $0xb8] sm:$0xff] %v550
        %583 = vst [vmem:[%s261 + $0xc0] sm:$0xff] %v551
        %584 = vst [vmem:[%s261 + $0xc8] sm:$0xff] %v552
        %585 = vst [vmem:[%s261 + $0xd0] sm:$0xff] %v553
        %586 = vst [vmem:[%s261 + $0xd8] sm:$0xff] %v554
        %587 = vst [vmem:[%s261 + $0xe0] sm:$0xff] %v555
        %588 = vst [vmem:[%s261 + $0xe8] sm:$0xff] %v556
        %589 = vst [vmem:[%s261 + $0xf0] sm:$0xff] %v557
        %590 = vst [vmem:[%s261 + $0xf8] sm:$0xff] %v558
        %s591 = sand.u32 %s164, 1
        %s592 = scalar_lea.sflag [#allocation3], %s591
        %s593 = sand.u32 %s164, 1
        %s594 = smul.addr %s593, 256
        %s595 = scalar_lea.vmem [#allocation2], %s594
        // Predicated region
        $region45: #{residual_conv.5} parent=43 // pred_check
          %p596 = pneg %p174
        $region46: #{residual_conv.5} parent=43 // pred_check_branch
          %598 = sbr.rel (%p596) target = $region48
        $region47: #{residual_conv.5} parent=43 // pred_region
          %s599 = smul.u32 32, %s20
          %s601 = ssub.s32 4096, 4096
          %602 = vsyncadd %s592, %s601
          %s603 = smul.addr %s599, 128
          %s604 = scalar_lea.hbm %s6, %s603
          %s605 = sshll.u32 %s595, 4
          %s606 = int_to_ptr.vmem [resolvable:$true] %s605
          %611 = dma.vmem_to_hbm [thread:$0]  %s606, 4096, %s604, %s592, 128, 128, 8
        $region48: #{residual_conv.5} parent=43 // pred_fallthru
          _
      $region44: #{residual_conv.5} parent=5 // pred_fallthru
        _
      %p612 = scmp.le.s32.totalorder 2, %s15
      // Predicated region
      $region49: #{residual_conv.5} parent=5 // pred_check
        %p613 = pneg %p612
      $region50: #{residual_conv.5} parent=5 // pred_check_branch
        %615 = sbr.rel (%p613) target = $region52
      $region51: #{residual_conv.5} parent=5 // pred_region
        %s616 = ssub.s32 %s15, 2
        // Predicated region
        $region53: #{residual_conv.5} parent=51 // pred_check
          %p617 = pneg %p180
        $region54: #{residual_conv.5} parent=51 // pred_check_branch
          %619 = sbr.rel (%p617) target = $region56
        $region55: #{residual_conv.5} parent=51 // pred_region
          %s620 = sand.u32 %s165, 1
          %s621 = scalar_lea.sflag [#allocation3], %s620
          %s622 = sand.u32 %s165, 1
          %s623 = smul.addr %s622, 256
          %s624 = scalar_lea.vmem [#allocation2], %s623
          %625 = dma.done %s621, 4096
        $region56: #{residual_conv.5} parent=51 // pred_fallthru
          _
      $region52: #{residual_conv.5} parent=5 // pred_fallthru
        _
    $region6: #{residual_conv.5} parent=1 // loop_footer
      %s19 = sadd.s32 1, %s15
    $region7: #{residual_conv.5} parent=1 // loop_footer_branch
      %14 = sbr.rel target = $region3
    $region8: #{residual_conv.5} parent=1 // loop_exit
      _
    %626 = vsyncpa [#allocation3], 1
    %s627 = scalar_lea.sflag [#allocation3], 1
    %628 = vsyncpa %s627, 1

// kernel: residual_conv.4
$region0: #{residual_conv.4}
  #allocation0 [shape = 'u32[]', space=smem, size = 0x4, offset = 0x4, fixed_abs, tag = 'smem constant byte address 0x4 - core index']
  #allocation1 [shape = 'u32[144,128]{1,0:T(1,128)}', space=vmem, size = 0x12000, scoped, tag = 'internal scratch']
  %s0 = inlined_call_operand.vmem [shape: bf16[4,10,18,128], index: 0, kind: input, shape index: {}]
  %s1 = inlined_call_operand.vmem [shape: bf16[1152,128], index: 1, kind: input, shape index: {}]
  %s2 = inlined_call_operand.vmem [shape: f32[512,128], index: 2, kind: output, shape index: {0}]
  %s3 = inlined_call_operand.vmem [shape: f32[32,128], index: 3, kind: output, shape index: {1}]
  %4 = xla_tuple %s2, %s3
  %s5 = sld [smem:[#allocation0]]
  $region49: #{residual_conv.4} parent=0
    _
  %s7 = ssub.s32 1, %s5
  %s8 = scalar_select 0, %s7, %s5
  loop: start=0, step=1, limit=6
  $region2: #{residual_conv.4} parent=0 // loop_pre_header
    _
  $region3: #{residual_conv.4} parent=0 // loop_header
    %s10 = sphi 0, %s14
    %p11 = scmp.ge.s32.totalorder %s10, 6
    %s20 = sphi 0, %s22
    %s23 = sphi 0, %s20
    %s24 = sphi 0, %s23
    %s40 = sphi 0, %s24
    %s44 = sphi 0, %s44
    %s46 = sphi 0, %s44
    %s47 = sphi 0, %s46
    %s61 = sphi 0, %s47
    %s67 = sphi 0, %s69
    %s70 = sphi 0, %s67
    %s71 = sphi 0, %s70
    %s87 = sphi 0, %s71
    %s93 = sphi 0, %s95
    %s96 = sphi 0, %s93
    %s97 = sphi 0, %s96
    %s113 = sphi 0, %s97
  $region4: #{residual_conv.4} parent=0 // loop_header_branch
    %13 = sbr.rel (%p11) target = $region8
  $region5: #{residual_conv.4} parent=0 // loop_body
    %s15 = ssub.s32 %s10, 1
    %s16 = ssub.s32 %s10, 2
    %s17 = sadd.s32 %s10, 1
    %s18 = ssub.s32 %s10, %s17
    %p19 = scmp.eq.s32.totalorder %s18, 0
    %s21 = sadd.s32 %s20, 1
    %s22 = scalar_select %p19, %s20, %s21
    %p25 = pneg %p19
    %p26 = scmp.eq.s32.totalorder %s10, 3
    %p27 = por %p25, %p26
    %p28 = scmp.ne.s32.totalorder %s20, %s23
    %p29 = scmp.eq.s32.totalorder %s10, 0
    %p30 = por %p28, %p29
    %p31 = scmp.ne.s32.totalorder %s20, %s23
    %p32 = scmp.eq.s32.totalorder %s15, 3
    %p33 = por %p31, %p32
    %p34 = scmp.ne.s32.totalorder %s23, %s24
    %p35 = scmp.eq.s32.totalorder %s15, 0
    %p36 = por %p34, %p35
    %p37 = scmp.ne.s32.totalorder %s23, %s24
    %p38 = scmp.eq.s32.totalorder %s16, 3
    %p39 = por %p37, %p38
    %p41 = scmp.ne.s32.totalorder %s24, %s40
    %p42 = scmp.eq.s32.totalorder %s16, 0
    %p43 = por %p41, %p42
    %s45 = sadd.s32 %s44, 1
    %p48 = scmp.eq.s32.totalorder %s10, 3
    %p49 = scmp.ne.s32.totalorder %s44, %s46
    %p50 = scmp.eq.s32.totalorder %s10, 0
    %p51 = por %p49, %p50
    %p52 = scmp.ne.s32.totalorder %s44, %s46
    %p53 = scmp.eq.s32.totalorder %s15, 3
    %p54 = por %p52, %p53
    %p55 = scmp.ne.s32.totalorder %s46, %s47
    %p56 = scmp.eq.s32.totalorder %s15, 0
    %p57 = por %p55, %p56
    %p58 = scmp.ne.s32.totalorder %s46, %s47
    %p59 = scmp.eq.s32.totalorder %s16, 3
    %p60 = por %p58, %p59
    %p62 = scmp.ne.s32.totalorder %s47, %s61
    %p63 = scmp.eq.s32.totalorder %s16, 0
    %p64 = por %p62, %p63
    %s65 = ssub.s32 %s10, %s17
    %p66 = scmp.eq.s32.totalorder %s65, 0
    %s68 = sadd.s32 %s67, 1
    %s69 = scalar_select %p66, %s67, %s68
    %p72 = pneg %p66
    %p73 = scmp.eq.s32.totalorder %s10, 3
    %p74 = por %p72, %p73
    %p75 = scmp.ne.s32.totalorder %s67, %s70
    %p76 = scmp.eq.s32.totalorder %s10, 0
    %p77 = por %p75, %p76
    %p78 = scmp.ne.s32.totalorder %s67, %s70
    %p79 = scmp.eq.s32.totalorder %s15, 3
    %p80 = por %p78, %p79
    %p81 = scmp.ne.s32.totalorder %s70, %s71
    %p82 = scmp.eq.s32.totalorder %s15, 0
    %p83 = por %p81, %p82
    %p84 = scmp.ne.s32.totalorder %s70, %s71
    %p85 = scmp.eq.s32.totalorder %s16, 3
    %p86 = por %p84, %p85
    %p88 = scmp.ne.s32.totalorder %s71, %s87
    %p89 = scmp.eq.s32.totalorder %s16, 0
    %p90 = por %p88, %p89
    %s91 = ssub.s32 %s10, %s17
    %p92 = scmp.eq.s32.totalorder %s91, 0
    %s94 = sadd.s32 %s93, 1
    %s95 = scalar_select %p92, %s93, %s94
    %p98 = pneg %p92
    %p99 = scmp.eq.s32.totalorder %s10, 3
    %p100 = por %p98, %p99
    %p101 = scmp.ne.s32.totalorder %s93, %s96
    %p102 = scmp.eq.s32.totalorder %s10, 0
    %p103 = por %p101, %p102
    %p104 = scmp.ne.s32.totalorder %s93, %s96
    %p105 = scmp.eq.s32.totalorder %s15, 3
    %p106 = por %p104, %p105
    %p107 = scmp.ne.s32.totalorder %s96, %s97
    %p108 = scmp.eq.s32.totalorder %s15, 0
    %p109 = por %p107, %p108
    %p110 = scmp.ne.s32.totalorder %s96, %s97
    %p111 = scmp.eq.s32.totalorder %s16, 3
    %p112 = por %p110, %p111
    %p114 = scmp.ne.s32.totalorder %s97, %s113
    %p115 = scmp.eq.s32.totalorder %s16, 0
    %p116 = por %p114, %p115
    %p117 = scmp.le.s32.totalorder 1, %s10
    %p118 = scmp.lt.s32.totalorder %s10, 5
    %p119 = pnand %p117, %p118
    %p120 = pneg %p119
    // Predicated region
    $region9: #{residual_conv.4} parent=5 // pred_check
      _
    $region10: #{residual_conv.4} parent=5 // pred_check_branch
      %122 = sbr.rel (%p119) target = $region12
    $region11: #{residual_conv.4} parent=5 // pred_region
      %s123 = ssub.s32 %s10, 1
      // Predicated region
      $region13: #{residual_conv.4} parent=11 // pred_check
        %p124 = pneg %p57
      $region14: #{residual_conv.4} parent=11 // pred_check_branch
        %126 = sbr.rel (%p124) target = $region16
      $region15: #{residual_conv.4} parent=11 // pred_region
        _
      $region16: #{residual_conv.4} parent=11 // pred_fallthru
        _
    $region12: #{residual_conv.4} parent=5 // pred_fallthru
      _
    %p127 = scmp.lt.s32.totalorder %s10, 4
    // Predicated region
    $region17: #{residual_conv.4} parent=5 // pred_check
      %p128 = pneg %p127
    $region18: #{residual_conv.4} parent=5 // pred_check_branch
      %130 = sbr.rel (%p128) target = $region20
    $region19: #{residual_conv.4} parent=5 // pred_region
      // Predicated region
      $region21: #{residual_conv.4} parent=19 // pred_check
        %p131 = pneg %p30
      $region22: #{residual_conv.4} parent=19 // pred_check_branch
        %133 = sbr.rel (%p131) target = $region24
      $region23: #{residual_conv.4} parent=19 // pred_region
        %p134 = scmp.lt.s32.totalorder %s10, 3
        %s135 = scalar_select %p134, %s10, 3
        %s136 = smul.addr %s135, 30
        %s137 = smul.addr %s136, 4
        %s138 = scalar_lea.vmem %s0, %s137
      $region24: #{residual_conv.4} parent=19 // pred_fallthru
        _
    $region20: #{residual_conv.4} parent=5 // pred_fallthru
      _
    %p139 = scmp.le.s32.totalorder 1, %s10
    %p140 = scmp.lt.s32.totalorder %s10, 5
    %p141 = pnand %p139, %p140
    %p142 = pneg %p141
    // Predicated region
    $region25: #{residual_conv.4} parent=5 // pred_check
      _
    $region26: #{residual_conv.4} parent=5 // pred_check_branch
      %144 = sbr.rel (%p141) target = $region28
    $region27: #{residual_conv.4} parent=5 // pred_region
      %s145 = ssub.s32 %s10, 1
      %p146 = scmp.lt.s32.totalorder %s15, 3
      %s147 = scalar_select %p146, %s15, 3
      %s148 = smul.addr %s147, 30
      %s149 = smul.addr %s148, 4
      %s150 = scalar_lea.vmem %s0, %s149
      %p151 = pneg %p36
      %p152 = pneg %p33
      %p153 = pneg %p57
      %p154 = pneg %p54
      %p155 = pneg %p83
      %p156 = pneg %p80
      %s157 = smul.u32 16, %s15
      %p158 = scmp.lt.s32.totalorder %s157, 63
      %s159 = scalar_select %p158, %s157, 63
      %s160 = smul.addr %s159, 8
      %s161 = scalar_lea.vmem %s2, %s160
      %p162 = pneg %p109
      %p163 = pneg %p106
      %p164 = scmp.lt.s32.totalorder %s15, 3
      %s165 = scalar_select %p164, %s15, 3
      %s166 = smul.addr %s165, 8
      %s167 = scalar_lea.vmem %s3, %s166
      %p168 = scmp.lt.s32.totalorder %s15, 3
      %s169 = scalar_select %p168, %s15, 3
      %s170 = smul.addr %s169, 30
      %s171 = smul.addr %s170, 4
      %s172 = scalar_lea.vmem %s0, %s171
      %s173 = smul.u32 16, %s15
      %p174 = scmp.lt.s32.totalorder %s173, 63
      %s175 = scalar_select %p174, %s173, 63
      %s176 = smul.addr %s175, 8
      %s177 = scalar_lea.vmem %s2, %s176
      %s178 = smul.u32 16, %s15
      %p179 = scmp.lt.s32.totalorder %s15, 3
      %s180 = scalar_select %p179, %s15, 3
      %s181 = smul.addr %s180, 8
      %s182 = scalar_lea.vmem %s3, %s181
      %v184 = vld [vmem:[%s172] sm:$0xf]
      %v185 = vld [vmem:[%s172 + $0x4] sm:$0xf]
      %v186 = vld [vmem:[%s172 + $0xc] sm:$0xf]
      %v187 = vld [vmem:[%s172 + $0x10] sm:$0xf]
      %v188 = vld [vmem:[%s172 + $0x18] sm:$0xf]
      %v189 = vld [vmem:[%s172 + $0x1c] sm:$0xf]
      %v190 = vld [vmem:[%s172 + $0x24] sm:$0xf]
      %v191 = vld [vmem:[%s172 + $0x28] sm:$0xf]
      %v192 = vld [vmem:[%s172 + $0x30] sm:$0xf]
      %v193 = vld [vmem:[%s172 + $0x34] sm:$0xf]
      %v194 = vld [vmem:[%s172 + $0x3c] sm:$0xf]
      %v195 = vld [vmem:[%s172 + $0x40] sm:$0xf]
      %v196 = vld [vmem:[%s172 + $0x48] sm:$0xf]
      %v197 = vld [vmem:[%s172 + $0x4c] sm:$0xf]
      %v198 = vld [vmem:[%s172 + $0x54] sm:$0xf]
      %v199 = vld [vmem:[%s172 + $0x58] sm:$0xf]
      %v200 = vld [vmem:[%s172 + $0x8] sm:$0x1]
      %v201 = vld [vmem:[%s172 + $0x14] sm:$0x1]
      %v202 = vld [vmem:[%s172 + $0x20] sm:$0x1]
      %v203 = vld [vmem:[%s172 + $0x2c] sm:$0x1]
      %v204 = vld [vmem:[%s172 + $0x38] sm:$0x1]
      %v205 = vld [vmem:[%s172 + $0x44] sm:$0x1]
      %v206 = vld [vmem:[%s172 + $0x50] sm:$0x1]
      %v207 = vld [vmem:[%s172 + $0x5c] sm:$0x1]
      %vm208 = vsmask.f32 3328
      %vm209 = vsmask.f32 7440
      %vm210 = vmor %vm208, %vm209
      %v212 = vshrl.u32 %v184, 16
      %v214 = vrot.slane %v212, 4
      %v215 = vshll.u32 %v184, 16
      %v217 = vrot.slane %v215, 5
      %v218 = vor.u32 %v214, %v217
      %v219 = vrot.slane %v218, 4
      %v221 = vshll.u32 %v185, 16
      %v223 = vrot.slane %v221, 5
      %v224 = vsel %vm210, %v219, %v223
      %v225 = vshrl.u32 %v185, 16
      %v227 = vrot.slane %v225, 4
      %v228 = vor.u32 %v227, %v223
      %v229 = vrot.slane %v228, 4
      %v231 = vshll.u32 %v200, 16
      %v233 = vrot.slane %v231, 5
      %v234 = vsel %vm210, %v229, %v233
      %v236 = vshrl.u32 %v186, 16
      %v238 = vrot.slane %v236, 4
      %v239 = vshll.u32 %v186, 16
      %v241 = vrot.slane %v239, 5
      %v242 = vor.u32 %v238, %v241
      %v243 = vrot.slane %v242, 4
      %v245 = vshll.u32 %v187, 16
      %v247 = vrot.slane %v245, 5
      %v248 = vsel %vm210, %v243, %v247
      %v249 = vshrl.u32 %v187, 16
      %v251 = vrot.slane %v249, 4
      %v252 = vor.u32 %v251, %v247
      %v253 = vrot.slane %v252, 4
      %v255 = vshll.u32 %v201, 16
      %v257 = vrot.slane %v255, 5
      %v258 = vsel %vm210, %v253, %v257
      %v260 = vshrl.u32 %v188, 16
      %v262 = vrot.slane %v260, 4
      %v263 = vshll.u32 %v188, 16
      %v265 = vrot.slane %v263, 5
      %v266 = vor.u32 %v262, %v265
      %v267 = vrot.slane %v266, 4
      %v269 = vshll.u32 %v189, 16
      %v271 = vrot.slane %v269, 5
      %v272 = vsel %vm210, %v267, %v271
      %v273 = vshrl.u32 %v189, 16
      %v275 = vrot.slane %v273, 4
      %v276 = vor.u32 %v275, %v271
      %v277 = vrot.slane %v276, 4
      %v279 = vshll.u32 %v202, 16
      %v281 = vrot.slane %v279, 5
      %v282 = vsel %vm210, %v277, %v281
      %v284 = vshrl.u32 %v190, 16
      %v286 = vrot.slane %v284, 4
      %v287 = vshll.u32 %v190, 16
      %v289 = vrot.slane %v287, 5
      %v290 = vor.u32 %v286, %v289
      %v291 = vrot.slane %v290, 4
      %v293 = vshll.u32 %v191, 16
      %v295 = vrot.slane %v293, 5
      %v296 = vsel %vm210, %v291, %v295
      %v297 = vshrl.u32 %v191, 16
      %v299 = vrot.slane %v297, 4
      %v300 = vor.u32 %v299, %v295
      %v301 = vrot.slane %v300, 4
      %v303 = vshll.u32 %v203, 16
      %v305 = vrot.slane %v303, 5
      %v306 = vsel %vm210, %v301, %v305
      %v308 = vshrl.u32 %v192, 16
      %v310 = vrot.slane %v308, 4
      %v311 = vshll.u32 %v192, 16
      %v313 = vrot.slane %v311, 5
      %v314 = vor.u32 %v310, %v313
      %v315 = vrot.slane %v314, 4
      %v317 = vshll.u32 %v193, 16
      %v319 = vrot.slane %v317, 5
      %v320 = vsel %vm210, %v315, %v319
      %v321 = vshrl.u32 %v193, 16
      %v323 = vrot.slane %v321, 4
      %v324 = vor.u32 %v323, %v319
      %v325 = vrot.slane %v324, 4
      %v327 = vshll.u32 %v204, 16
      %v329 = vrot.slane %v327, 5
      %v330 = vsel %vm210, %v325, %v329
      %v332 = vshrl.u32 %v194, 16
      %v334 = vrot.slane %v332, 4
      %v335 = vshll.u32 %v194, 16
      %v337 = vrot.slane %v335, 5
      %v338 = vor.u32 %v334, %v337
      %v339 = vrot.slane %v338, 4
      %v341 = vshll.u32 %v195, 16
      %v343 = vrot.slane %v341, 5
      %v344 = vsel %vm210, %v339, %v343
      %v345 = vshrl.u32 %v195, 16
      %v347 = vrot.slane %v345, 4
      %v348 = vor.u32 %v347, %v343
      %v349 = vrot.slane %v348, 4
      %v351 = vshll.u32 %v205, 16
      %v353 = vrot.slane %v351, 5
      %v354 = vsel %vm210, %v349, %v353
      %v356 = vshrl.u32 %v196, 16
      %v358 = vrot.slane %v356, 4
      %v359 = vshll.u32 %v196, 16
      %v361 = vrot.slane %v359, 5
      %v362 = vor.u32 %v358, %v361
      %v363 = vrot.slane %v362, 4
      %v365 = vshll.u32 %v197, 16
      %v367 = vrot.slane %v365, 5
      %v368 = vsel %vm210, %v363, %v367
      %v369 = vshrl.u32 %v197, 16
      %v371 = vrot.slane %v369, 4
      %v372 = vor.u32 %v371, %v367
      %v373 = vrot.slane %v372, 4
      %v375 = vshll.u32 %v206, 16
      %v377 = vrot.slane %v375, 5
      %v378 = vsel %vm210, %v373, %v377
      %v380 = vshrl.u32 %v198, 16
      %v382 = vrot.slane %v380, 4
      %v383 = vshll.u32 %v198, 16
      %v385 = vrot.slane %v383, 5
      %v386 = vor.u32 %v382, %v385
      %v387 = vrot.slane %v386, 4
      %v389 = vshll.u32 %v199, 16
      %v391 = vrot.slane %v389, 5
      %v392 = vsel %vm210, %v387, %v391
      %v393 = vshrl.u32 %v199, 16
      %v395 = vrot.slane %v393, 4
      %v396 = vor.u32 %v395, %v391
      %v397 = vrot.slane %v396, 4
      %v399 = vshll.u32 %v207, 16
      %v401 = vrot.slane %v399, 5
      %v402 = vsel %vm210, %v397, %v401
      %v403 = vld [vmem:[%s172] sm:$0xe]
      %v404 = vld [vmem:[%s172 + $0xc] sm:$0xe]
      %v405 = vld [vmem:[%s172 + $0x18] sm:$0xe]
      %v406 = vld [vmem:[%s172 + $0x24] sm:$0xe]
      %v407 = vld [vmem:[%s172 + $0x30] sm:$0xe]
      %v408 = vld [vmem:[%s172 + $0x3c] sm:$0xe]
      %v409 = vld [vmem:[%s172 + $0x48] sm:$0xe]
      %v410 = vld [vmem:[%s172 + $0x54] sm:$0xe]
      %vm435 = vcmask 1042432
      %vm436 = vcmask 1046532
      %vm437 = vmor %vm435, %vm436
      %v438 = vrot.slane %v403, 5
      %v439 = vrot.slane %v438, 4
      %v440 = vrot.slane %v185, 5
      %v441 = vsel %vm437, %v439, %v440
      %v442 = vrot.slane %v440, 4
      %v443 = vrot.slane %v200, 5
      %v444 = vsel %vm437, %v442, %v443
      %v445 = vrot.slane %v404, 5
      %v446 = vrot.slane %v445, 4
      %v447 = vrot.slane %v187, 5
      %v448 = vsel %vm437, %v446, %v447
      %v449 = vrot.slane %v447, 4
      %v450 = vrot.slane %v201, 5
      %v451 = vsel %vm437, %v449, %v450
      %v452 = vrot.slane %v405, 5
      %v453 = vrot.slane %v452, 4
      %v454 = vrot.slane %v189, 5
      %v455 = vsel %vm437, %v453, %v454
      %v456 = vrot.slane %v454, 4
      %v457 = vrot.slane %v202, 5
      %v458 = vsel %vm437, %v456, %v457
      %v459 = vrot.slane %v406, 5
      %v460 = vrot.slane %v459, 4
      %v461 = vrot.slane %v191, 5
      %v462 = vsel %vm437, %v460, %v461
      %v463 = vrot.slane %v461, 4
      %v464 = vrot.slane %v203, 5
      %v465 = vsel %vm437, %v463, %v464
      %v466 = vrot.slane %v407, 5
      %v467 = vrot.slane %v466, 4
      %v468 = vrot.slane %v193, 5
      %v469 = vsel %vm437, %v467, %v468
      %v470 = vrot.slane %v468, 4
      %v471 = vrot.slane %v204, 5
      %v472 = vsel %vm437, %v470, %v471
      %v473 = vrot.slane %v408, 5
      %v474 = vrot.slane %v473, 4
      %v475 = vrot.slane %v195, 5
      %v476 = vsel %vm437, %v474, %v475
      %v477 = vrot.slane %v475, 4
      %v478 = vrot.slane %v205, 5
      %v479 = vsel %vm437, %v477, %v478
      %v480 = vrot.slane %v409, 5
      %v481 = vrot.slane %v480, 4
      %v482 = vrot.slane %v197, 5
      %v483 = vsel %vm437, %v481, %v482
      %v484 = vrot.slane %v482, 4
      %v485 = vrot.slane %v206, 5
      %v486 = vsel %vm437, %v484, %v485
      %v487 = vrot.slane %v410, 5
      %v488 = vrot.slane %v487, 4
      %v489 = vrot.slane %v199, 5
      %v490 = vsel %vm437, %v488, %v489
      %v491 = vrot.slane %v489, 4
      %v492 = vrot.slane %v207, 5
      %v493 = vsel %vm437, %v491, %v492
      %s494 = scalar_lea.vmem %s172, 12
      %v495 = vld [vmem:[%s494] sm:$0xf]
      %v496 = vld [vmem:[%s494 + $0x4] sm:$0xf]
      %v497 = vld [vmem:[%s494 + $0xc] sm:$0xf]
      %v498 = vld [vmem:[%s494 + $0x10] sm:$0xf]
      %v499 = vld [vmem:[%s494 + $0x18] sm:$0xf]
      %v500 = vld [vmem:[%s494 + $0x1c] sm:$0xf]
      %v501 = vld [vmem:[%s494 + $0x24] sm:$0xf]
      %v502 = vld [vmem:[%s494 + $0x28] sm:$0xf]
      %v503 = vld [vmem:[%s494 + $0x30] sm:$0xf]
      %v504 = vld [vmem:[%s494 + $0x34] sm:$0xf]
      %v505 = vld [vmem:[%s494 + $0x3c] sm:$0xf]
      %v506 = vld [vmem:[%s494 + $0x40] sm:$0xf]
      %v507 = vld [vmem:[%s494 + $0x48] sm:$0xf]
      %v508 = vld [vmem:[%s494 + $0x4c] sm:$0xf]
      %v509 = vld [vmem:[%s494 + $0x54] sm:$0xf]
      %v510 = vld [vmem:[%s494 + $0x58] sm:$0xf]
      %v511 = vld [vmem:[%s494 + $0x8] sm:$0x1]
      %v512 = vld [vmem:[%s494 + $0x14] sm:$0x1]
      %v513 = vld [vmem:[%s494 + $0x20] sm:$0x1]
      %v514 = vld [vmem:[%s494 + $0x2c] sm:$0x1]
      %v515 = vld [vmem:[%s494 + $0x38] sm:$0x1]
      %v516 = vld [vmem:[%s494 + $0x44] sm:$0x1]
      %v517 = vld [vmem:[%s494 + $0x50] sm:$0x1]
      %v518 = vld [vmem:[%s494 + $0x5c] sm:$0x1]
      %v520 = vshrl.u32 %v495, 16
      %v522 = vrot.slane %v520, 4
      %v523 = vshll.u32 %v495, 16
      %v525 = vrot.slane %v523, 5
      %v526 = vor.u32 %v522, %v525
      %v527 = vrot.slane %v526, 4
      %v529 = vshll.u32 %v496, 16
      %v531 = vrot.slane %v529, 5
      %v532 = vsel %vm210, %v527, %v531
      %v533 = vshrl.u32 %v496, 16
      %v535 = vrot.slane %v533, 4
      %v536 = vor.u32 %v535, %v531
      %v537 = vrot.slane %v536, 4
      %v539 = vshll.u32 %v511, 16
      %v541 = vrot.slane %v539, 5
      %v542 = vsel %vm210, %v537, %v541
      %v544 = vshrl.u32 %v497, 16
      %v546 = vrot.slane %v544, 4
      %v547 = vshll.u32 %v497, 16
      %v549 = vrot.slane %v547, 5
      %v550 = vor.u32 %v546, %v549
      %v551 = vrot.slane %v550, 4
      %v553 = vshll.u32 %v498, 16
      %v555 = vrot.slane %v553, 5
      %v556 = vsel %vm210, %v551, %v555
      %v557 = vshrl.u32 %v498, 16
      %v559 = vrot.slane %v557, 4
      %v560 = vor.u32 %v559, %v555
      %v561 = vrot.slane %v560, 4
      %v563 = vshll.u32 %v512, 16
      %v565 = vrot.slane %v563, 5
      %v566 = vsel %vm210, %v561, %v565
      %v568 = vshrl.u32 %v499, 16
      %v570 = vrot.slane %v568, 4
      %v571 = vshll.u32 %v499, 16
      %v573 = vrot.slane %v571, 5
      %v574 = vor.u32 %v570, %v573
      %v575 = vrot.slane %v574, 4
      %v577 = vshll.u32 %v500, 16
      %v579 = vrot.slane %v577, 5
      %v580 = vsel %vm210, %v575, %v579
      %v581 = vshrl.u32 %v500, 16
      %v583 = vrot.slane %v581, 4
      %v584 = vor.u32 %v583, %v579
      %v585 = vrot.slane %v584, 4
      %v587 = vshll.u32 %v513, 16
      %v589 = vrot.slane %v587, 5
      %v590 = vsel %vm210, %v585, %v589
      %v592 = vshrl.u32 %v501, 16
      %v594 = vrot.slane %v592, 4
      %v595 = vshll.u32 %v501, 16
      %v597 = vrot.slane %v595, 5
      %v598 = vor.u32 %v594, %v597
      %v599 = vrot.slane %v598, 4
      %v601 = vshll.u32 %v502, 16
      %v603 = vrot.slane %v601, 5
      %v604 = vsel %vm210, %v599, %v603
      %v605 = vshrl.u32 %v502, 16
      %v607 = vrot.slane %v605, 4
      %v608 = vor.u32 %v607, %v603
      %v609 = vrot.slane %v608, 4
      %v611 = vshll.u32 %v514, 16
      %v613 = vrot.slane %v611, 5
      %v614 = vsel %vm210, %v609, %v613
      %v616 = vshrl.u32 %v503, 16
      %v618 = vrot.slane %v616, 4
      %v619 = vshll.u32 %v503, 16
      %v621 = vrot.slane %v619, 5
      %v622 = vor.u32 %v618, %v621
      %v623 = vrot.slane %v622, 4
      %v625 = vshll.u32 %v504, 16
      %v627 = vrot.slane %v625, 5
      %v628 = vsel %vm210, %v623, %v627
      %v629 = vshrl.u32 %v504, 16
      %v631 = vrot.slane %v629, 4
      %v632 = vor.u32 %v631, %v627
      %v633 = vrot.slane %v632, 4
      %v635 = vshll.u32 %v515, 16
      %v637 = vrot.slane %v635, 5
      %v638 = vsel %vm210, %v633, %v637
      %v640 = vshrl.u32 %v505, 16
      %v642 = vrot.slane %v640, 4
      %v643 = vshll.u32 %v505, 16
      %v645 = vrot.slane %v643, 5
      %v646 = vor.u32 %v642, %v645
      %v647 = vrot.slane %v646, 4
      %v649 = vshll.u32 %v506, 16
      %v651 = vrot.slane %v649, 5
      %v652 = vsel %vm210, %v647, %v651
      %v653 = vshrl.u32 %v506, 16
      %v655 = vrot.slane %v653, 4
      %v656 = vor.u32 %v655, %v651
      %v657 = vrot.slane %v656, 4
      %v659 = vshll.u32 %v516, 16
      %v661 = vrot.slane %v659, 5
      %v662 = vsel %vm210, %v657, %v661
      %v664 = vshrl.u32 %v507, 16
      %v666 = vrot.slane %v664, 4
      %v667 = vshll.u32 %v507, 16
      %v669 = vrot.slane %v667, 5
      %v670 = vor.u32 %v666, %v669
      %v671 = vrot.slane %v670, 4
      %v673 = vshll.u32 %v508, 16
      %v675 = vrot.slane %v673, 5
      %v676 = vsel %vm210, %v671, %v675
      %v677 = vshrl.u32 %v508, 16
      %v679 = vrot.slane %v677, 4
      %v680 = vor.u32 %v679, %v675
      %v681 = vrot.slane %v680, 4
      %v683 = vshll.u32 %v517, 16
      %v685 = vrot.slane %v683, 5
      %v686 = vsel %vm210, %v681, %v685
      %v688 = vshrl.u32 %v509, 16
      %v690 = vrot.slane %v688, 4
      %v691 = vshll.u32 %v509, 16
      %v693 = vrot.slane %v691, 5
      %v694 = vor.u32 %v690, %v693
      %v695 = vrot.slane %v694, 4
      %v697 = vshll.u32 %v510, 16
      %v699 = vrot.slane %v697, 5
      %v700 = vsel %vm210, %v695, %v699
      %v701 = vshrl.u32 %v510, 16
      %v703 = vrot.slane %v701, 4
      %v704 = vor.u32 %v703, %v699
      %v705 = vrot.slane %v704, 4
      %v707 = vshll.u32 %v518, 16
      %v709 = vrot.slane %v707, 5
      %v710 = vsel %vm210, %v705, %v709
      %v711 = vld [vmem:[%s494] sm:$0xe]
      %v712 = vld [vmem:[%s494 + $0xc] sm:$0xe]
      %v713 = vld [vmem:[%s494 + $0x18] sm:$0xe]
      %v714 = vld [vmem:[%s494 + $0x24] sm:$0xe]
      %v715 = vld [vmem:[%s494 + $0x30] sm:$0xe]
      %v716 = vld [vmem:[%s494 + $0x3c] sm:$0xe]
      %v717 = vld [vmem:[%s494 + $0x48] sm:$0xe]
      %v718 = vld [vmem:[%s494 + $0x54] sm:$0xe]
      %v743 = vrot.slane %v711, 5
      %v744 = vrot.slane %v743, 4
      %v745 = vrot.slane %v496, 5
      %v746 = vsel %vm437, %v744, %v745
      %v747 = vrot.slane %v745, 4
      %v748 = vrot.slane %v511, 5
      %v749 = vsel %vm437, %v747, %v748
      %v750 = vrot.slane %v712, 5
      %v751 = vrot.slane %v750, 4
      %v752 = vrot.slane %v498, 5
      %v753 = vsel %vm437, %v751, %v752
      %v754 = vrot.slane %v752, 4
      %v755 = vrot.slane %v512, 5
      %v756 = vsel %vm437, %v754, %v755
      %v757 = vrot.slane %v713, 5
      %v758 = vrot.slane %v757, 4
      %v759 = vrot.slane %v500, 5
      %v760 = vsel %vm437, %v758, %v759
      %v761 = vrot.slane %v759, 4
      %v762 = vrot.slane %v513, 5
      %v763 = vsel %vm437, %v761, %v762
      %v764 = vrot.slane %v714, 5
      %v765 = vrot.slane %v764, 4
      %v766 = vrot.slane %v502, 5
      %v767 = vsel %vm437, %v765, %v766
      %v768 = vrot.slane %v766, 4
      %v769 = vrot.slane %v514, 5
      %v770 = vsel %vm437, %v768, %v769
      %v771 = vrot.slane %v715, 5
      %v772 = vrot.slane %v771, 4
      %v773 = vrot.slane %v504, 5
      %v774 = vsel %vm437, %v772, %v773
      %v775 = vrot.slane %v773, 4
      %v776 = vrot.slane %v515, 5
      %v777 = vsel %vm437, %v775, %v776
      %v778 = vrot.slane %v716, 5
      %v779 = vrot.slane %v778, 4
      %v780 = vrot.slane %v506, 5
      %v781 = vsel %vm437, %v779, %v780
      %v782 = vrot.slane %v780, 4
      %v783 = vrot.slane %v516, 5
      %v784 = vsel %vm437, %v782, %v783
      %v785 = vrot.slane %v717, 5
      %v786 = vrot.slane %v785, 4
      %v787 = vrot.slane %v508, 5
      %v788 = vsel %vm437, %v786, %v787
      %v789 = vrot.slane %v787, 4
      %v790 = vrot.slane %v517, 5
      %v791 = vsel %vm437, %v789, %v790
      %v792 = vrot.slane %v718, 5
      %v793 = vrot.slane %v792, 4
      %v794 = vrot.slane %v510, 5
      %v795 = vsel %vm437, %v793, %v794
      %v796 = vrot.slane %v794, 4
      %v797 = vrot.slane %v518, 5
      %v798 = vsel %vm437, %v796, %v797
      %s799 = scalar_lea.vmem %s172, 24
      %v800 = vld [vmem:[%s799] sm:$0xf]
      %v801 = vld [vmem:[%s799 + $0x4] sm:$0xf]
      %v802 = vld [vmem:[%s799 + $0xc] sm:$0xf]
      %v803 = vld [vmem:[%s799 + $0x10] sm:$0xf]
      %v804 = vld [vmem:[%s799 + $0x18] sm:$0xf]
      %v805 = vld [vmem:[%s799 + $0x1c] sm:$0xf]
      %v806 = vld [vmem:[%s799 + $0x24] sm:$0xf]
      %v807 = vld [vmem:[%s799 + $0x28] sm:$0xf]
      %v808 = vld [vmem:[%s799 + $0x30] sm:$0xf]
      %v809 = vld [vmem:[%s799 + $0x34] sm:$0xf]
      %v810 = vld [vmem:[%s799 + $0x3c] sm:$0xf]
      %v811 = vld [vmem:[%s799 + $0x40] sm:$0xf]
      %v812 = vld [vmem:[%s799 + $0x48] sm:$0xf]
      %v813 = vld [vmem:[%s799 + $0x4c] sm:$0xf]
      %v814 = vld [vmem:[%s799 + $0x54] sm:$0xf]
      %v815 = vld [vmem:[%s799 + $0x58] sm:$0xf]
      %v816 = vld [vmem:[%s799 + $0x8] sm:$0x1]
      %v817 = vld [vmem:[%s799 + $0x14] sm:$0x1]
      %v818 = vld [vmem:[%s799 + $0x20] sm:$0x1]
      %v819 = vld [vmem:[%s799 + $0x2c] sm:$0x1]
      %v820 = vld [vmem:[%s799 + $0x38] sm:$0x1]
      %v821 = vld [vmem:[%s799 + $0x44] sm:$0x1]
      %v822 = vld [vmem:[%s799 + $0x50] sm:$0x1]
      %v823 = vld [vmem:[%s799 + $0x5c] sm:$0x1]
      %v825 = vshrl.u32 %v800, 16
      %v827 = vrot.slane %v825, 4
      %v828 = vshll.u32 %v800, 16
      %v830 = vrot.slane %v828, 5
      %v831 = vor.u32 %v827, %v830
      %v832 = vrot.slane %v831, 4
      %v834 = vshll.u32 %v801, 16
      %v836 = vrot.slane %v834, 5
      %v837 = vsel %vm210, %v832, %v836
      %v838 = vshrl.u32 %v801, 16
      %v840 = vrot.slane %v838, 4
      %v841 = vor.u32 %v840, %v836
      %v842 = vrot.slane %v841, 4
      %v844 = vshll.u32 %v816, 16
      %v846 = vrot.slane %v844, 5
      %v847 = vsel %vm210, %v842, %v846
      %v849 = vshrl.u32 %v802, 16
      %v851 = vrot.slane %v849, 4
      %v852 = vshll.u32 %v802, 16
      %v854 = vrot.slane %v852, 5
      %v855 = vor.u32 %v851, %v854
      %v856 = vrot.slane %v855, 4
      %v858 = vshll.u32 %v803, 16
      %v860 = vrot.slane %v858, 5
      %v861 = vsel %vm210, %v856, %v860
      %v862 = vshrl.u32 %v803, 16
      %v864 = vrot.slane %v862, 4
      %v865 = vor.u32 %v864, %v860
      %v866 = vrot.slane %v865, 4
      %v868 = vshll.u32 %v817, 16
      %v870 = vrot.slane %v868, 5
      %v871 = vsel %vm210, %v866, %v870
      %v873 = vshrl.u32 %v804, 16
      %v875 = vrot.slane %v873, 4
      %v876 = vshll.u32 %v804, 16
      %v878 = vrot.slane %v876, 5
      %v879 = vor.u32 %v875, %v878
      %v880 = vrot.slane %v879, 4
      %v882 = vshll.u32 %v805, 16
      %v884 = vrot.slane %v882, 5
      %v885 = vsel %vm210, %v880, %v884
      %v886 = vshrl.u32 %v805, 16
      %v888 = vrot.slane %v886, 4
      %v889 = vor.u32 %v888, %v884
      %v890 = vrot.slane %v889, 4
      %v892 = vshll.u32 %v818, 16
      %v894 = vrot.slane %v892, 5
      %v895 = vsel %vm210, %v890, %v894
      %v897 = vshrl.u32 %v806, 16
      %v899 = vrot.slane %v897, 4
      %v900 = vshll.u32 %v806, 16
      %v902 = vrot.slane %v900, 5
      %v903 = vor.u32 %v899, %v902
      %v904 = vrot.slane %v903, 4
      %v906 = vshll.u32 %v807, 16
      %v908 = vrot.slane %v906, 5
      %v909 = vsel %vm210, %v904, %v908
      %v910 = vshrl.u32 %v807, 16
      %v912 = vrot.slane %v910, 4
      %v913 = vor.u32 %v912, %v908
      %v914 = vrot.slane %v913, 4
      %v916 = vshll.u32 %v819, 16
      %v918 = vrot.slane %v916, 5
      %v919 = vsel %vm210, %v914, %v918
      %v921 = vshrl.u32 %v808, 16
      %v923 = vrot.slane %v921, 4
      %v924 = vshll.u32 %v808, 16
      %v926 = vrot.slane %v924, 5
      %v927 = vor.u32 %v923, %v926
      %v928 = vrot.slane %v927, 4
      %v930 = vshll.u32 %v809, 16
      %v932 = vrot.slane %v930, 5
      %v933 = vsel %vm210, %v928, %v932
      %v934 = vshrl.u32 %v809, 16
      %v936 = vrot.slane %v934, 4
      %v937 = vor.u32 %v936, %v932
      %v938 = vrot.slane %v937, 4
      %v940 = vshll.u32 %v820, 16
      %v942 = vrot.slane %v940, 5
      %v943 = vsel %vm210, %v938, %v942
      %v945 = vshrl.u32 %v810, 16
      %v947 = vrot.slane %v945, 4
      %v948 = vshll.u32 %v810, 16
      %v950 = vrot.slane %v948, 5
      %v951 = vor.u32 %v947, %v950
      %v952 = vrot.slane %v951, 4
      %v954 = vshll.u32 %v811, 16
      %v956 = vrot.slane %v954, 5
      %v957 = vsel %vm210, %v952, %v956
      %v958 = vshrl.u32 %v811, 16
      %v960 = vrot.slane %v958, 4
      %v961 = vor.u32 %v960, %v956
      %v962 = vrot.slane %v961, 4
      %v964 = vshll.u32 %v821, 16
      %v966 = vrot.slane %v964, 5
      %v967 = vsel %vm210, %v962, %v966
      %v969 = vshrl.u32 %v812, 16
      %v971 = vrot.slane %v969, 4
      %v972 = vshll.u32 %v812, 16
      %v974 = vrot.slane %v972, 5
      %v975 = vor.u32 %v971, %v974
      %v976 = vrot.slane %v975, 4
      %v978 = vshll.u32 %v813, 16
      %v980 = vrot.slane %v978, 5
      %v981 = vsel %vm210, %v976, %v980
      %v982 = vshrl.u32 %v813, 16
      %v984 = vrot.slane %v982, 4
      %v985 = vor.u32 %v984, %v980
      %v986 = vrot.slane %v985, 4
      %v988 = vshll.u32 %v822, 16
      %v990 = vrot.slane %v988, 5
      %v991 = vsel %vm210, %v986, %v990
      %v993 = vshrl.u32 %v814, 16
      %v995 = vrot.slane %v993, 4
      %v996 = vshll.u32 %v814, 16
      %v998 = vrot.slane %v996, 5
      %v999 = vor.u32 %v995, %v998
      %v1000 = vrot.slane %v999, 4
      %v1002 = vshll.u32 %v815, 16
      %v1004 = vrot.slane %v1002, 5
      %v1005 = vsel %vm210, %v1000, %v1004
      %v1006 = vshrl.u32 %v815, 16
      %v1008 = vrot.slane %v1006, 4
      %v1009 = vor.u32 %v1008, %v1004
      %v1010 = vrot.slane %v1009, 4
      %v1012 = vshll.u32 %v823, 16
      %v1014 = vrot.slane %v1012, 5
      %v1015 = vsel %vm210, %v1010, %v1014
      %v1016 = vld [vmem:[%s799] sm:$0xe]
      %v1017 = vld [vmem:[%s799 + $0xc] sm:$0xe]
      %v1018 = vld [vmem:[%s799 + $0x18] sm:$0xe]
      %v1019 = vld [vmem:[%s799 + $0x24] sm:$0xe]
      %v1020 = vld [vmem:[%s799 + $0x30] sm:$0xe]
      %v1021 = vld [vmem:[%s799 + $0x3c] sm:$0xe]
      %v1022 = vld [vmem:[%s799 + $0x48] sm:$0xe]
      %v1023 = vld [vmem:[%s799 + $0x54] sm:$0xe]
      %v1048 = vrot.slane %v1016, 5
      %v1049 = vrot.slane %v1048, 4
      %v1050 = vrot.slane %v801, 5
      %v1051 = vsel %vm437, %v1049, %v1050
      %v1052 = vrot.slane %v1050, 4
      %v1053 = vrot.slane %v816, 5
      %v1054 = vsel %vm437, %v1052, %v1053
      %v1055 = vrot.slane %v1017, 5
      %v1056 = vrot.slane %v1055, 4
      %v1057 = vrot.slane %v803, 5
      %v1058 = vsel %vm437, %v1056, %v1057
      %v1059 = vrot.slane %v1057, 4
      %v1060 = vrot.slane %v817, 5
      %v1061 = vsel %vm437, %v1059, %v1060
      %v1062 = vrot.slane %v1018, 5
      %v1063 = vrot.slane %v1062, 4
      %v1064 = vrot.slane %v805, 5
      %v1065 = vsel %vm437, %v1063, %v1064
      %v1066 = vrot.slane %v1064, 4
      %v1067 = vrot.slane %v818, 5
      %v1068 = vsel %vm437, %v1066, %v1067
      %v1069 = vrot.slane %v1019, 5
      %v1070 = vrot.slane %v1069, 4
      %v1071 = vrot.slane %v807, 5
      %v1072 = vsel %vm437, %v1070, %v1071
      %v1073 = vrot.slane %v1071, 4
      %v1074 = vrot.slane %v819, 5
      %v1075 = vsel %vm437, %v1073, %v1074
      %v1076 = vrot.slane %v1020, 5
      %v1077 = vrot.slane %v1076, 4
      %v1078 = vrot.slane %v809, 5
      %v1079 = vsel %vm437, %v1077, %v1078
      %v1080 = vrot.slane %v1078, 4
      %v1081 = vrot.slane %v820, 5
      %v1082 = vsel %vm437, %v1080, %v1081
      %v1083 = vrot.slane %v1021, 5
      %v1084 = vrot.slane %v1083, 4
      %v1085 = vrot.slane %v811, 5
      %v1086 = vsel %vm437, %v1084, %v1085
      %v1087 = vrot.slane %v1085, 4
      %v1088 = vrot.slane %v821, 5
      %v1089 = vsel %vm437, %v1087, %v1088
      %v1090 = vrot.slane %v1022, 5
      %v1091 = vrot.slane %v1090, 4
      %v1092 = vrot.slane %v813, 5
      %v1093 = vsel %vm437, %v1091, %v1092
      %v1094 = vrot.slane %v1092, 4
      %v1095 = vrot.slane %v822, 5
      %v1096 = vsel %vm437, %v1094, %v1095
      %v1097 = vrot.slane %v1023, 5
      %v1098 = vrot.slane %v1097, 4
      %v1099 = vrot.slane %v815, 5
      %v1100 = vsel %vm437, %v1098, %v1099
      %v1101 = vrot.slane %v1099, 4
      %v1102 = vrot.slane %v823, 5
      %v1103 = vsel %vm437, %v1101, %v1102
      %v1112 = vunpack.c.l.b16 %v184
      %v1113 = vunpack.c.l.b16 %v185
      %v1114 = vunpack.c.l.b16 %v186
      %v1115 = vunpack.c.l.b16 %v187
      %v1116 = vunpack.c.l.b16 %v188
      %v1117 = vunpack.c.l.b16 %v189
      %v1118 = vunpack.c.l.b16 %v190
      %v1119 = vunpack.c.l.b16 %v191
      %v1120 = vunpack.c.l.b16 %v192
      %v1121 = vunpack.c.l.b16 %v193
      %v1122 = vunpack.c.l.b16 %v194
      %v1123 = vunpack.c.l.b16 %v195
      %v1124 = vunpack.c.l.b16 %v196
      %v1125 = vunpack.c.l.b16 %v197
      %v1126 = vunpack.c.l.b16 %v198
      %v1127 = vunpack.c.l.b16 %v199
      %v1128 = vpack.c.b16 %v1113, %v1112
      %v1129 = vpack.c.b16 %v1115, %v1114
      %v1130 = vpack.c.b16 %v1117, %v1116
      %v1131 = vpack.c.b16 %v1119, %v1118
      %v1132 = vpack.c.b16 %v1121, %v1120
      %v1133 = vpack.c.b16 %v1123, %v1122
      %v1134 = vpack.c.b16 %v1125, %v1124
      %v1135 = vpack.c.b16 %v1127, %v1126
      %v1144 = vunpack.c.l.b16 %v224
      %v1145 = vunpack.c.l.b16 %v234
      %v1146 = vunpack.c.l.b16 %v248
      %v1147 = vunpack.c.l.b16 %v258
      %v1148 = vunpack.c.l.b16 %v272
      %v1149 = vunpack.c.l.b16 %v282
      %v1150 = vunpack.c.l.b16 %v296
      %v1151 = vunpack.c.l.b16 %v306
      %v1152 = vunpack.c.l.b16 %v320
      %v1153 = vunpack.c.l.b16 %v330
      %v1154 = vunpack.c.l.b16 %v344
      %v1155 = vunpack.c.l.b16 %v354
      %v1156 = vunpack.c.l.b16 %v368
      %v1157 = vunpack.c.l.b16 %v378
      %v1158 = vunpack.c.l.b16 %v392
      %v1159 = vunpack.c.l.b16 %v402
      %v1160 = vpack.c.b16 %v1145, %v1144
      %v1161 = vpack.c.b16 %v1147, %v1146
      %v1162 = vpack.c.b16 %v1149, %v1148
      %v1163 = vpack.c.b16 %v1151, %v1150
      %v1164 = vpack.c.b16 %v1153, %v1152
      %v1165 = vpack.c.b16 %v1155, %v1154
      %v1166 = vpack.c.b16 %v1157, %v1156
      %v1167 = vpack.c.b16 %v1159, %v1158
      %v1176 = vunpack.c.l.b16 %v441
      %v1177 = vunpack.c.l.b16 %v444
      %v1178 = vunpack.c.l.b16 %v448
      %v1179 = vunpack.c.l.b16 %v451
      %v1180 = vunpack.c.l.b16 %v455
      %v1181 = vunpack.c.l.b16 %v458
      %v1182 = vunpack.c.l.b16 %v462
      %v1183 = vunpack.c.l.b16 %v465
      %v1184 = vunpack.c.l.b16 %v469
      %v1185 = vunpack.c.l.b16 %v472
      %v1186 = vunpack.c.l.b16 %v476
      %v1187 = vunpack.c.l.b16 %v479
      %v1188 = vunpack.c.l.b16 %v483
      %v1189 = vunpack.c.l.b16 %v486
      %v1190 = vunpack.c.l.b16 %v490
      %v1191 = vunpack.c.l.b16 %v493
      %v1192 = vpack.c.b16 %v1177, %v1176
      %v1193 = vpack.c.b16 %v1179, %v1178
      %v1194 = vpack.c.b16 %v1181, %v1180
      %v1195 = vpack.c.b16 %v1183, %v1182
      %v1196 = vpack.c.b16 %v1185, %v1184
      %v1197 = vpack.c.b16 %v1187, %v1186
      %v1198 = vpack.c.b16 %v1189, %v1188
      %v1199 = vpack.c.b16 %v1191, %v1190
      %v1216 = vunpack.c.l.b16 %v495
      %v1217 = vunpack.c.l.b16 %v496
      %v1218 = vunpack.c.l.b16 %v497
      %v1219 = vunpack.c.l.b16 %v498
      %v1220 = vunpack.c.l.b16 %v499
      %v1221 = vunpack.c.l.b16 %v500
      %v1222 = vunpack.c.l.b16 %v501
      %v1223 = vunpack.c.l.b16 %v502
      %v1224 = vunpack.c.l.b16 %v503
      %v1225 = vunpack.c.l.b16 %v504
      %v1226 = vunpack.c.l.b16 %v505
      %v1227 = vunpack.c.l.b16 %v506
      %v1228 = vunpack.c.l.b16 %v507
      %v1229 = vunpack.c.l.b16 %v508
      %v1230 = vunpack.c.l.b16 %v509
      %v1231 = vunpack.c.l.b16 %v510
      %v1232 = vpack.c.b16 %v1217, %v1216
      %v1233 = vpack.c.b16 %v1219, %v1218
      %v1234 = vpack.c.b16 %v1221, %v1220
      %v1235 = vpack.c.b16 %v1223, %v1222
      %v1236 = vpack.c.b16 %v1225, %v1224
      %v1237 = vpack.c.b16 %v1227, %v1226
      %v1238 = vpack.c.b16 %v1229, %v1228
      %v1239 = vpack.c.b16 %v1231, %v1230
      %v1248 = vunpack.c.l.b16 %v532
      %v1249 = vunpack.c.l.b16 %v542
      %v1250 = vunpack.c.l.b16 %v556
      %v1251 = vunpack.c.l.b16 %v566
      %v1252 = vunpack.c.l.b16 %v580
      %v1253 = vunpack.c.l.b16 %v590
      %v1254 = vunpack.c.l.b16 %v604
      %v1255 = vunpack.c.l.b16 %v614
      %v1256 = vunpack.c.l.b16 %v628
      %v1257 = vunpack.c.l.b16 %v638
      %v1258 = vunpack.c.l.b16 %v652
      %v1259 = vunpack.c.l.b16 %v662
      %v1260 = vunpack.c.l.b16 %v676
      %v1261 = vunpack.c.l.b16 %v686
      %v1262 = vunpack.c.l.b16 %v700
      %v1263 = vunpack.c.l.b16 %v710
      %v1264 = vpack.c.b16 %v1249, %v1248
      %v1265 = vpack.c.b16 %v1251, %v1250
      %v1266 = vpack.c.b16 %v1253, %v1252
      %v1267 = vpack.c.b16 %v1255, %v1254
      %v1268 = vpack.c.b16 %v1257, %v1256
      %v1269 = vpack.c.b16 %v1259, %v1258
      %v1270 = vpack.c.b16 %v1261, %v1260
      %v1271 = vpack.c.b16 %v1263, %v1262
      %v1280 = vunpack.c.l.b16 %v746
      %v1281 = vunpack.c.l.b16 %v749
      %v1282 = vunpack.c.l.b16 %v753
      %v1283 = vunpack.c.l.b16 %v756
      %v1284 = vunpack.c.l.b16 %v760
      %v1285 = vunpack.c.l.b16 %v763
      %v1286 = vunpack.c.l.b16 %v767
      %v1287 = vunpack.c.l.b16 %v770
      %v1288 = vunpack.c.l.b16 %v774
      %v1289 = vunpack.c.l.b16 %v777
      %v1290 = vunpack.c.l.b16 %v781
      %v1291 = vunpack.c.l.b16 %v784
      %v1292 = vunpack.c.l.b16 %v788
      %v1293 = vunpack.c.l.b16 %v791
      %v1294 = vunpack.c.l.b16 %v795
      %v1295 = vunpack.c.l.b16 %v798
      %v1296 = vpack.c.b16 %v1281, %v1280
      %v1297 = vpack.c.b16 %v1283, %v1282
      %v1298 = vpack.c.b16 %v1285, %v1284
      %v1299 = vpack.c.b16 %v1287, %v1286
      %v1300 = vpack.c.b16 %v1289, %v1288
      %v1301 = vpack.c.b16 %v1291, %v1290
      %v1302 = vpack.c.b16 %v1293, %v1292
      %v1303 = vpack.c.b16 %v1295, %v1294
      %v1320 = vunpack.c.l.b16 %v800
      %v1321 = vunpack.c.l.b16 %v801
      %v1322 = vunpack.c.l.b16 %v802
      %v1323 = vunpack.c.l.b16 %v803
      %v1324 = vunpack.c.l.b16 %v804
      %v1325 = vunpack.c.l.b16 %v805
      %v1326 = vunpack.c.l.b16 %v806
      %v1327 = vunpack.c.l.b16 %v807
      %v1328 = vunpack.c.l.b16 %v808
      %v1329 = vunpack.c.l.b16 %v809
      %v1330 = vunpack.c.l.b16 %v810
      %v1331 = vunpack.c.l.b16 %v811
      %v1332 = vunpack.c.l.b16 %v812
      %v1333 = vunpack.c.l.b16 %v813
      %v1334 = vunpack.c.l.b16 %v814
      %v1335 = vunpack.c.l.b16 %v815
      %v1336 = vpack.c.b16 %v1321, %v1320
      %v1337 = vpack.c.b16 %v1323, %v1322
      %v1338 = vpack.c.b16 %v1325, %v1324
      %v1339 = vpack.c.b16 %v1327, %v1326
      %v1340 = vpack.c.b16 %v1329, %v1328
      %v1341 = vpack.c.b16 %v1331, %v1330
      %v1342 = vpack.c.b16 %v1333, %v1332
      %v1343 = vpack.c.b16 %v1335, %v1334
      %v1352 = vunpack.c.l.b16 %v837
      %v1353 = vunpack.c.l.b16 %v847
      %v1354 = vunpack.c.l.b16 %v861
      %v1355 = vunpack.c.l.b16 %v871
      %v1356 = vunpack.c.l.b16 %v885
      %v1357 = vunpack.c.l.b16 %v895
      %v1358 = vunpack.c.l.b16 %v909
      %v1359 = vunpack.c.l.b16 %v919
      %v1360 = vunpack.c.l.b16 %v933
      %v1361 = vunpack.c.l.b16 %v943
      %v1362 = vunpack.c.l.b16 %v957
      %v1363 = vunpack.c.l.b16 %v967
      %v1364 = vunpack.c.l.b16 %v981
      %v1365 = vunpack.c.l.b16 %v991
      %v1366 = vunpack.c.l.b16 %v1005
      %v1367 = vunpack.c.l.b16 %v1015
      %v1368 = vpack.c.b16 %v1353, %v1352
      %v1369 = vpack.c.b16 %v1355, %v1354
      %v1370 = vpack.c.b16 %v1357, %v1356
      %v1371 = vpack.c.b16 %v1359, %v1358
      %v1372 = vpack.c.b16 %v1361, %v1360
      %v1373 = vpack.c.b16 %v1363, %v1362
      %v1374 = vpack.c.b16 %v1365, %v1364
      %v1375 = vpack.c.b16 %v1367, %v1366
      %v1384 = vunpack.c.l.b16 %v1051
      %v1385 = vunpack.c.l.b16 %v1054
      %v1386 = vunpack.c.l.b16 %v1058
      %v1387 = vunpack.c.l.b16 %v1061
      %v1388 = vunpack.c.l.b16 %v1065
      %v1389 = vunpack.c.l.b16 %v1068
      %v1390 = vunpack.c.l.b16 %v1072
      %v1391 = vunpack.c.l.b16 %v1075
      %v1392 = vunpack.c.l.b16 %v1079
      %v1393 = vunpack.c.l.b16 %v1082
      %v1394 = vunpack.c.l.b16 %v1086
      %v1395 = vunpack.c.l.b16 %v1089
      %v1396 = vunpack.c.l.b16 %v1093
      %v1397 = vunpack.c.l.b16 %v1096
      %v1398 = vunpack.c.l.b16 %v1100
      %v1399 = vunpack.c.l.b16 %v1103
      %v1400 = vpack.c.b16 %v1385, %v1384
      %v1401 = vpack.c.b16 %v1387, %v1386
      %v1402 = vpack.c.b16 %v1389, %v1388
      %v1403 = vpack.c.b16 %v1391, %v1390
      %v1404 = vpack.c.b16 %v1393, %v1392
      %v1405 = vpack.c.b16 %v1395, %v1394
      %v1406 = vpack.c.b16 %v1397, %v1396
      %v1407 = vpack.c.b16 %v1399, %v1398
      %v1416 = vld [vmem:[%s1] sm:$0xf]
      %v1417 = vld [vmem:[%s1 + $0x4] sm:$0xf]
      %v1418 = vld [vmem:[%s1 + $0x8] sm:$0xf]
      %v1419 = vld [vmem:[%s1 + $0xc] sm:$0xf]
      %v1420 = vld [vmem:[%s1 + $0x10] sm:$0xf]
      %v1421 = vld [vmem:[%s1 + $0x14] sm:$0xf]
      %v1422 = vld [vmem:[%s1 + $0x18] sm:$0xf]
      %v1423 = vld [vmem:[%s1 + $0x1c] sm:$0xf]
      %v1424 = vld [vmem:[%s1 + $0x20] sm:$0xf]
      %v1425 = vld [vmem:[%s1 + $0x24] sm:$0xf]
      %v1426 = vld [vmem:[%s1 + $0x28] sm:$0xf]
      %v1427 = vld [vmem:[%s1 + $0x2c] sm:$0xf]
      %v1428 = vld [vmem:[%s1 + $0x30] sm:$0xf]
      %v1429 = vld [vmem:[%s1 + $0x34] sm:$0xf]
      %v1430 = vld [vmem:[%s1 + $0x38] sm:$0xf]
      %v1431 = vld [vmem:[%s1 + $0x3c] sm:$0xf]
      %v1432 = vld [vmem:[%s1 + $0x40] sm:$0xf]
      %v1433 = vld [vmem:[%s1 + $0x44] sm:$0xf]
      %v1434 = vld [vmem:[%s1 + $0x48] sm:$0xf]
      %v1435 = vld [vmem:[%s1 + $0x4c] sm:$0xf]
      %v1436 = vld [vmem:[%s1 + $0x50] sm:$0xf]
      %v1437 = vld [vmem:[%s1 + $0x54] sm:$0xf]
      %v1438 = vld [vmem:[%s1 + $0x58] sm:$0xf]
      %v1439 = vld [vmem:[%s1 + $0x5c] sm:$0xf]
      %v1440 = vld [vmem:[%s1 + $0x60] sm:$0xf]
      %v1441 = vld [vmem:[%s1 + $0x64] sm:$0xf]
      %v1442 = vld [vmem:[%s1 + $0x68] sm:$0xf]
      %v1443 = vld [vmem:[%s1 + $0x6c] sm:$0xf]
      %v1444 = vld [vmem:[%s1 + $0x70] sm:$0xf]
      %v1445 = vld [vmem:[%s1 + $0x74] sm:$0xf]
      %v1446 = vld [vmem:[%s1 + $0x78] sm:$0xf]
      %v1447 = vld [vmem:[%s1 + $0x7c] sm:$0xf]
      %v1448 = vld [vmem:[%s1 + $0x80] sm:$0xf]
      %v1449 = vld [vmem:[%s1 + $0x84] sm:$0xf]
      %v1450 = vld [vmem:[%s1 + $0x88] sm:$0xf]
      %v1451 = vld [vmem:[%s1 + $0x8c] sm:$0xf]
      %v1452 = vld [vmem:[%s1 + $0x90] sm:$0xf]
      %v1453 = vld [vmem:[%s1 + $0x94] sm:$0xf]
      %v1454 = vld [vmem:[%s1 + $0x98] sm:$0xf]
      %v1455 = vld [vmem:[%s1 + $0x9c] sm:$0xf]
      %v1456 = vld [vmem:[%s1 + $0xa0] sm:$0xf]
      %v1457 = vld [vmem:[%s1 + $0xa4] sm:$0xf]
      %v1458 = vld [vmem:[%s1 + $0xa8] sm:$0xf]
      %v1459 = vld [vmem:[%s1 + $0xac] sm:$0xf]
      %v1460 = vld [vmem:[%s1 + $0xb0] sm:$0xf]
      %v1461 = vld [vmem:[%s1 + $0xb4] sm:$0xf]
      %v1462 = vld [vmem:[%s1 + $0xb8] sm:$0xf]
      %v1463 = vld [vmem:[%s1 + $0xbc] sm:$0xf]
      %v1464 = vld [vmem:[%s1 + $0xc0] sm:$0xf]
      %v1465 = vld [vmem:[%s1 + $0xc4] sm:$0xf]
      %v1466 = vld [vmem:[%s1 + $0xc8] sm:$0xf]
      %v1467 = vld [vmem:[%s1 + $0xcc] sm:$0xf]
      %v1468 = vld [vmem:[%s1 + $0xd0] sm:$0xf]
      %v1469 = vld [vmem:[%s1 + $0xd4] sm:$0xf]
      %v1470 = vld [vmem:[%s1 + $0xd8] sm:$0xf]
      %v1471 = vld [vmem:[%s1 + $0xdc] sm:$0xf]
      %v1472 = vld [vmem:[%s1 + $0xe0] sm:$0xf]
      %v1473 = vld [vmem:[%s1 + $0xe4] sm:$0xf]
      %v1474 = vld [vmem:[%s1 + $0xe8] sm:$0xf]
      %v1475 = vld [vmem:[%s1 + $0xec] sm:$0xf]
      %v1476 = vld [vmem:[%s1 + $0xf0] sm:$0xf]
      %v1477 = vld [vmem:[%s1 + $0xf4] sm:$0xf]
      %v1478 = vld [vmem:[%s1 + $0xf8] sm:$0xf]
      %v1479 = vld [vmem:[%s1 + $0xfc] sm:$0xf]
      %v1480 = vld [vmem:[%s1 + $0x100] sm:$0xf]
      %v1481 = vld [vmem:[%s1 + $0x104] sm:$0xf]
      %v1482 = vld [vmem:[%s1 + $0x108] sm:$0xf]
      %v1483 = vld [vmem:[%s1 + $0x10c] sm:$0xf]
      %v1484 = vld [vmem:[%s1 + $0x110] sm:$0xf]
      %v1485 = vld [vmem:[%s1 + $0x114] sm:$0xf]
      %v1486 = vld [vmem:[%s1 + $0x118] sm:$0xf]
      %v1487 = vld [vmem:[%s1 + $0x11c] sm:$0xf]
      %v1488 = vld [vmem:[%s1 + $0x120] sm:$0xf]
      %v1489 = vld [vmem:[%s1 + $0x124] sm:$0xf]
      %v1490 = vld [vmem:[%s1 + $0x128] sm:$0xf]
      %v1491 = vld [vmem:[%s1 + $0x12c] sm:$0xf]
      %v1492 = vld [vmem:[%s1 + $0x130] sm:$0xf]
      %v1493 = vld [vmem:[%s1 + $0x134] sm:$0xf]
      %v1494 = vld [vmem:[%s1 + $0x138] sm:$0xf]
      %v1495 = vld [vmem:[%s1 + $0x13c] sm:$0xf]
      %v1496 = vld [vmem:[%s1 + $0x140] sm:$0xf]
      %v1497 = vld [vmem:[%s1 + $0x144] sm:$0xf]
      %v1498 = vld [vmem:[%s1 + $0x148] sm:$0xf]
      %v1499 = vld [vmem:[%s1 + $0x14c] sm:$0xf]
      %v1500 = vld [vmem:[%s1 + $0x150] sm:$0xf]
      %v1501 = vld [vmem:[%s1 + $0x154] sm:$0xf]
      %v1502 = vld [vmem:[%s1 + $0x158] sm:$0xf]
      %v1503 = vld [vmem:[%s1 + $0x15c] sm:$0xf]
      %v1504 = vld [vmem:[%s1 + $0x160] sm:$0xf]
      %v1505 = vld [vmem:[%s1 + $0x164] sm:$0xf]
      %v1506 = vld [vmem:[%s1 + $0x168] sm:$0xf]
      %v1507 = vld [vmem:[%s1 + $0x16c] sm:$0xf]
      %v1508 = vld [vmem:[%s1 + $0x170] sm:$0xf]
      %v1509 = vld [vmem:[%s1 + $0x174] sm:$0xf]
      %v1510 = vld [vmem:[%s1 + $0x178] sm:$0xf]
      %v1511 = vld [vmem:[%s1 + $0x17c] sm:$0xf]
      %v1512 = vld [vmem:[%s1 + $0x180] sm:$0xf]
      %v1513 = vld [vmem:[%s1 + $0x184] sm:$0xf]
      %v1514 = vld [vmem:[%s1 + $0x188] sm:$0xf]
      %v1515 = vld [vmem:[%s1 + $0x18c] sm:$0xf]
      %v1516 = vld [vmem:[%s1 + $0x190] sm:$0xf]
      %v1517 = vld [vmem:[%s1 + $0x194] sm:$0xf]
      %v1518 = vld [vmem:[%s1 + $0x198] sm:$0xf]
      %v1519 = vld [vmem:[%s1 + $0x19c] sm:$0xf]
      %v1520 = vld [vmem:[%s1 + $0x1a0] sm:$0xf]
      %v1521 = vld [vmem:[%s1 + $0x1a4] sm:$0xf]
      %v1522 = vld [vmem:[%s1 + $0x1a8] sm:$0xf]
      %v1523 = vld [vmem:[%s1 + $0x1ac] sm:$0xf]
      %v1524 = vld [vmem:[%s1 + $0x1b0] sm:$0xf]
      %v1525 = vld [vmem:[%s1 + $0x1b4] sm:$0xf]
      %v1526 = vld [vmem:[%s1 + $0x1b8] sm:$0xf]
      %v1527 = vld [vmem:[%s1 + $0x1bc] sm:$0xf]
      %v1528 = vld [vmem:[%s1 + $0x1c0] sm:$0xf]
      %v1529 = vld [vmem:[%s1 + $0x1c4] sm:$0xf]
      %v1530 = vld [vmem:[%s1 + $0x1c8] sm:$0xf]
      %v1531 = vld [vmem:[%s1 + $0x1cc] sm:$0xf]
      %v1532 = vld [vmem:[%s1 + $0x1d0] sm:$0xf]
      %v1533 = vld [vmem:[%s1 + $0x1d4] sm:$0xf]
      %v1534 = vld [vmem:[%s1 + $0x1d8] sm:$0xf]
      %v1535 = vld [vmem:[%s1 + $0x1dc] sm:$0xf]
      %v1536 = vld [vmem:[%s1 + $0x1e0] sm:$0xf]
      %v1537 = vld [vmem:[%s1 + $0x1e4] sm:$0xf]
      %v1538 = vld [vmem:[%s1 + $0x1e8] sm:$0xf]
      %v1539 = vld [vmem:[%s1 + $0x1ec] sm:$0xf]
      %v1540 = vld [vmem:[%s1 + $0x1f0] sm:$0xf]
      %v1541 = vld [vmem:[%s1 + $0x1f4] sm:$0xf]
      %v1542 = vld [vmem:[%s1 + $0x1f8] sm:$0xf]
      %v1543 = vld [vmem:[%s1 + $0x1fc] sm:$0xf]
      %v1544 = vld [vmem:[%s1 + $0x200] sm:$0xf]
      %v1545 = vld [vmem:[%s1 + $0x204] sm:$0xf]
      %v1546 = vld [vmem:[%s1 + $0x208] sm:$0xf]
      %v1547 = vld [vmem:[%s1 + $0x20c] sm:$0xf]
      %v1548 = vld [vmem:[%s1 + $0x210] sm:$0xf]
      %v1549 = vld [vmem:[%s1 + $0x214] sm:$0xf]
      %v1550 = vld [vmem:[%s1 + $0x218] sm:$0xf]
      %v1551 = vld [vmem:[%s1 + $0x21c] sm:$0xf]
      %v1552 = vld [vmem:[%s1 + $0x220] sm:$0xf]
      %v1553 = vld [vmem:[%s1 + $0x224] sm:$0xf]
      %v1554 = vld [vmem:[%s1 + $0x228] sm:$0xf]
      %v1555 = vld [vmem:[%s1 + $0x22c] sm:$0xf]
      %v1556 = vld [vmem:[%s1 + $0x230] sm:$0xf]
      %v1557 = vld [vmem:[%s1 + $0x234] sm:$0xf]
      %v1558 = vld [vmem:[%s1 + $0x238] sm:$0xf]
      %v1559 = vld [vmem:[%s1 + $0x23c] sm:$0xf]
      %v1704 = vunpack.c.l.b16 %v1416
      %v1705 = vunpack.c.l.b16 %v1417
      %v1706 = vunpack.c.l.b16 %v1418
      %v1707 = vunpack.c.l.b16 %v1419
      %v1708 = vunpack.c.l.b16 %v1420
      %v1709 = vunpack.c.l.b16 %v1421
      %v1710 = vunpack.c.l.b16 %v1422
      %v1711 = vunpack.c.l.b16 %v1423
      %v1712 = vunpack.c.l.b16 %v1424
      %v1713 = vunpack.c.l.b16 %v1425
      %v1714 = vunpack.c.l.b16 %v1426
      %v1715 = vunpack.c.l.b16 %v1427
      %v1716 = vunpack.c.l.b16 %v1428
      %v1717 = vunpack.c.l.b16 %v1429
      %v1718 = vunpack.c.l.b16 %v1430
      %v1719 = vunpack.c.l.b16 %v1431
      %v1720 = vunpack.c.l.b16 %v1432
      %v1721 = vunpack.c.l.b16 %v1433
      %v1722 = vunpack.c.l.b16 %v1434
      %v1723 = vunpack.c.l.b16 %v1435
      %v1724 = vunpack.c.l.b16 %v1436
      %v1725 = vunpack.c.l.b16 %v1437
      %v1726 = vunpack.c.l.b16 %v1438
      %v1727 = vunpack.c.l.b16 %v1439
      %v1728 = vunpack.c.l.b16 %v1440
      %v1729 = vunpack.c.l.b16 %v1441
      %v1730 = vunpack.c.l.b16 %v1442
      %v1731 = vunpack.c.l.b16 %v1443
      %v1732 = vunpack.c.l.b16 %v1444
      %v1733 = vunpack.c.l.b16 %v1445
      %v1734 = vunpack.c.l.b16 %v1446
      %v1735 = vunpack.c.l.b16 %v1447
      %v1736 = vunpack.c.l.b16 %v1448
      %v1737 = vunpack.c.l.b16 %v1449
      %v1738 = vunpack.c.l.b16 %v1450
      %v1739 = vunpack.c.l.b16 %v1451
      %v1740 = vunpack.c.l.b16 %v1452
      %v1741 = vunpack.c.l.b16 %v1453
      %v1742 = vunpack.c.l.b16 %v1454
      %v1743 = vunpack.c.l.b16 %v1455
      %v1744 = vunpack.c.l.b16 %v1456
      %v1745 = vunpack.c.l.b16 %v1457
      %v1746 = vunpack.c.l.b16 %v1458
      %v1747 = vunpack.c.l.b16 %v1459
      %v1748 = vunpack.c.l.b16 %v1460
      %v1749 = vunpack.c.l.b16 %v1461
      %v1750 = vunpack.c.l.b16 %v1462
      %v1751 = vunpack.c.l.b16 %v1463
      %v1752 = vunpack.c.l.b16 %v1464
      %v1753 = vunpack.c.l.b16 %v1465
      %v1754 = vunpack.c.l.b16 %v1466
      %v1755 = vunpack.c.l.b16 %v1467
      %v1756 = vunpack.c.l.b16 %v1468
      %v1757 = vunpack.c.l.b16 %v1469
      %v1758 = vunpack.c.l.b16 %v1470
      %v1759 = vunpack.c.l.b16 %v1471
      %v1760 = vunpack.c.l.b16 %v1472
      %v1761 = vunpack.c.l.b16 %v1473
      %v1762 = vunpack.c.l.b16 %v1474
      %v1763 = vunpack.c.l.b16 %v1475
      %v1764 = vunpack.c.l.b16 %v1476
      %v1765 = vunpack.c.l.b16 %v1477
      %v1766 = vunpack.c.l.b16 %v1478
      %v1767 = vunpack.c.l.b16 %v1479
      %v1768 = vunpack.c.l.b16 %v1480
      %v1769 = vunpack.c.l.b16 %v1481
      %v1770 = vunpack.c.l.b16 %v1482
      %v1771 = vunpack.c.l.b16 %v1483
      %v1772 = vunpack.c.l.b16 %v1484
      %v1773 = vunpack.c.l.b16 %v1485
      %v1774 = vunpack.c.l.b16 %v1486
      %v1775 = vunpack.c.l.b16 %v1487
      %v1776 = vunpack.c.l.b16 %v1488
      %v1777 = vunpack.c.l.b16 %v1489
      %v1778 = vunpack.c.l.b16 %v1490
      %v1779 = vunpack.c.l.b16 %v1491
      %v1780 = vunpack.c.l.b16 %v1492
      %v1781 = vunpack.c.l.b16 %v1493
      %v1782 = vunpack.c.l.b16 %v1494
      %v1783 = vunpack.c.l.b16 %v1495
      %v1784 = vunpack.c.l.b16 %v1496
      %v1785 = vunpack.c.l.b16 %v1497
      %v1786 = vunpack.c.l.b16 %v1498
      %v1787 = vunpack.c.l.b16 %v1499
      %v1788 = vunpack.c.l.b16 %v1500
      %v1789 = vunpack.c.l.b16 %v1501
      %v1790 = vunpack.c.l.b16 %v1502
      %v1791 = vunpack.c.l.b16 %v1503
      %v1792 = vunpack.c.l.b16 %v1504
      %v1793 = vunpack.c.l.b16 %v1505
      %v1794 = vunpack.c.l.b16 %v1506
      %v1795 = vunpack.c.l.b16 %v1507
      %v1796 = vunpack.c.l.b16 %v1508
      %v1797 = vunpack.c.l.b16 %v1509
      %v1798 = vunpack.c.l.b16 %v1510
      %v1799 = vunpack.c.l.b16 %v1511
      %v1800 = vunpack.c.l.b16 %v1512
      %v1801 = vunpack.c.l.b16 %v1513
      %v1802 = vunpack.c.l.b16 %v1514
      %v1803 = vunpack.c.l.b16 %v1515
      %v1804 = vunpack.c.l.b16 %v1516
      %v1805 = vunpack.c.l.b16 %v1517
      %v1806 = vunpack.c.l.b16 %v1518
      %v1807 = vunpack.c.l.b16 %v1519
      %v1808 = vunpack.c.l.b16 %v1520
      %v1809 = vunpack.c.l.b16 %v1521
      %v1810 = vunpack.c.l.b16 %v1522
      %v1811 = vunpack.c.l.b16 %v1523
      %v1812 = vunpack.c.l.b16 %v1524
      %v1813 = vunpack.c.l.b16 %v1525
      %v1814 = vunpack.c.l.b16 %v1526
      %v1815 = vunpack.c.l.b16 %v1527
      %v1816 = vunpack.c.l.b16 %v1528
      %v1817 = vunpack.c.l.b16 %v1529
      %v1818 = vunpack.c.l.b16 %v1530
      %v1819 = vunpack.c.l.b16 %v1531
      %v1820 = vunpack.c.l.b16 %v1532
      %v1821 = vunpack.c.l.b16 %v1533
      %v1822 = vunpack.c.l.b16 %v1534
      %v1823 = vunpack.c.l.b16 %v1535
      %v1824 = vunpack.c.l.b16 %v1536
      %v1825 = vunpack.c.l.b16 %v1537
      %v1826 = vunpack.c.l.b16 %v1538
      %v1827 = vunpack.c.l.b16 %v1539
      %v1828 = vunpack.c.l.b16 %v1540
      %v1829 = vunpack.c.l.b16 %v1541
      %v1830 = vunpack.c.l.b16 %v1542
      %v1831 = vunpack.c.l.b16 %v1543
      %v1832 = vunpack.c.l.b16 %v1544
      %v1833 = vunpack.c.l.b16 %v1545
      %v1834 = vunpack.c.l.b16 %v1546
      %v1835 = vunpack.c.l.b16 %v1547
      %v1836 = vunpack.c.l.b16 %v1548
      %v1837 = vunpack.c.l.b16 %v1549
      %v1838 = vunpack.c.l.b16 %v1550
      %v1839 = vunpack.c.l.b16 %v1551
      %v1840 = vunpack.c.l.b16 %v1552
      %v1841 = vunpack.c.l.b16 %v1553
      %v1842 = vunpack.c.l.b16 %v1554
      %v1843 = vunpack.c.l.b16 %v1555
      %v1844 = vunpack.c.l.b16 %v1556
      %v1845 = vunpack.c.l.b16 %v1557
      %v1846 = vunpack.c.l.b16 %v1558
      %v1847 = vunpack.c.l.b16 %v1559
      %v1848 = vpack.c.b16 %v1705, %v1704
      %v1849 = vpack.c.b16 %v1707, %v1706
      %v1850 = vpack.c.b16 %v1709, %v1708
      %v1851 = vpack.c.b16 %v1711, %v1710
      %v1852 = vpack.c.b16 %v1713, %v1712
      %v1853 = vpack.c.b16 %v1715, %v1714
      %v1854 = vpack.c.b16 %v1717, %v1716
      %v1855 = vpack.c.b16 %v1719, %v1718
      %v1856 = vpack.c.b16 %v1721, %v1720
      %v1857 = vpack.c.b16 %v1723, %v1722
      %v1858 = vpack.c.b16 %v1725, %v1724
      %v1859 = vpack.c.b16 %v1727, %v1726
      %v1860 = vpack.c.b16 %v1729, %v1728
      %v1861 = vpack.c.b16 %v1731, %v1730
      %v1862 = vpack.c.b16 %v1733, %v1732
      %v1863 = vpack.c.b16 %v1735, %v1734
      %v1864 = vpack.c.b16 %v1737, %v1736
      %v1865 = vpack.c.b16 %v1739, %v1738
      %v1866 = vpack.c.b16 %v1741, %v1740
      %v1867 = vpack.c.b16 %v1743, %v1742
      %v1868 = vpack.c.b16 %v1745, %v1744
      %v1869 = vpack.c.b16 %v1747, %v1746
      %v1870 = vpack.c.b16 %v1749, %v1748
      %v1871 = vpack.c.b16 %v1751, %v1750
      %v1872 = vpack.c.b16 %v1753, %v1752
      %v1873 = vpack.c.b16 %v1755, %v1754
      %v1874 = vpack.c.b16 %v1757, %v1756
      %v1875 = vpack.c.b16 %v1759, %v1758
      %v1876 = vpack.c.b16 %v1761, %v1760
      %v1877 = vpack.c.b16 %v1763, %v1762
      %v1878 = vpack.c.b16 %v1765, %v1764
      %v1879 = vpack.c.b16 %v1767, %v1766
      %v1880 = vpack.c.b16 %v1769, %v1768
      %v1881 = vpack.c.b16 %v1771, %v1770
      %v1882 = vpack.c.b16 %v1773, %v1772
      %v1883 = vpack.c.b16 %v1775, %v1774
      %v1884 = vpack.c.b16 %v1777, %v1776
      %v1885 = vpack.c.b16 %v1779, %v1778
      %v1886 = vpack.c.b16 %v1781, %v1780
      %v1887 = vpack.c.b16 %v1783, %v1782
      %v1888 = vpack.c.b16 %v1785, %v1784
      %v1889 = vpack.c.b16 %v1787, %v1786
      %v1890 = vpack.c.b16 %v1789, %v1788
      %v1891 = vpack.c.b16 %v1791, %v1790
      %v1892 = vpack.c.b16 %v1793, %v1792
      %v1893 = vpack.c.b16 %v1795, %v1794
      %v1894 = vpack.c.b16 %v1797, %v1796
      %v1895 = vpack.c.b16 %v1799, %v1798
      %v1896 = vpack.c.b16 %v1801, %v1800
      %v1897 = vpack.c.b16 %v1803, %v1802
      %v1898 = vpack.c.b16 %v1805, %v1804
      %v1899 = vpack.c.b16 %v1807, %v1806
      %v1900 = vpack.c.b16 %v1809, %v1808
      %v1901 = vpack.c.b16 %v1811, %v1810
      %v1902 = vpack.c.b16 %v1813, %v1812
      %v1903 = vpack.c.b16 %v1815, %v1814
      %v1904 = vpack.c.b16 %v1817, %v1816
      %v1905 = vpack.c.b16 %v1819, %v1818
      %v1906 = vpack.c.b16 %v1821, %v1820
      %v1907 = vpack.c.b16 %v1823, %v1822
      %v1908 = vpack.c.b16 %v1825, %v1824
      %v1909 = vpack.c.b16 %v1827, %v1826
      %v1910 = vpack.c.b16 %v1829, %v1828
      %v1911 = vpack.c.b16 %v1831, %v1830
      %v1912 = vpack.c.b16 %v1833, %v1832
      %v1913 = vpack.c.b16 %v1835, %v1834
      %v1914 = vpack.c.b16 %v1837, %v1836
      %v1915 = vpack.c.b16 %v1839, %v1838
      %v1916 = vpack.c.b16 %v1841, %v1840
      %v1917 = vpack.c.b16 %v1843, %v1842
      %v1918 = vpack.c.b16 %v1845, %v1844
      %v1919 = vpack.c.b16 %v1847, %v1846
      %1992 = vmatprep.subr.bf16.mxu0 0
      %1993 = vmatpush1.bf16.msra.mxu0 %v1848
      %1994 = vmatprep.subr.bf16.mxu0 0
      %1995 = vmatpush1.bf16.msra.mxu0 %v1849
      %1996 = vmatprep.subr.bf16.mxu0 0
      %1997 = vmatpush1.bf16.msra.mxu0 %v1850
      %1998 = vmatprep.subr.bf16.mxu0 0
      %1999 = vmatpush1.bf16.msra.mxu0 %v1851
      %2000 = vmatprep.subr.bf16.mxu0 0
      %2001 = vmatpush1.bf16.msra.mxu0 %v1852
      %2002 = vmatprep.subr.bf16.mxu0 0
      %2003 = vmatpush1.bf16.msra.mxu0 %v1853
      %2004 = vmatprep.subr.bf16.mxu0 0
      %2005 = vmatpush1.bf16.msra.mxu0 %v1854
      %2006 = vmatprep.subr.bf16.mxu0 0
      %2007 = vmatpush1.bf16.msra.mxu0 %v1855
      %2008 = vmatprep.subr.bf16.mxu0 0
      %2009 = vmatpush1.bf16.msra.mxu0 %v1856
      %2010 = vmatprep.subr.bf16.mxu0 0
      %2011 = vmatpush1.bf16.msra.mxu0 %v1857
      %2012 = vmatprep.subr.bf16.mxu0 0
      %2013 = vmatpush1.bf16.msra.mxu0 %v1858
      %2014 = vmatprep.subr.bf16.mxu0 0
      %2015 = vmatpush1.bf16.msra.mxu0 %v1859
      %2016 = vmatprep.subr.bf16.mxu0 0
      %2017 = vmatpush1.bf16.msra.mxu0 %v1860
      %2018 = vmatprep.subr.bf16.mxu0 0
      %2019 = vmatpush1.bf16.msra.mxu0 %v1861
      %2020 = vmatprep.subr.bf16.mxu0 0
      %2021 = vmatpush1.bf16.msra.mxu0 %v1862
      %2022 = vmatprep.subr.bf16.mxu0 0
      %2023 = vmatpush1.bf16.msra.mxu0 %v1863
      %2024 = vmatprep.mubr.bf16.mxu0 %v1160
      %2025 = vmatmul.mubr.bf16.gmra.mrb[0].mxu0 %v1128
      %v2026 = vpop.f32.mrb[0].mxu0
      %v2027 = vadd.f32 0.0, %v2026
      %v2028 = vpop.f32.mrb[0].mxu0
      %v2029 = vpop.f32.mrb[0].mxu0
      %v2030 = vadd.f32 0.0, %v2029
      %v2031 = vpop.f32.mrb[0].mxu0
      %2032 = vmatprep.mubr.bf16.mxu0 %v1161
      %2033 = vmatmul.mubr.bf16.gmra.mrb[0].mxu0 %v1129
      %v2034 = vpop.f32.mrb[0].mxu0
      %v2035 = vadd.f32 0.0, %v2034
      %v2036 = vpop.f32.mrb[0].mxu0
      %v2037 = vpop.f32.mrb[0].mxu0
      %v2038 = vadd.f32 0.0, %v2037
      %v2039 = vpop.f32.mrb[0].mxu0
      %2040 = vmatprep.mubr.bf16.mxu0 %v1162
      %2041 = vmatmul.mubr.bf16.gmra.mrb[0].mxu0 %v1130
      %v2042 = vpop.f32.mrb[0].mxu0
      %v2043 = vadd.f32 0.0, %v2042
      %v2044 = vpop.f32.mrb[0].mxu0
      %v2045 = vpop.f32.mrb[0].mxu0
      %v2046 = vadd.f32 0.0, %v2045
      %v2047 = vpop.f32.mrb[0].mxu0
      %2048 = vmatprep.mubr.bf16.mxu0 %v1163
      %2049 = vmatmul.mubr.bf16.gmra.mrb[0].mxu0 %v1131
      %v2050 = vpop.f32.mrb[0].mxu0
      %v2051 = vadd.f32 0.0, %v2050
      %v2052 = vpop.f32.mrb[0].mxu0
      %v2053 = vpop.f32.mrb[0].mxu0
      %v2054 = vadd.f32 0.0, %v2053
      %v2055 = vpop.f32.mrb[0].mxu0
      %2056 = vmatprep.mubr.bf16.mxu0 %v1164
      %2057 = vmatmul.mubr.bf16.gmra.mrb[0].mxu0 %v1132
      %v2058 = vpop.f32.mrb[0].mxu0
      %v2059 = vadd.f32 0.0, %v2058
      %v2060 = vpop.f32.mrb[0].mxu0
      %v2061 = vpop.f32.mrb[0].mxu0
      %v2062 = vadd.f32 0.0, %v2061
      %v2063 = vpop.f32.mrb[0].mxu0
      %2064 = vmatprep.mubr.bf16.mxu0 %v1165
      %2065 = vmatmul.mubr.bf16.gmra.mrb[0].mxu0 %v1133
      %v2066 = vpop.f32.mrb[0].mxu0
      %v2067 = vadd.f32 0.0, %v2066
      %v2068 = vpop.f32.mrb[0].mxu0
      %v2069 = vpop.f32.mrb[0].mxu0
      %v2070 = vadd.f32 0.0, %v2069
      %v2071 = vpop.f32.mrb[0].mxu0
      %2072 = vmatprep.mubr.bf16.mxu0 %v1166
      %2073 = vmatmul.mubr.bf16.gmra.mrb[0].mxu0 %v1134
      %v2074 = vpop.f32.mrb[0].mxu0
      %v2075 = vadd.f32 0.0, %v2074
      %v2076 = vpop.f32.mrb[0].mxu0
      %v2077 = vpop.f32.mrb[0].mxu0
      %v2078 = vadd.f32 0.0, %v2077
      %v2079 = vpop.f32.mrb[0].mxu0
      %2080 = vmatprep.mubr.bf16.mxu0 %v1167
      %2081 = vmatmul.mubr.bf16.gmra.mrb[0].mxu0 %v1135
      %v2082 = vpop.f32.mrb[0].mxu0
      %v2083 = vadd.f32 0.0, %v2082
      %v2084 = vpop.f32.mrb[0].mxu0
      %v2085 = vpop.f32.mrb[0].mxu0
      %v2086 = vadd.f32 0.0, %v2085
      %v2087 = vpop.f32.mrb[0].mxu0
      %2088 = vdwg.mxu0
      %2089 = vmatprep.subr.bf16.mxu0 0
      %2090 = vmatpush1.bf16.msra.mxu0 %v1864
      %2091 = vmatprep.subr.bf16.mxu0 0
      %2092 = vmatpush1.bf16.msra.mxu0 %v1865
      %2093 = vmatprep.subr.bf16.mxu0 0
      %2094 = vmatpush1.bf16.msra.mxu0 %v1866
      %2095 = vmatprep.subr.bf16.mxu0 0
      %2096 = vmatpush1.bf16.msra.mxu0 %v1867
      %2097 = vmatprep.subr.bf16.mxu0 0
      %2098 = vmatpush1.bf16.msra.mxu0 %v1868
      %2099 = vmatprep.subr.bf16.mxu0 0
      %2100 = vmatpush1.bf16.msra.mxu0 %v1869
      %2101 = vmatprep.subr.bf16.mxu0 0
      %2102 = vmatpush1.bf16.msra.mxu0 %v1870
      %2103 = vmatprep.subr.bf16.mxu0 0
      %2104 = vmatpush1.bf16.msra.mxu0 %v1871
      %2105 = vmatprep.subr.bf16.mxu0 0
      %2106 = vmatpush1.bf16.msra.mxu0 %v1872
      %2107 = vmatprep.subr.bf16.mxu0 0
      %2108 = vmatpush1.bf16.msra.mxu0 %v1873
      %2109 = vmatprep.subr.bf16.mxu0 0
      %2110 = vmatpush1.bf16.msra.mxu0 %v1874
      %2111 = vmatprep.subr.bf16.mxu0 0
      %2112 = vmatpush1.bf16.msra.mxu0 %v1875
      %2113 = vmatprep.subr.bf16.mxu0 0
      %2114 = vmatpush1.bf16.msra.mxu0 %v1876
      %2115 = vmatprep.subr.bf16.mxu0 0
      %2116 = vmatpush1.bf16.msra.mxu0 %v1877
      %2117 = vmatprep.subr.bf16.mxu0 0
      %2118 = vmatpush1.bf16.msra.mxu0 %v1878
      %2119 = vmatprep.subr.bf16.mxu0 0
      %2120 = vmatpush1.bf16.msra.mxu0 %v1879
      %2121 = vmatprep.mubr.bf16.mxu0 %v1232
      %2122 = vmatmul.mubr.bf16.gmra.mrb[0].mxu0 %v1192
      %v2123 = vpop.f32.mrb[0].mxu0
      %v2124 = vadd.f32 %v2027, %v2123
      %v2125 = vpop.f32.mrb[0].mxu0
      %v2126 = vpop.f32.mrb[0].mxu0
      %v2127 = vadd.f32 %v2030, %v2126
      %v2128 = vpop.f32.mrb[0].mxu0
      %2129 = vmatprep.mubr.bf16.mxu0 %v1233
      %2130 = vmatmul.mubr.bf16.gmra.mrb[0].mxu0 %v1193
      %v2131 = vpop.f32.mrb[0].mxu0
      %v2132 = vadd.f32 %v2035, %v2131
      %v2133 = vpop.f32.mrb[0].mxu0
      %v2134 = vpop.f32.mrb[0].mxu0
      %v2135 = vadd.f32 %v2038, %v2134
      %v2136 = vpop.f32.mrb[0].mxu0
      %2137 = vmatprep.mubr.bf16.mxu0 %v1234
      %2138 = vmatmul.mubr.bf16.gmra.mrb[0].mxu0 %v1194
      %v2139 = vpop.f32.mrb[0].mxu0
      %v2140 = vadd.f32 %v2043, %v2139
      %v2141 = vpop.f32.mrb[0].mxu0
      %v2142 = vpop.f32.mrb[0].mxu0
      %v2143 = vadd.f32 %v2046, %v2142
      %v2144 = vpop.f32.mrb[0].mxu0
      %2145 = vmatprep.mubr.bf16.mxu0 %v1235
      %2146 = vmatmul.mubr.bf16.gmra.mrb[0].mxu0 %v1195
      %v2147 = vpop.f32.mrb[0].mxu0
      %v2148 = vadd.f32 %v2051, %v2147
      %v2149 = vpop.f32.mrb[0].mxu0
      %v2150 = vpop.f32.mrb[0].mxu0
      %v2151 = vadd.f32 %v2054, %v2150
      %v2152 = vpop.f32.mrb[0].mxu0
      %2153 = vmatprep.mubr.bf16.mxu0 %v1236
      %2154 = vmatmul.mubr.bf16.gmra.mrb[0].mxu0 %v1196
      %v2155 = vpop.f32.mrb[0].mxu0
      %v2156 = vadd.f32 %v2059, %v2155
      %v2157 = vpop.f32.mrb[0].mxu0
      %v2158 = vpop.f32.mrb[0].mxu0
      %v2159 = vadd.f32 %v2062, %v2158
      %v2160 = vpop.f32.mrb[0].mxu0
      %2161 = vmatprep.mubr.bf16.mxu0 %v1237
      %2162 = vmatmul.mubr.bf16.gmra.mrb[0].mxu0 %v1197
      %v2163 = vpop.f32.mrb[0].mxu0
      %v2164 = vadd.f32 %v2067, %v2163
      %v2165 = vpop.f32.mrb[0].mxu0
      %v2166 = vpop.f32.mrb[0].mxu0
      %v2167 = vadd.f32 %v2070, %v2166
      %v2168 = vpop.f32.mrb[0].mxu0
      %2169 = vmatprep.mubr.bf16.mxu0 %v1238
      %2170 = vmatmul.mubr.bf16.gmra.mrb[0].mxu0 %v1198
      %v2171 = vpop.f32.mrb[0].mxu0
      %v2172 = vadd.f32 %v2075, %v2171
      %v2173 = vpop.f32.mrb[0].mxu0
      %v2174 = vpop.f32.mrb[0].mxu0
      %v2175 = vadd.f32 %v2078, %v2174
      %v2176 = vpop.f32.mrb[0].mxu0
      %2177 = vmatprep.mubr.bf16.mxu0 %v1239
      %2178 = vmatmul.mubr.bf16.gmra.mrb[0].mxu0 %v1199
      %v2179 = vpop.f32.mrb[0].mxu0
      %v2180 = vadd.f32 %v2083, %v2179
      %v2181 = vpop.f32.mrb[0].mxu0
      %v2182 = vpop.f32.mrb[0].mxu0
      %v2183 = vadd.f32 %v2086, %v2182
      %v2184 = vpop.f32.mrb[0].mxu0
      %2185 = vdwg.mxu0
      %2186 = vmatprep.subr.bf16.mxu0 0
      %2187 = vmatpush1.bf16.msra.mxu0 %v1880
      %2188 = vmatprep.subr.bf16.mxu0 0
      %2189 = vmatpush1.bf16.msra.mxu0 %v1881
      %2190 = vmatprep.subr.bf16.mxu0 0
      %2191 = vmatpush1.bf16.msra.mxu0 %v1882
      %2192 = vmatprep.subr.bf16.mxu0 0
      %2193 = vmatpush1.bf16.msra.mxu0 %v1883
      %2194 = vmatprep.subr.bf16.mxu0 0
      %2195 = vmatpush1.bf16.msra.mxu0 %v1884
      %2196 = vmatprep.subr.bf16.mxu0 0
      %2197 = vmatpush1.bf16.msra.mxu0 %v1885
      %2198 = vmatprep.subr.bf16.mxu0 0
      %2199 = vmatpush1.bf16.msra.mxu0 %v1886
      %2200 = vmatprep.subr.bf16.mxu0 0
      %2201 = vmatpush1.bf16.msra.mxu0 %v1887
      %2202 = vmatprep.subr.bf16.mxu0 0
      %2203 = vmatpush1.bf16.msra.mxu0 %v1888
      %2204 = vmatprep.subr.bf16.mxu0 0
      %2205 = vmatpush1.bf16.msra.mxu0 %v1889
      %2206 = vmatprep.subr.bf16.mxu0 0
      %2207 = vmatpush1.bf16.msra.mxu0 %v1890
      %2208 = vmatprep.subr.bf16.mxu0 0
      %2209 = vmatpush1.bf16.msra.mxu0 %v1891
      %2210 = vmatprep.subr.bf16.mxu0 0
      %2211 = vmatpush1.bf16.msra.mxu0 %v1892
      %2212 = vmatprep.subr.bf16.mxu0 0
      %2213 = vmatpush1.bf16.msra.mxu0 %v1893
      %2214 = vmatprep.subr.bf16.mxu0 0
      %2215 = vmatpush1.bf16.msra.mxu0 %v1894
      %2216 = vmatprep.subr.bf16.mxu0 0
      %2217 = vmatpush1.bf16.msra.mxu0 %v1895
      %2218 = vmatprep.mubr.bf16.mxu0 %v1296
      %2219 = vmatmul.mubr.bf16.gmra.mrb[0].mxu0 %v1264
      %v2220 = vpop.f32.mrb[0].mxu0
      %v2221 = vadd.f32 %v2124, %v2220
      %v2222 = vpop.f32.mrb[0].mxu0
      %v2223 = vpop.f32.mrb[0].mxu0
      %v2224 = vadd.f32 %v2127, %v2223
      %v2225 = vpop.f32.mrb[0].mxu0
      %2226 = vmatprep.mubr.bf16.mxu0 %v1297
      %2227 = vmatmul.mubr.bf16.gmra.mrb[0].mxu0 %v1265
      %v2228 = vpop.f32.mrb[0].mxu0
      %v2229 = vadd.f32 %v2132, %v2228
      %v2230 = vpop.f32.mrb[0].mxu0
      %v2231 = vpop.f32.mrb[0].mxu0
      %v2232 = vadd.f32 %v2135, %v2231
      %v2233 = vpop.f32.mrb[0].mxu0
      %2234 = vmatprep.mubr.bf16.mxu0 %v1298
      %2235 = vmatmul.mubr.bf16.gmra.mrb[0].mxu0 %v1266
      %v2236 = vpop.f32.mrb[0].mxu0
      %v2237 = vadd.f32 %v2140, %v2236
      %v2238 = vpop.f32.mrb[0].mxu0
      %v2239 = vpop.f32.mrb[0].mxu0
      %v2240 = vadd.f32 %v2143, %v2239
      %v2241 = vpop.f32.mrb[0].mxu0
      %2242 = vmatprep.mubr.bf16.mxu0 %v1299
      %2243 = vmatmul.mubr.bf16.gmra.mrb[0].mxu0 %v1267
      %v2244 = vpop.f32.mrb[0].mxu0
      %v2245 = vadd.f32 %v2148, %v2244
      %v2246 = vpop.f32.mrb[0].mxu0
      %v2247 = vpop.f32.mrb[0].mxu0
      %v2248 = vadd.f32 %v2151, %v2247
      %v2249 = vpop.f32.mrb[0].mxu0
      %2250 = vmatprep.mubr.bf16.mxu0 %v1300
      %2251 = vmatmul.mubr.bf16.gmra.mrb[0].mxu0 %v1268
      %v2252 = vpop.f32.mrb[0].mxu0
      %v2253 = vadd.f32 %v2156, %v2252
      %v2254 = vpop.f32.mrb[0].mxu0
      %v2255 = vpop.f32.mrb[0].mxu0
      %v2256 = vadd.f32 %v2159, %v2255
      %v2257 = vpop.f32.mrb[0].mxu0
      %2258 = vmatprep.mubr.bf16.mxu0 %v1301
      %2259 = vmatmul.mubr.bf16.gmra.mrb[0].mxu0 %v1269
      %v2260 = vpop.f32.mrb[0].mxu0
      %v2261 = vadd.f32 %v2164, %v2260
      %v2262 = vpop.f32.mrb[0].mxu0
      %v2263 = vpop.f32.mrb[0].mxu0
      %v2264 = vadd.f32 %v2167, %v2263
      %v2265 = vpop.f32.mrb[0].mxu0
      %2266 = vmatprep.mubr.bf16.mxu0 %v1302
      %2267 = vmatmul.mubr.bf16.gmra.mrb[0].mxu0 %v1270
      %v2268 = vpop.f32.mrb[0].mxu0
      %v2269 = vadd.f32 %v2172, %v2268
      %v2270 = vpop.f32.mrb[0].mxu0
      %v2271 = vpop.f32.mrb[0].mxu0
      %v2272 = vadd.f32 %v2175, %v2271
      %v2273 = vpop.f32.mrb[0].mxu0
      %2274 = vmatprep.mubr.bf16.mxu0 %v1303
      %2275 = vmatmul.mubr.bf16.gmra.mrb[0].mxu0 %v1271
      %v2276 = vpop.f32.mrb[0].mxu0
      %v2277 = vadd.f32 %v2180, %v2276
      %v2278 = vpop.f32.mrb[0].mxu0
      %v2279 = vpop.f32.mrb[0].mxu0
      %v2280 = vadd.f32 %v2183, %v2279
      %v2281 = vpop.f32.mrb[0].mxu0
      %2282 = vdwg.mxu0
      %2283 = vmatprep.subr.bf16.mxu0 0
      %2284 = vmatpush1.bf16.msra.mxu0 %v1896
      %2285 = vmatprep.subr.bf16.mxu0 0
      %2286 = vmatpush1.bf16.msra.mxu0 %v1897
      %2287 = vmatprep.subr.bf16.mxu0 0
      %2288 = vmatpush1.bf16.msra.mxu0 %v1898
      %2289 = vmatprep.subr.bf16.mxu0 0
      %2290 = vmatpush1.bf16.msra.mxu0 %v1899
      %2291 = vmatprep.subr.bf16.mxu0 0
      %2292 = vmatpush1.bf16.msra.mxu0 %v1900
      %2293 = vmatprep.subr.bf16.mxu0 0
      %2294 = vmatpush1.bf16.msra.mxu0 %v1901
      %2295 = vmatprep.subr.bf16.mxu0 0
      %2296 = vmatpush1.bf16.msra.mxu0 %v1902
      %2297 = vmatprep.subr.bf16.mxu0 0
      %2298 = vmatpush1.bf16.msra.mxu0 %v1903
      %2299 = vmatprep.subr.bf16.mxu0 0
      %2300 = vmatpush1.bf16.msra.mxu0 %v1904
      %2301 = vmatprep.subr.bf16.mxu0 0
      %2302 = vmatpush1.bf16.msra.mxu0 %v1905
      %2303 = vmatprep.subr.bf16.mxu0 0
      %2304 = vmatpush1.bf16.msra.mxu0 %v1906
      %2305 = vmatprep.subr.bf16.mxu0 0
      %2306 = vmatpush1.bf16.msra.mxu0 %v1907
      %2307 = vmatprep.subr.bf16.mxu0 0
      %2308 = vmatpush1.bf16.msra.mxu0 %v1908
      %2309 = vmatprep.subr.bf16.mxu0 0
      %2310 = vmatpush1.bf16.msra.mxu0 %v1909
      %2311 = vmatprep.subr.bf16.mxu0 0
      %2312 = vmatpush1.bf16.msra.mxu0 %v1910
      %2313 = vmatprep.subr.bf16.mxu0 0
      %2314 = vmatpush1.bf16.msra.mxu0 %v1911
      %2315 = vmatprep.mubr.bf16.mxu0 %v1368
      %2316 = vmatmul.mubr.bf16.gmra.mrb[0].mxu0 %v1336
      %v2317 = vpop.f32.mrb[0].mxu0
      %v2318 = vadd.f32 %v2221, %v2317
      %v2319 = vpop.f32.mrb[0].mxu0
      %v2320 = vpop.f32.mrb[0].mxu0
      %v2321 = vadd.f32 %v2224, %v2320
      %v2322 = vpop.f32.mrb[0].mxu0
      %2323 = vmatprep.mubr.bf16.mxu0 %v1369
      %2324 = vmatmul.mubr.bf16.gmra.mrb[0].mxu0 %v1337
      %v2325 = vpop.f32.mrb[0].mxu0
      %v2326 = vadd.f32 %v2229, %v2325
      %v2327 = vpop.f32.mrb[0].mxu0
      %v2328 = vpop.f32.mrb[0].mxu0
      %v2329 = vadd.f32 %v2232, %v2328
      %v2330 = vpop.f32.mrb[0].mxu0
      %2331 = vmatprep.mubr.bf16.mxu0 %v1370
      %2332 = vmatmul.mubr.bf16.gmra.mrb[0].mxu0 %v1338
      %v2333 = vpop.f32.mrb[0].mxu0
      %v2334 = vadd.f32 %v2237, %v2333
      %v2335 = vpop.f32.mrb[0].mxu0
      %v2336 = vpop.f32.mrb[0].mxu0
      %v2337 = vadd.f32 %v2240, %v2336
      %v2338 = vpop.f32.mrb[0].mxu0
      %2339 = vmatprep.mubr.bf16.mxu0 %v1371
      %2340 = vmatmul.mubr.bf16.gmra.mrb[0].mxu0 %v1339
      %v2341 = vpop.f32.mrb[0].mxu0
      %v2342 = vadd.f32 %v2245, %v2341
      %v2343 = vpop.f32.mrb[0].mxu0
      %v2344 = vpop.f32.mrb[0].mxu0
      %v2345 = vadd.f32 %v2248, %v2344
      %v2346 = vpop.f32.mrb[0].mxu0
      %2347 = vmatprep.mubr.bf16.mxu0 %v1372
      %2348 = vmatmul.mubr.bf16.gmra.mrb[0].mxu0 %v1340
      %v2349 = vpop.f32.mrb[0].mxu0
      %v2350 = vadd.f32 %v2253, %v2349
      %v2351 = vpop.f32.mrb[0].mxu0
      %v2352 = vpop.f32.mrb[0].mxu0
      %v2353 = vadd.f32 %v2256, %v2352
      %v2354 = vpop.f32.mrb[0].mxu0
      %2355 = vmatprep.mubr.bf16.mxu0 %v1373
      %2356 = vmatmul.mubr.bf16.gmra.mrb[0].mxu0 %v1341
      %v2357 = vpop.f32.mrb[0].mxu0
      %v2358 = vadd.f32 %v2261, %v2357
      %v2359 = vpop.f32.mrb[0].mxu0
      %v2360 = vpop.f32.mrb[0].mxu0
      %v2361 = vadd.f32 %v2264, %v2360
      %v2362 = vpop.f32.mrb[0].mxu0
      %2363 = vmatprep.mubr.bf16.mxu0 %v1374
      %2364 = vmatmul.mubr.bf16.gmra.mrb[0].mxu0 %v1342
      %v2365 = vpop.f32.mrb[0].mxu0
      %v2366 = vadd.f32 %v2269, %v2365
      %v2367 = vpop.f32.mrb[0].mxu0
      %v2368 = vpop.f32.mrb[0].mxu0
      %v2369 = vadd.f32 %v2272, %v2368
      %v2370 = vpop.f32.mrb[0].mxu0
      %2371 = vmatprep.mubr.bf16.mxu0 %v1375
      %2372 = vmatmul.mubr.bf16.gmra.mrb[0].mxu0 %v1343
      %v2373 = vpop.f32.mrb[0].mxu0
      %v2374 = vadd.f32 %v2277, %v2373
      %v2375 = vpop.f32.mrb[0].mxu0
      %v2376 = vpop.f32.mrb[0].mxu0
      %v2377 = vadd.f32 %v2280, %v2376
      %v2378 = vpop.f32.mrb[0].mxu0
      %2379 = vdwg.mxu0
      %2380 = vmatprep.subr.bf16.mxu0 0
      %2381 = vmatpush1.bf16.msra.mxu0 %v1912
      %2382 = vmatprep.subr.bf16.mxu0 0
      %2383 = vmatpush1.bf16.msra.mxu0 %v1913
      %2384 = vmatprep.subr.bf16.mxu0 0
      %2385 = vmatpush1.bf16.msra.mxu0 %v1914
      %2386 = vmatprep.subr.bf16.mxu0 0
      %2387 = vmatpush1.bf16.msra.mxu0 %v1915
      %2388 = vmatprep.subr.bf16.mxu0 0
      %2389 = vmatpush1.bf16.msra.mxu0 %v1916
      %2390 = vmatprep.subr.bf16.mxu0 0
      %2391 = vmatpush1.bf16.msra.mxu0 %v1917
      %2392 = vmatprep.subr.bf16.mxu0 0
      %2393 = vmatpush1.bf16.msra.mxu0 %v1918
      %2394 = vmatprep.subr.bf16.mxu0 0
      %2395 = vmatpush1.bf16.msra.mxu0 %v1919
      %2396 = vmatprep.subr.bf16.mxu0 0
      %2397 = vmatpush1.bf16.msra.mxu0 0
      %2398 = vmatprep.subr.bf16.mxu0 0
      %2399 = vmatpush1.bf16.msra.mxu0 0
      %2400 = vmatprep.subr.bf16.mxu0 0
      %2401 = vmatpush1.bf16.msra.mxu0 0
      %2402 = vmatprep.subr.bf16.mxu0 0
      %2403 = vmatpush1.bf16.msra.mxu0 0
      %2404 = vmatprep.subr.bf16.mxu0 0
      %2405 = vmatpush1.bf16.msra.mxu0 0
      %2406 = vmatprep.subr.bf16.mxu0 0
      %2407 = vmatpush1.bf16.msra.mxu0 0
      %2408 = vmatprep.subr.bf16.mxu0 0
      %2409 = vmatpush1.bf16.msra.mxu0 0
      %2410 = vmatprep.subr.bf16.mxu0 0
      %2411 = vmatpush1.bf16.msra.mxu0 0
      %2412 = vmatprep.mubr.bf16.mxu0 0
      %2413 = vmatmul.mubr.bf16.gmra.mrb[0].mxu0 %v1400
      %v2414 = vpop.f32.mrb[0].mxu0
      %v2415 = vadd.f32 %v2318, %v2414
      %v2416 = vpop.f32.mrb[0].mxu0
      %v2417 = vpop.f32.mrb[0].mxu0
      %v2418 = vadd.f32 %v2321, %v2417
      %v2419 = vpop.f32.mrb[0].mxu0
      %2420 = vmatprep.mubr.bf16.mxu0 0
      %2421 = vmatmul.mubr.bf16.gmra.mrb[0].mxu0 %v1401
      %v2422 = vpop.f32.mrb[0].mxu0
      %v2423 = vadd.f32 %v2326, %v2422
      %v2424 = vpop.f32.mrb[0].mxu0
      %v2425 = vpop.f32.mrb[0].mxu0
      %v2426 = vadd.f32 %v2329, %v2425
      %v2427 = vpop.f32.mrb[0].mxu0
      %2428 = vmatprep.mubr.bf16.mxu0 0
      %2429 = vmatmul.mubr.bf16.gmra.mrb[0].mxu0 %v1402
      %v2430 = vpop.f32.mrb[0].mxu0
      %v2431 = vadd.f32 %v2334, %v2430
      %v2432 = vpop.f32.mrb[0].mxu0
      %v2433 = vpop.f32.mrb[0].mxu0
      %v2434 = vadd.f32 %v2337, %v2433
      %v2435 = vpop.f32.mrb[0].mxu0
      %2436 = vmatprep.mubr.bf16.mxu0 0
      %2437 = vmatmul.mubr.bf16.gmra.mrb[0].mxu0 %v1403
      %v2438 = vpop.f32.mrb[0].mxu0
      %v2439 = vadd.f32 %v2342, %v2438
      %v2440 = vpop.f32.mrb[0].mxu0
      %v2441 = vpop.f32.mrb[0].mxu0
      %v2442 = vadd.f32 %v2345, %v2441
      %v2443 = vpop.f32.mrb[0].mxu0
      %2444 = vmatprep.mubr.bf16.mxu0 0
      %2445 = vmatmul.mubr.bf16.gmra.mrb[0].mxu0 %v1404
      %v2446 = vpop.f32.mrb[0].mxu0
      %v2447 = vadd.f32 %v2350, %v2446
      %v2448 = vpop.f32.mrb[0].mxu0
      %v2449 = vpop.f32.mrb[0].mxu0
      %v2450 = vadd.f32 %v2353, %v2449
      %v2451 = vpop.f32.mrb[0].mxu0
      %2452 = vmatprep.mubr.bf16.mxu0 0
      %2453 = vmatmul.mubr.bf16.gmra.mrb[0].mxu0 %v1405
      %v2454 = vpop.f32.mrb[0].mxu0
      %v2455 = vadd.f32 %v2358, %v2454
      %v2456 = vpop.f32.mrb[0].mxu0
      %v2457 = vpop.f32.mrb[0].mxu0
      %v2458 = vadd.f32 %v2361, %v2457
      %v2459 = vpop.f32.mrb[0].mxu0
      %2460 = vmatprep.mubr.bf16.mxu0 0
      %2461 = vmatmul.mubr.bf16.gmra.mrb[0].mxu0 %v1406
      %v2462 = vpop.f32.mrb[0].mxu0
      %v2463 = vadd.f32 %v2366, %v2462
      %v2464 = vpop.f32.mrb[0].mxu0
      %v2465 = vpop.f32.mrb[0].mxu0
      %v2466 = vadd.f32 %v2369, %v2465
      %v2467 = vpop.f32.mrb[0].mxu0
      %2468 = vmatprep.mubr.bf16.mxu0 0
      %2469 = vmatmul.mubr.bf16.gmra.mrb[0].mxu0 %v1407
      %v2470 = vpop.f32.mrb[0].mxu0
      %v2471 = vadd.f32 %v2374, %v2470
      %v2472 = vpop.f32.mrb[0].mxu0
      %v2473 = vpop.f32.mrb[0].mxu0
      %v2474 = vadd.f32 %v2377, %v2473
      %v2475 = vpop.f32.mrb[0].mxu0
      %2476 = vdwg.mxu0
      %2477 = vst [vmem:[%s177] sm:$0xff] %v2415
      %2478 = vst [vmem:[%s177 + $0x8] sm:$0xff] %v2418
      %2479 = vst [vmem:[%s177 + $0x10] sm:$0xff] %v2423
      %2480 = vst [vmem:[%s177 + $0x18] sm:$0xff] %v2426
      %2481 = vst [vmem:[%s177 + $0x20] sm:$0xff] %v2431
      %2482 = vst [vmem:[%s177 + $0x28] sm:$0xff] %v2434
      %2483 = vst [vmem:[%s177 + $0x30] sm:$0xff] %v2439
      %2484 = vst [vmem:[%s177 + $0x38] sm:$0xff] %v2442
      %2485 = vst [vmem:[%s177 + $0x40] sm:$0xff] %v2447
      %2486 = vst [vmem:[%s177 + $0x48] sm:$0xff] %v2450
      %2487 = vst [vmem:[%s177 + $0x50] sm:$0xff] %v2455
      %2488 = vst [vmem:[%s177 + $0x58] sm:$0xff] %v2458
      %2489 = vst [vmem:[%s177 + $0x60] sm:$0xff] %v2463
      %2490 = vst [vmem:[%s177 + $0x68] sm:$0xff] %v2466
      %2491 = vst [vmem:[%s177 + $0x70] sm:$0xff] %v2471
      %2492 = vst [vmem:[%s177 + $0x78] sm:$0xff] %v2474
      %v2493 = vadd.f32 %v2415, %v2418
      %v2494 = vadd.f32 %v2493, %v2423
      %v2495 = vadd.f32 %v2494, %v2426
      %v2496 = vadd.f32 %v2495, %v2431
      %v2497 = vadd.f32 %v2496, %v2434
      %v2498 = vadd.f32 %v2497, %v2439
      %v2499 = vadd.f32 %v2498, %v2442
      %v2500 = vadd.f32 %v2499, %v2447
      %v2501 = vadd.f32 %v2500, %v2450
      %v2502 = vadd.f32 %v2501, %v2455
      %v2503 = vadd.f32 %v2502, %v2458
      %v2504 = vadd.f32 %v2503, %v2463
      %v2505 = vadd.f32 %v2504, %v2466
      %v2506 = vadd.f32 %v2505, %v2471
      %v2507 = vadd.f32 %v2506, %v2474
      %v2508 = vrot.slane %v2507, 4
      %v2509 = vadd.f32 %v2507, %v2508
      %v2510 = vrot.slane %v2509, 2
      %v2511 = vadd.f32 %v2509, %v2510
      %v2512 = vrot.slane %v2511, 1
      %v2513 = vadd.f32 %v2511, %v2512
      %v2514 = vmul.f32 %v2415, %v2415
      %v2515 = vmul.f32 %v2418, %v2418
      %v2516 = vmul.f32 %v2423, %v2423
      %v2517 = vmul.f32 %v2426, %v2426
      %v2518 = vmul.f32 %v2431, %v2431
      %v2519 = vmul.f32 %v2434, %v2434
      %v2520 = vmul.f32 %v2439, %v2439
      %v2521 = vmul.f32 %v2442, %v2442
      %v2522 = vmul.f32 %v2447, %v2447
      %v2523 = vmul.f32 %v2450, %v2450
      %v2524 = vmul.f32 %v2455, %v2455
      %v2525 = vmul.f32 %v2458, %v2458
      %v2526 = vmul.f32 %v2463, %v2463
      %v2527 = vmul.f32 %v2466, %v2466
      %v2528 = vmul.f32 %v2471, %v2471
      %v2529 = vmul.f32 %v2474, %v2474
      %v2530 = vadd.f32 %v2514, %v2515
      %v2531 = vadd.f32 %v2530, %v2516
      %v2532 = vadd.f32 %v2531, %v2517
      %v2533 = vadd.f32 %v2532, %v2518
      %v2534 = vadd.f32 %v2533, %v2519
      %v2535 = vadd.f32 %v2534, %v2520
      %v2536 = vadd.f32 %v2535, %v2521
      %v2537 = vadd.f32 %v2536, %v2522
      %v2538 = vadd.f32 %v2537, %v2523
      %v2539 = vadd.f32 %v2538, %v2524
      %v2540 = vadd.f32 %v2539, %v2525
      %v2541 = vadd.f32 %v2540, %v2526
      %v2542 = vadd.f32 %v2541, %v2527
      %v2543 = vadd.f32 %v2542, %v2528
      %v2544 = vadd.f32 %v2543, %v2529
      %v2545 = vrot.slane %v2544, 4
      %v2546 = vadd.f32 %v2544, %v2545
      %v2547 = vrot.slane %v2546, 2
      %v2548 = vadd.f32 %v2546, %v2547
      %v2549 = vrot.slane %v2548, 1
      %v2550 = vadd.f32 %v2548, %v2549
      %vm2551 = vcmask 1040384
      %v2552 = vsel %vm2551, %v2513, %v2550
      %vm2553 = vcmask 1041408
      %v2554 = vsel %vm2553, %v2552, 0.0
      %2555 = vst [vmem:[%s182] sm:$0xff] %v2554
      %s2556 = smul.u32 16, %s15
      %p2557 = scmp.lt.s32.totalorder %s2556, 63
      %s2558 = scalar_select %p2557, %s2556, 63
      %s2559 = smul.addr %s2558, 8
      %s2560 = scalar_lea.vmem %s2, %s2559
      %p2561 = scmp.lt.s32.totalorder %s15, 3
      %s2562 = scalar_select %p2561, %s15, 3
      %s2563 = smul.addr %s2562, 8
      %s2564 = scalar_lea.vmem %s3, %s2563
      // Predicated region
      $region29: #{residual_conv.4} parent=27 // pred_check
        %p2565 = pneg %p80
      $region30: #{residual_conv.4} parent=27 // pred_check_branch
        %2567 = sbr.rel (%p2565) target = $region32
      $region31: #{residual_conv.4} parent=27 // pred_region
        %s2568 = smul.u32 16, %s15
      $region32: #{residual_conv.4} parent=27 // pred_fallthru
        _
      // Predicated region
      $region33: #{residual_conv.4} parent=27 // pred_check
        %p2569 = pneg %p106
      $region34: #{residual_conv.4} parent=27 // pred_check_branch
        %2571 = sbr.rel (%p2569) target = $region36
      $region35: #{residual_conv.4} parent=27 // pred_region
        _
      $region36: #{residual_conv.4} parent=27 // pred_fallthru
        _
    $region28: #{residual_conv.4} parent=5 // pred_fallthru
      _
    %p2572 = scmp.le.s32.totalorder 2, %s10
    // Predicated region
    $region37: #{residual_conv.4} parent=5 // pred_check
      %p2573 = pneg %p2572
    $region38: #{residual_conv.4} parent=5 // pred_check_branch
      %2575 = sbr.rel (%p2573) target = $region40
    $region39: #{residual_conv.4} parent=5 // pred_region
      %s2576 = ssub.s32 %s10, 2
      // Predicated region
      $region41: #{residual_conv.4} parent=39 // pred_check
        %p2577 = pneg %p86
      $region42: #{residual_conv.4} parent=39 // pred_check_branch
        %2579 = sbr.rel (%p2577) target = $region44
      $region43: #{residual_conv.4} parent=39 // pred_region
        %s2580 = smul.u32 16, %s16
        %p2581 = scmp.lt.s32.totalorder %s2580, 63
        %s2582 = scalar_select %p2581, %s2580, 63
        %s2583 = smul.addr %s2582, 8
        %s2584 = scalar_lea.vmem %s2, %s2583
      $region44: #{residual_conv.4} parent=39 // pred_fallthru
        _
      // Predicated region
      $region45: #{residual_conv.4} parent=39 // pred_check
        %p2585 = pneg %p112
      $region46: #{residual_conv.4} parent=39 // pred_check_branch
        %2587 = sbr.rel (%p2585) target = $region48
      $region47: #{residual_conv.4} parent=39 // pred_region
        %p2588 = scmp.lt.s32.totalorder %s16, 3
        %s2589 = scalar_select %p2588, %s16, 3
        %s2590 = smul.addr %s2589, 8
        %s2591 = scalar_lea.vmem %s3, %s2590
      $region48: #{residual_conv.4} parent=39 // pred_fallthru
        _
    $region40: #{residual_conv.4} parent=5 // pred_fallthru
      _
  $region6: #{residual_conv.4} parent=0 // loop_footer
    %s14 = sadd.s32 1, %s10
  $region7: #{residual_conv.4} parent=0 // loop_footer_branch
    %9 = sbr.rel target = $region3
  $region8: #{residual_conv.4} parent=0 // loop_exit
    _

</llo_original>
